<compile_context>
chip_gen: v7x
topology: tpu7x:2x2x1
jax: 0.10.0
libtpu: 0.0.40
codegen_flags: <defaults>
</compile_context>

<pallas_src>
import functools

import jax
import jax.numpy as jnp
from jax.experimental import pallas as pl
from jax.experimental.pallas import tpu as pltpu

LANE = 128  # TPU lane width


def _round_up(x, m):
    return (x + m - 1) // m * m


def _double_conv_kernel(x_ref, w1_ref, b1_ref, w2_ref, b2_ref, o_ref,
                        xpad_ref, col1_ref, mpad_ref, col2_ref, *, H, W):
    """Fused (conv3x3 pad=1 + folded BN + ReLU) x 2 for one batch element.

    x_ref:   (1, H, W, C_in)        input tile (un-padded)
    w1_ref:  (9*C_in, C_mid_p)      stage-1 weights (BN scale folded in), im2col layout
    b1_ref:  (1, C_mid_p)           stage-1 folded shift (f32)
    w2_ref:  (9*C_mid_p, C_out_p)   stage-2 weights (BN scale folded in), im2col layout
    b2_ref:  (1, C_out_p)           stage-2 folded shift (f32)
    o_ref:   (1, H, W, C_out_p)     lane-dense output tile
    scratch: xpad (H+2, W+2, C_in), col1 (H*W, 9*C_in),
             mpad (H+2, W+2, C_mid_p), col2 (H*W, 9*C_mid_p)
    """
    c_in = x_ref.shape[-1]
    c_mid = w1_ref.shape[-1]      # lane-padded mid channels
    c_out = o_ref.shape[-1]       # lane-padded out channels

    # ---------------- stage 1: conv3x3(pad=1) + folded BN + ReLU ----------------
    # In-kernel pad=1 halo: zero scratch, write interior.
    xpad_ref[...] = jnp.zeros_like(xpad_ref)
    xpad_ref[pl.ds(1, H), pl.ds(1, W), :] = x_ref[0]

    # Build im2col patch buffer (H*W, 9*C_in), then ONE MXU matmul.
    for kh in range(3):
        for kw in range(3):
            k = kh * 3 + kw
            col1_ref[:, pl.ds(k * c_in, c_in)] = (
                xpad_ref[pl.ds(kh, H), pl.ds(kw, W), :].reshape(H * W, c_in))

    y = jnp.dot(col1_ref[...], w1_ref[...],
                preferred_element_type=jnp.float32)          # (H*W, C_mid_p)
    y = jnp.maximum(y + b1_ref[...], 0.0)                    # folded BN shift + ReLU

    # ---------------- stage 2: conv3x3(pad=1) + folded BN + ReLU ----------------
    # Intermediate stays in VMEM (never written back to HBM).
    mpad_ref[...] = jnp.zeros_like(mpad_ref)
    mpad_ref[pl.ds(1, H), pl.ds(1, W), :] = (
        y.reshape(H, W, c_mid).astype(mpad_ref.dtype))

    for kh in range(3):
        for kw in range(3):
            k = kh * 3 + kw
            col2_ref[:, pl.ds(k * c_mid, c_mid)] = (
                mpad_ref[pl.ds(kh, H), pl.ds(kw, W), :].reshape(H * W, c_mid))

    z = jnp.dot(col2_ref[...], w2_ref[...],
                preferred_element_type=jnp.float32)          # (H*W, C_out_p)
    z = jnp.maximum(z + b2_ref[...], 0.0)

    # Lane-dense store (last dim is a multiple of 128).
    o_ref[0] = z.reshape(H, W, c_out).astype(o_ref.dtype)


def fold_bn_into_conv(w_hwio, conv_bias, gamma, beta, running_mean, running_var,
                      eps=1e-5):
    """Fold conv bias + inference-mode BatchNorm into the conv weights + a shift."""
    scale = gamma / jnp.sqrt(running_var + eps)                 # (C_out,)
    w_folded = w_hwio * scale[None, None, None, :]              # scale per out-channel
    shift = (conv_bias - running_mean) * scale + beta
    return w_folded, shift


def double_conv_nhwc(x_nhwc, params, compute_dtype=None, eps=1e-5):
    """Fused DoubleConv on NHWC input. Returns NHWC output."""
    N, H, W, C_in = x_nhwc.shape
    w1, w2 = params["w1"], params["w2"]
    C_mid, C_out = w1.shape[-1], w2.shape[-1]
    C_mid_p = _round_up(C_mid, LANE)
    C_out_p = _round_up(C_out, LANE)
    dt = compute_dtype or x_nhwc.dtype   # bf16 recommended on v6e/v7x

    # Fold BN (and conv bias) into weights + shift; zero-pad channels to the
    # 128-lane width (zero taps stay exactly zero through conv/bias/ReLU) and
    # reshape weights to im2col layout (9*C_in, C_out).
    w1f, b1f = fold_bn_into_conv(w1, params["b1"], params["gamma1"],
                                 params["beta1"], params["rm1"], params["rv1"], eps)
    w2f, b2f = fold_bn_into_conv(w2, params["b2"], params["gamma2"],
                                 params["beta2"], params["rm2"], params["rv2"], eps)

    w1p = jnp.pad(w1f, ((0, 0), (0, 0), (0, 0), (0, C_mid_p - C_mid)))
    w1p = w1p.reshape(9 * C_in, C_mid_p).astype(dt)
    w2p = jnp.pad(w2f, ((0, 0), (0, 0), (0, C_mid_p - C_mid), (0, C_out_p - C_out)))
    w2p = w2p.reshape(9 * C_mid_p, C_out_p).astype(dt)

    b1p = jnp.pad(b1f, (0, C_mid_p - C_mid)).reshape(1, C_mid_p).astype(jnp.float32)
    b2p = jnp.pad(b2f, (0, C_out_p - C_out)).reshape(1, C_out_p).astype(jnp.float32)

    kernel = functools.partial(_double_conv_kernel, H=H, W=W)

    itemsize = jnp.dtype(dt).itemsize
    flops = 2 * N * H * W * 9 * (C_in * C_mid_p + C_mid_p * C_out_p)
    bytes_accessed = (N * H * W * C_in * itemsize + w1p.size * itemsize +
                      w2p.size * itemsize + (b1p.size + b2p.size) * 4 +
                      N * H * W * C_out_p * jnp.dtype(x_nhwc.dtype).itemsize)

    out_p = pl.pallas_call(
        kernel,
        out_shape=jax.ShapeDtypeStruct((N, H, W, C_out_p), x_nhwc.dtype),
        grid_spec=pltpu.PrefetchScalarGridSpec(
            num_scalar_prefetch=0,
            grid=(N,),
            in_specs=[
                pl.BlockSpec((1, H, W, C_in), lambda n: (n, 0, 0, 0)),
                pl.BlockSpec((9 * C_in, C_mid_p), lambda n: (0, 0)),
                pl.BlockSpec((1, C_mid_p), lambda n: (0, 0)),
                pl.BlockSpec((9 * C_mid_p, C_out_p), lambda n: (0, 0)),
                pl.BlockSpec((1, C_out_p), lambda n: (0, 0)),
            ],
            out_specs=pl.BlockSpec((1, H, W, C_out_p), lambda n: (n, 0, 0, 0)),
            scratch_shapes=[
                pltpu.VMEM((H + 2, W + 2, C_in), dt),       # padded input
                pltpu.VMEM((H * W, 9 * C_in), dt),          # im2col stage 1
                pltpu.VMEM((H + 2, W + 2, C_mid_p), dt),    # padded intermediate
                pltpu.VMEM((H * W, 9 * C_mid_p), dt),       # im2col stage 2
            ],
        ),
        compiler_params=pltpu.CompilerParams(
            dimension_semantics=("parallel",)),
        cost_estimate=pl.CostEstimate(flops=int(flops), transcendentals=0,
                                      bytes_accessed=int(bytes_accessed)),
    )(x_nhwc.astype(dt), w1p, b1p, w2p, b2p)

    return out_p[..., :C_out]


def double_conv(x_nchw, params, compute_dtype=None):
    """Pallas implementation of DoubleConv.forward. Input/output NCHW like PyTorch.

    NOTE: on a hot path, keep the surrounding model NHWC and call
    double_conv_nhwc directly to avoid the two full-tensor layout transposes.
    """
    x = jnp.transpose(x_nchw, (0, 2, 3, 1))          # NCHW -> NHWC
    y = double_conv_nhwc(x, params, compute_dtype=compute_dtype)
    return jnp.transpose(y, (0, 3, 1, 2))            # NHWC -> NCHW


def make_params(key, in_channels, out_channels, mid_channels=None):
    if not mid_channels:
        mid_channels = out_channels
    k1, k2, k3, k4 = jax.random.split(key, 4)
    # Deterministic synthetic init (HWIO conv weights); BN params at PyTorch defaults.
    params = {
        "w1": 0.1 * jax.random.normal(k1, (3, 3, in_channels, mid_channels), jnp.float32),
        "b1": 0.1 * jax.random.normal(k2, (mid_channels,), jnp.float32),
        "gamma1": jnp.ones((mid_channels,), jnp.float32),
        "beta1": jnp.zeros((mid_channels,), jnp.float32),
        "rm1": jnp.zeros((mid_channels,), jnp.float32),
        "rv1": jnp.ones((mid_channels,), jnp.float32),
        "w2": 0.1 * jax.random.normal(k3, (3, 3, mid_channels, out_channels), jnp.float32),
        "b2": 0.1 * jax.random.normal(k4, (out_channels,), jnp.float32),
        "gamma2": jnp.ones((out_channels,), jnp.float32),
        "beta2": jnp.zeros((out_channels,), jnp.float32),
        "rm2": jnp.zeros((out_channels,), jnp.float32),
        "rv2": jnp.ones((out_channels,), jnp.float32),
    }
    return params


def _reference(x_nchw, params):
    """Pure-JAX reference (lax conv) for correctness checking."""
    def step(x, w, b, gamma, beta, rm, rv):
        y = jax.lax.conv_general_dilated(
            x, w, window_strides=(1, 1), padding="SAME",
            dimension_numbers=("NCHW", "HWIO", "NCHW"))
        y = y + b[None, :, None, None]
        y = (y - rm[None, :, None, None]) / jnp.sqrt(rv[None, :, None, None] + 1e-5)
        y = y * gamma[None, :, None, None] + beta[None, :, None, None]
        return jnp.maximum(y, 0.0)

    y = step(x_nchw, params["w1"], params["b1"], params["gamma1"],
             params["beta1"], params["rm1"], params["rv1"])
    y = step(y, params["w2"], params["b2"], params["gamma2"],
             params["beta2"], params["rm2"], params["rv2"])
    return y


if __name__ == "__main__":
    key = jax.random.PRNGKey(0)
    kx, kp = jax.random.split(key)

    N, C_in, H, W = 2, 4, 16, 16
    C_out = 8
    x = jax.random.normal(kx, (N, C_in, H, W), jnp.float32)
    params = make_params(kp, C_in, C_out)

    out = double_conv(x, params)
    out = jax.block_until_ready(out)

    ref = jax.block_until_ready(_reference(x, params))
    assert out.shape == (N, C_out, H, W)
    assert jnp.allclose(out, ref, atol=1e-4, rtol=1e-4)

    print("KERNEL_OK")
</pallas_src>

<mosaic_0001>
module attributes {stable_mosaic.version = 11 : i64} {
  func.func @_double_conv_kernel(%arg0: i32, %arg1: memref<1x16x16x4xf32, #tpu.memory_space<vmem>>, %arg2: memref<36x128xf32, #tpu.memory_space<vmem>>, %arg3: memref<1x128xf32, #tpu.memory_space<vmem>>, %arg4: memref<1152x128xf32, #tpu.memory_space<vmem>>, %arg5: memref<1x128xf32, #tpu.memory_space<vmem>>, %arg6: memref<1x16x16x128xf32, #tpu.memory_space<vmem>>, %arg7: memref<18x18x4xf32, #tpu.memory_space<vmem>>, %arg8: memref<256x36xf32, #tpu.memory_space<vmem>>, %arg9: memref<18x18x128xf32, #tpu.memory_space<vmem>>, %arg10: memref<256x1152xf32, #tpu.memory_space<vmem>>) attributes {dimension_semantics = [#tpu.dimension_semantics<parallel>], iteration_bounds = array<i64: 2>, scalar_prefetch = 0 : i64, scratch_operands = 4 : i64, tpu.core_type = #tpu.core_type<tc>, window_params = [{transform_indices = @transform_0, window_bounds = array<i64: 1, 16, 16, 4>}, {pipeline_mode = #tpu.pipeline_mode<synchronous>, transform_indices = @transform_1, window_bounds = array<i64: 36, 128>}, {pipeline_mode = #tpu.pipeline_mode<synchronous>, transform_indices = @transform_2, window_bounds = array<i64: 1, 128>}, {pipeline_mode = #tpu.pipeline_mode<synchronous>, transform_indices = @transform_3, window_bounds = array<i64: 1152, 128>}, {pipeline_mode = #tpu.pipeline_mode<synchronous>, transform_indices = @transform_4, window_bounds = array<i64: 1, 128>}, {transform_indices = @transform_5, window_bounds = array<i64: 1, 16, 16, 128>}]} {
    %cst = arith.constant 0.000000e+00 : f32
    %0 = vector.broadcast %cst : f32 to vector<18x18x4xf32>
    %c0 = arith.constant 0 : index
    %c0_0 = arith.constant 0 : index
    %c0_1 = arith.constant 0 : index
    %1 = vector.load %arg7[%c0, %c0_0, %c0_1] : memref<18x18x4xf32, #tpu.memory_space<vmem>>, vector<18x18x4xf32>
    tpu.vector_store %arg7[%c0, %c0_0, %c0_1], %0 {strides = array<i32>} : memref<18x18x4xf32, #tpu.memory_space<vmem>>, vector<18x18x4xf32>,
    %c0_2 = arith.constant 0 : index
    %c0_3 = arith.constant 0 : index
    %c0_4 = arith.constant 0 : index
    %c0_5 = arith.constant 0 : index
    %2 = vector.load %arg1[%c0_2, %c0_3, %c0_4, %c0_5] : memref<1x16x16x4xf32, #tpu.memory_space<vmem>>, vector<1x16x16x4xf32>
    %3 = vector.shape_cast %2 : vector<1x16x16x4xf32> to vector<16x16x4xf32>
    %c1 = arith.constant 1 : index
    %c1_6 = arith.constant 1 : index
    %c0_7 = arith.constant 0 : index
    %4 = vector.load %arg7[%c1, %c1_6, %c0_7] : memref<18x18x4xf32, #tpu.memory_space<vmem>>, vector<16x16x4xf32>
    tpu.vector_store %arg7[%c1, %c1_6, %c0_7], %3 {strides = array<i32>} : memref<18x18x4xf32, #tpu.memory_space<vmem>>, vector<16x16x4xf32>,
    %c0_8 = arith.constant 0 : index
    %c0_9 = arith.constant 0 : index
    %c0_10 = arith.constant 0 : index
    %5 = vector.load %arg7[%c0_8, %c0_9, %c0_10] : memref<18x18x4xf32, #tpu.memory_space<vmem>>, vector<16x16x4xf32>
    %6 = vector.shape_cast %5 : vector<16x16x4xf32> to vector<256x4xf32>
    %c0_11 = arith.constant 0 : index
    %c0_12 = arith.constant 0 : index
    %7 = vector.load %arg8[%c0_11, %c0_12] : memref<256x36xf32, #tpu.memory_space<vmem>>, vector<256x4xf32>
    tpu.vector_store %arg8[%c0_11, %c0_12], %6 {strides = array<i32>} : memref<256x36xf32, #tpu.memory_space<vmem>>, vector<256x4xf32>,
    %c0_13 = arith.constant 0 : index
    %c1_14 = arith.constant 1 : index
    %c0_15 = arith.constant 0 : index
    %8 = vector.load %arg7[%c0_13, %c1_14, %c0_15] : memref<18x18x4xf32, #tpu.memory_space<vmem>>, vector<16x16x4xf32>
    %9 = vector.shape_cast %8 : vector<16x16x4xf32> to vector<256x4xf32>
    %c0_16 = arith.constant 0 : index
    %c4 = arith.constant 4 : index
    %10 = vector.load %arg8[%c0_16, %c4] : memref<256x36xf32, #tpu.memory_space<vmem>>, vector<256x4xf32>
    tpu.vector_store %arg8[%c0_16, %c4], %9 {strides = array<i32>} : memref<256x36xf32, #tpu.memory_space<vmem>>, vector<256x4xf32>,
    %c0_17 = arith.constant 0 : index
    %c2 = arith.constant 2 : index
    %c0_18 = arith.constant 0 : index
    %11 = vector.load %arg7[%c0_17, %c2, %c0_18] : memref<18x18x4xf32, #tpu.memory_space<vmem>>, vector<16x16x4xf32>
    %12 = vector.shape_cast %11 : vector<16x16x4xf32> to vector<256x4xf32>
    %c0_19 = arith.constant 0 : index
    %c8 = arith.constant 8 : index
    %13 = vector.load %arg8[%c0_19, %c8] : memref<256x36xf32, #tpu.memory_space<vmem>>, vector<256x4xf32>
    tpu.vector_store %arg8[%c0_19, %c8], %12 {strides = array<i32>} : memref<256x36xf32, #tpu.memory_space<vmem>>, vector<256x4xf32>,
    %c1_20 = arith.constant 1 : index
    %c0_21 = arith.constant 0 : index
    %c0_22 = arith.constant 0 : index
    %14 = vector.load %arg7[%c1_20, %c0_21, %c0_22] : memref<18x18x4xf32, #tpu.memory_space<vmem>>, vector<16x16x4xf32>
    %15 = vector.shape_cast %14 : vector<16x16x4xf32> to vector<256x4xf32>
    %c0_23 = arith.constant 0 : index
    %c12 = arith.constant 12 : index
    %16 = vector.load %arg8[%c0_23, %c12] : memref<256x36xf32, #tpu.memory_space<vmem>>, vector<256x4xf32>
    tpu.vector_store %arg8[%c0_23, %c12], %15 {strides = array<i32>} : memref<256x36xf32, #tpu.memory_space<vmem>>, vector<256x4xf32>,
    %c1_24 = arith.constant 1 : index
    %c1_25 = arith.constant 1 : index
    %c0_26 = arith.constant 0 : index
    %17 = vector.load %arg7[%c1_24, %c1_25, %c0_26] : memref<18x18x4xf32, #tpu.memory_space<vmem>>, vector<16x16x4xf32>
    %18 = vector.shape_cast %17 : vector<16x16x4xf32> to vector<256x4xf32>
    %c0_27 = arith.constant 0 : index
    %c16 = arith.constant 16 : index
    %19 = vector.load %arg8[%c0_27, %c16] : memref<256x36xf32, #tpu.memory_space<vmem>>, vector<256x4xf32>
    tpu.vector_store %arg8[%c0_27, %c16], %18 {strides = array<i32>} : memref<256x36xf32, #tpu.memory_space<vmem>>, vector<256x4xf32>,
    %c1_28 = arith.constant 1 : index
    %c2_29 = arith.constant 2 : index
    %c0_30 = arith.constant 0 : index
    %20 = vector.load %arg7[%c1_28, %c2_29, %c0_30] : memref<18x18x4xf32, #tpu.memory_space<vmem>>, vector<16x16x4xf32>
    %21 = vector.shape_cast %20 : vector<16x16x4xf32> to vector<256x4xf32>
    %c0_31 = arith.constant 0 : index
    %c20 = arith.constant 20 : index
    %22 = vector.load %arg8[%c0_31, %c20] : memref<256x36xf32, #tpu.memory_space<vmem>>, vector<256x4xf32>
    tpu.vector_store %arg8[%c0_31, %c20], %21 {strides = array<i32>} : memref<256x36xf32, #tpu.memory_space<vmem>>, vector<256x4xf32>,
    %c2_32 = arith.constant 2 : index
    %c0_33 = arith.constant 0 : index
    %c0_34 = arith.constant 0 : index
    %23 = vector.load %arg7[%c2_32, %c0_33, %c0_34] : memref<18x18x4xf32, #tpu.memory_space<vmem>>, vector<16x16x4xf32>
    %24 = vector.shape_cast %23 : vector<16x16x4xf32> to vector<256x4xf32>
    %c0_35 = arith.constant 0 : index
    %c24 = arith.constant 24 : index
    %25 = vector.load %arg8[%c0_35, %c24] : memref<256x36xf32, #tpu.memory_space<vmem>>, vector<256x4xf32>
    tpu.vector_store %arg8[%c0_35, %c24], %24 {strides = array<i32>} : memref<256x36xf32, #tpu.memory_space<vmem>>, vector<256x4xf32>,
    %c2_36 = arith.constant 2 : index
    %c1_37 = arith.constant 1 : index
    %c0_38 = arith.constant 0 : index
    %26 = vector.load %arg7[%c2_36, %c1_37, %c0_38] : memref<18x18x4xf32, #tpu.memory_space<vmem>>, vector<16x16x4xf32>
    %27 = vector.shape_cast %26 : vector<16x16x4xf32> to vector<256x4xf32>
    %c0_39 = arith.constant 0 : index
    %c28 = arith.constant 28 : index
    %28 = vector.load %arg8[%c0_39, %c28] : memref<256x36xf32, #tpu.memory_space<vmem>>, vector<256x4xf32>
    tpu.vector_store %arg8[%c0_39, %c28], %27 {strides = array<i32>} : memref<256x36xf32, #tpu.memory_space<vmem>>, vector<256x4xf32>,
    %c2_40 = arith.constant 2 : index
    %c2_41 = arith.constant 2 : index
    %c0_42 = arith.constant 0 : index
    %29 = vector.load %arg7[%c2_40, %c2_41, %c0_42] : memref<18x18x4xf32, #tpu.memory_space<vmem>>, vector<16x16x4xf32>
    %30 = vector.shape_cast %29 : vector<16x16x4xf32> to vector<256x4xf32>
    %c0_43 = arith.constant 0 : index
    %c32 = arith.constant 32 : index
    %31 = vector.load %arg8[%c0_43, %c32] : memref<256x36xf32, #tpu.memory_space<vmem>>, vector<256x4xf32>
    tpu.vector_store %arg8[%c0_43, %c32], %30 {strides = array<i32>} : memref<256x36xf32, #tpu.memory_space<vmem>>, vector<256x4xf32>,
    %c0_44 = arith.constant 0 : index
    %c0_45 = arith.constant 0 : index
    %32 = vector.load %arg8[%c0_44, %c0_45] : memref<256x36xf32, #tpu.memory_space<vmem>>, vector<256x36xf32>
    %c0_46 = arith.constant 0 : index
    %c0_47 = arith.constant 0 : index
    %33 = vector.load %arg2[%c0_46, %c0_47] : memref<36x128xf32, #tpu.memory_space<vmem>>, vector<36x128xf32>
    %cst_48 = arith.constant dense<0.000000e+00> : vector<256x128xf32>
    %34 = tpu.matmul %32, %33, %cst_48 {dimension_numbers = #tpu.dot_dimension_numbers<[1], [0], [0], [1], [0, 0, 1, 1], [], []>} : vector<256x36xf32>, vector<36x128xf32>, vector<256x128xf32> -> vector<256x128xf32>
    %c0_49 = arith.constant 0 : index
    %c0_50 = arith.constant 0 : index
    %35 = vector.load %arg3[%c0_49, %c0_50] : memref<1x128xf32, #tpu.memory_space<vmem>>, vector<1x128xf32>
    %36 = vector.broadcast %35 : vector<1x128xf32> to vector<256x128xf32>
    %37 = arith.addf %34, %36 : vector<256x128xf32>
    %cst_51 = arith.constant 0.000000e+00 : f32
    %38 = vector.broadcast %cst_51 : f32 to vector<256x128xf32>
    %39 = arith.maximumf %37, %38 : vector<256x128xf32>
    %cst_52 = arith.constant 0.000000e+00 : f32
    %40 = vector.broadcast %cst_52 : f32 to vector<18x18x128xf32>
    %c0_53 = arith.constant 0 : index
    %c0_54 = arith.constant 0 : index
    %c0_55 = arith.constant 0 : index
    %41 = vector.load %arg9[%c0_53, %c0_54, %c0_55] : memref<18x18x128xf32, #tpu.memory_space<vmem>>, vector<18x18x128xf32>
    tpu.vector_store %arg9[%c0_53, %c0_54, %c0_55], %40 {strides = array<i32>} : memref<18x18x128xf32, #tpu.memory_space<vmem>>, vector<18x18x128xf32>,
    %42 = vector.shape_cast %39 : vector<256x128xf32> to vector<16x16x128xf32>
    %c1_56 = arith.constant 1 : index
    %c1_57 = arith.constant 1 : index
    %c0_58 = arith.constant 0 : index
    %43 = vector.load %arg9[%c1_56, %c1_57, %c0_58] : memref<18x18x128xf32, #tpu.memory_space<vmem>>, vector<16x16x128xf32>
    tpu.vector_store %arg9[%c1_56, %c1_57, %c0_58], %42 {strides = array<i32>} : memref<18x18x128xf32, #tpu.memory_space<vmem>>, vector<16x16x128xf32>,
    %c0_59 = arith.constant 0 : index
    %c0_60 = arith.constant 0 : index
    %c0_61 = arith.constant 0 : index
    %44 = vector.load %arg9[%c0_59, %c0_60, %c0_61] : memref<18x18x128xf32, #tpu.memory_space<vmem>>, vector<16x16x128xf32>
    %45 = vector.shape_cast %44 : vector<16x16x128xf32> to vector<256x128xf32>
    %c0_62 = arith.constant 0 : index
    %c0_63 = arith.constant 0 : index
    %46 = vector.load %arg10[%c0_62, %c0_63] : memref<256x1152xf32, #tpu.memory_space<vmem>>, vector<256x128xf32>
    tpu.vector_store %arg10[%c0_62, %c0_63], %45 {strides = array<i32>} : memref<256x1152xf32, #tpu.memory_space<vmem>>, vector<256x128xf32>,
    %c0_64 = arith.constant 0 : index
    %c1_65 = arith.constant 1 : index
    %c0_66 = arith.constant 0 : index
    %47 = vector.load %arg9[%c0_64, %c1_65, %c0_66] : memref<18x18x128xf32, #tpu.memory_space<vmem>>, vector<16x16x128xf32>
    %48 = vector.shape_cast %47 : vector<16x16x128xf32> to vector<256x128xf32>
    %c0_67 = arith.constant 0 : index
    %c128 = arith.constant 128 : index
    %49 = vector.load %arg10[%c0_67, %c128] : memref<256x1152xf32, #tpu.memory_space<vmem>>, vector<256x128xf32>
    tpu.vector_store %arg10[%c0_67, %c128], %48 {strides = array<i32>} : memref<256x1152xf32, #tpu.memory_space<vmem>>, vector<256x128xf32>,
    %c0_68 = arith.constant 0 : index
    %c2_69 = arith.constant 2 : index
    %c0_70 = arith.constant 0 : index
    %50 = vector.load %arg9[%c0_68, %c2_69, %c0_70] : memref<18x18x128xf32, #tpu.memory_space<vmem>>, vector<16x16x128xf32>
    %51 = vector.shape_cast %50 : vector<16x16x128xf32> to vector<256x128xf32>
    %c0_71 = arith.constant 0 : index
    %c256 = arith.constant 256 : index
    %52 = vector.load %arg10[%c0_71, %c256] : memref<256x1152xf32, #tpu.memory_space<vmem>>, vector<256x128xf32>
    tpu.vector_store %arg10[%c0_71, %c256], %51 {strides = array<i32>} : memref<256x1152xf32, #tpu.memory_space<vmem>>, vector<256x128xf32>,
    %c1_72 = arith.constant 1 : index
    %c0_73 = arith.constant 0 : index
    %c0_74 = arith.constant 0 : index
    %53 = vector.load %arg9[%c1_72, %c0_73, %c0_74] : memref<18x18x128xf32, #tpu.memory_space<vmem>>, vector<16x16x128xf32>
    %54 = vector.shape_cast %53 : vector<16x16x128xf32> to vector<256x128xf32>
    %c0_75 = arith.constant 0 : index
    %c384 = arith.constant 384 : index
    %55 = vector.load %arg10[%c0_75, %c384] : memref<256x1152xf32, #tpu.memory_space<vmem>>, vector<256x128xf32>
    tpu.vector_store %arg10[%c0_75, %c384], %54 {strides = array<i32>} : memref<256x1152xf32, #tpu.memory_space<vmem>>, vector<256x128xf32>,
    %c1_76 = arith.constant 1 : index
    %c1_77 = arith.constant 1 : index
    %c0_78 = arith.constant 0 : index
    %56 = vector.load %arg9[%c1_76, %c1_77, %c0_78] : memref<18x18x128xf32, #tpu.memory_space<vmem>>, vector<16x16x128xf32>
    %57 = vector.shape_cast %56 : vector<16x16x128xf32> to vector<256x128xf32>
    %c0_79 = arith.constant 0 : index
    %c512 = arith.constant 512 : index
    %58 = vector.load %arg10[%c0_79, %c512] : memref<256x1152xf32, #tpu.memory_space<vmem>>, vector<256x128xf32>
    tpu.vector_store %arg10[%c0_79, %c512], %57 {strides = array<i32>} : memref<256x1152xf32, #tpu.memory_space<vmem>>, vector<256x128xf32>,
    %c1_80 = arith.constant 1 : index
    %c2_81 = arith.constant 2 : index
    %c0_82 = arith.constant 0 : index
    %59 = vector.load %arg9[%c1_80, %c2_81, %c0_82] : memref<18x18x128xf32, #tpu.memory_space<vmem>>, vector<16x16x128xf32>
    %60 = vector.shape_cast %59 : vector<16x16x128xf32> to vector<256x128xf32>
    %c0_83 = arith.constant 0 : index
    %c640 = arith.constant 640 : index
    %61 = vector.load %arg10[%c0_83, %c640] : memref<256x1152xf32, #tpu.memory_space<vmem>>, vector<256x128xf32>
    tpu.vector_store %arg10[%c0_83, %c640], %60 {strides = array<i32>} : memref<256x1152xf32, #tpu.memory_space<vmem>>, vector<256x128xf32>,
    %c2_84 = arith.constant 2 : index
    %c0_85 = arith.constant 0 : index
    %c0_86 = arith.constant 0 : index
    %62 = vector.load %arg9[%c2_84, %c0_85, %c0_86] : memref<18x18x128xf32, #tpu.memory_space<vmem>>, vector<16x16x128xf32>
    %63 = vector.shape_cast %62 : vector<16x16x128xf32> to vector<256x128xf32>
    %c0_87 = arith.constant 0 : index
    %c768 = arith.constant 768 : index
    %64 = vector.load %arg10[%c0_87, %c768] : memref<256x1152xf32, #tpu.memory_space<vmem>>, vector<256x128xf32>
    tpu.vector_store %arg10[%c0_87, %c768], %63 {strides = array<i32>} : memref<256x1152xf32, #tpu.memory_space<vmem>>, vector<256x128xf32>,
    %c2_88 = arith.constant 2 : index
    %c1_89 = arith.constant 1 : index
    %c0_90 = arith.constant 0 : index
    %65 = vector.load %arg9[%c2_88, %c1_89, %c0_90] : memref<18x18x128xf32, #tpu.memory_space<vmem>>, vector<16x16x128xf32>
    %66 = vector.shape_cast %65 : vector<16x16x128xf32> to vector<256x128xf32>
    %c0_91 = arith.constant 0 : index
    %c896 = arith.constant 896 : index
    %67 = vector.load %arg10[%c0_91, %c896] : memref<256x1152xf32, #tpu.memory_space<vmem>>, vector<256x128xf32>
    tpu.vector_store %arg10[%c0_91, %c896], %66 {strides = array<i32>} : memref<256x1152xf32, #tpu.memory_space<vmem>>, vector<256x128xf32>,
    %c2_92 = arith.constant 2 : index
    %c2_93 = arith.constant 2 : index
    %c0_94 = arith.constant 0 : index
    %68 = vector.load %arg9[%c2_92, %c2_93, %c0_94] : memref<18x18x128xf32, #tpu.memory_space<vmem>>, vector<16x16x128xf32>
    %69 = vector.shape_cast %68 : vector<16x16x128xf32> to vector<256x128xf32>
    %c0_95 = arith.constant 0 : index
    %c1024 = arith.constant 1024 : index
    %70 = vector.load %arg10[%c0_95, %c1024] : memref<256x1152xf32, #tpu.memory_space<vmem>>, vector<256x128xf32>
    tpu.vector_store %arg10[%c0_95, %c1024], %69 {strides = array<i32>} : memref<256x1152xf32, #tpu.memory_space<vmem>>, vector<256x128xf32>,
    %c0_96 = arith.constant 0 : index
    %c0_97 = arith.constant 0 : index
    %71 = vector.load %arg10[%c0_96, %c0_97] : memref<256x1152xf32, #tpu.memory_space<vmem>>, vector<256x1152xf32>
    %c0_98 = arith.constant 0 : index
    %c0_99 = arith.constant 0 : index
    %72 = vector.load %arg4[%c0_98, %c0_99] : memref<1152x128xf32, #tpu.memory_space<vmem>>, vector<1152x128xf32>
    %cst_100 = arith.constant dense<0.000000e+00> : vector<256x128xf32>
    %73 = tpu.matmul %71, %72, %cst_100 {dimension_numbers = #tpu.dot_dimension_numbers<[1], [0], [0], [1], [0, 0, 1, 1], [], []>} : vector<256x1152xf32>, vector<1152x128xf32>, vector<256x128xf32> -> vector<256x128xf32>
    %c0_101 = arith.constant 0 : index
    %c0_102 = arith.constant 0 : index
    %74 = vector.load %arg5[%c0_101, %c0_102] : memref<1x128xf32, #tpu.memory_space<vmem>>, vector<1x128xf32>
    %75 = vector.broadcast %74 : vector<1x128xf32> to vector<256x128xf32>
    %76 = arith.addf %73, %75 : vector<256x128xf32>
    %cst_103 = arith.constant 0.000000e+00 : f32
    %77 = vector.broadcast %cst_103 : f32 to vector<256x128xf32>
    %78 = arith.maximumf %76, %77 : vector<256x128xf32>
    %79 = vector.shape_cast %78 : vector<256x128xf32> to vector<16x16x128xf32>
    %c0_104 = arith.constant 0 : index
    %c0_105 = arith.constant 0 : index
    %c0_106 = arith.constant 0 : index
    %c0_107 = arith.constant 0 : index
    %80 = vector.load %arg6[%c0_104, %c0_105, %c0_106, %c0_107] : memref<1x16x16x128xf32, #tpu.memory_space<vmem>>, vector<1x16x16x128xf32>
    %81 = vector.shape_cast %80 : vector<1x16x16x128xf32> to vector<16x16x128xf32>
    %82 = vector.shape_cast %79 : vector<16x16x128xf32> to vector<1x16x16x128xf32>
    tpu.vector_store %arg6[%c0_104, %c0_105, %c0_106, %c0_107], %82 {strides = array<i32>} : memref<1x16x16x128xf32, #tpu.memory_space<vmem>>, vector<1x16x16x128xf32>,
    return
  }
  func.func @transform_0(%arg0: i32) -> (i32, i32, i32, i32) {
    %c0_i32 = arith.constant 0 : i32
    %c0_i32_0 = arith.constant 0 : i32
    %c0_i32_1 = arith.constant 0 : i32
    %c0_i32_2 = arith.constant 0 : i32
    return %arg0, %c0_i32, %c0_i32_0, %c0_i32_1 : i32, i32, i32, i32
  }
  func.func @transform_1(%arg0: i32) -> (i32, i32) {
    %c0_i32 = arith.constant 0 : i32
    %c0_i32_0 = arith.constant 0 : i32
    %c0_i32_1 = arith.constant 0 : i32
    return %c0_i32, %c0_i32_0 : i32, i32
  }
  func.func @transform_2(%arg0: i32) -> (i32, i32) {
    %c0_i32 = arith.constant 0 : i32
    %c0_i32_0 = arith.constant 0 : i32
    %c0_i32_1 = arith.constant 0 : i32
    return %c0_i32, %c0_i32_0 : i32, i32
  }
  func.func @transform_3(%arg0: i32) -> (i32, i32) {
    %c0_i32 = arith.constant 0 : i32
    %c0_i32_0 = arith.constant 0 : i32
    %c0_i32_1 = arith.constant 0 : i32
    return %c0_i32, %c0_i32_0 : i32, i32
  }
  func.func @transform_4(%arg0: i32) -> (i32, i32) {
    %c0_i32 = arith.constant 0 : i32
    %c0_i32_0 = arith.constant 0 : i32
    %c0_i32_1 = arith.constant 0 : i32
    return %c0_i32, %c0_i32_0 : i32, i32
  }
  func.func @transform_5(%arg0: i32) -> (i32, i32, i32, i32) {
    %c0_i32 = arith.constant 0 : i32
    %c0_i32_0 = arith.constant 0 : i32
    %c0_i32_1 = arith.constant 0 : i32
    %c0_i32_2 = arith.constant 0 : i32
    return %arg0, %c0_i32, %c0_i32_0, %c0_i32_1 : i32, i32, i32, i32
  }
}

</mosaic_0001>

<llo_original>
// kernel: tpu_custom_call.1
$region0: #{tpu_custom_call.1}
  #allocation0 [shape = 'u32[]', space=smem, size = 0x4, offset = 0x4, fixed_abs, tag = 'smem constant byte address 0x4 - core index']
  #allocation1 [shape = 'u32[144,128]{1,0:T(1,128)}', space=vmem, size = 0x12000, scoped, tag = 'internal scratch']
  #allocation2 [shape = 'f32[18,18,4]{2,1,0:T(8,128)}', space=vmem, size = 0x36000, scoped, tag = 'scratch operand']
  #allocation3 [shape = 'f32[256,36]{1,0:T(8,128)}', space=vmem, size = 0x20000, scoped, tag = 'scratch operand']
  #allocation4 [shape = 'f32[18,18,128]{2,1,0:T(8,128)}', space=vmem, size = 0x36000, scoped, tag = 'scratch operand']
  #allocation5 [shape = 'f32[256,1152]{1,0:T(8,128)}', space=vmem, size = 0x120000, scoped, tag = 'scratch operand']
  %s0 = inlined_call_operand.vmem [shape: f32[2,16,16,4], index: 0, kind: input, shape index: {}]
  %s1 = inlined_call_operand.vmem [shape: f32[36,128], index: 1, kind: input, shape index: {}]
  %s2 = inlined_call_operand.vmem [shape: f32[1,128], index: 2, kind: input, shape index: {}]
  %s3 = inlined_call_operand.hbm [shape: f32[1152,128], index: 3, kind: input, shape index: {}]
  %s4 = inlined_call_operand.vmem [shape: f32[1,128], index: 4, kind: input, shape index: {}]
  %s5 = inlined_call_operand.hbm [shape: f32[2,16,16,128], index: 5, kind: output, shape index: {}]
  %s6 = sld [smem:[#allocation0]]
  $region57: #{tpu_custom_call.1} parent=0
    _
  %s8 = ssub.s32 1, %s6
  %s9 = scalar_select 0, %s8, %s6
  $region1: #{tpu_custom_call.1} parent=0
    #allocation6 [shape = 'u8[589824]{0}', space=vmem, size = 0x90000, scoped, tag = 'input window, operand 3, single buffered']
    #allocation7 [shape = 's32[2]{0}', space=sflag, size = 0x8, scoped, tag = 'scoped memory for tpu_custom_call.1']
    #allocation8 [shape = 's32[2]{0}', space=sflag, size = 0x8, scoped, tag = 'scoped memory for tpu_custom_call.1']
    #allocation9 [shape = 'u8[262144]{0}', space=vmem, size = 0x40000, scoped, tag = 'output window, operand 0']
    %10 = vsyncpa [#allocation7], 0
    %11 = vsyncpa [#allocation8], 0
    %s12 = scalar_lea.sflag [#allocation8], 1
    %13 = vsyncpa %s12, 0
    loop: start=0, step=1, limit=4
    $region2: #{tpu_custom_call.1} parent=1 // loop_pre_header
      _
    $region3: #{tpu_custom_call.1} parent=1 // loop_header
      %s15 = sphi 0, %s19
      %p16 = scmp.ge.s32.totalorder %s15, 4
      %s25 = sphi 0, %s27
      %s28 = sphi 0, %s25
      %s29 = sphi 0, %s28
      %s45 = sphi 0, %s29
      %s49 = sphi 0, %s49
      %s51 = sphi 0, %s49
      %s52 = sphi 0, %s51
      %s66 = sphi 0, %s52
      %s70 = sphi 0, %s70
      %s72 = sphi 0, %s70
      %s73 = sphi 0, %s72
      %s87 = sphi 0, %s73
      %s91 = sphi 0, %s91
      %s93 = sphi 0, %s91
      %s94 = sphi 0, %s93
      %s108 = sphi 0, %s94
      %s112 = sphi 0, %s112
      %s114 = sphi 0, %s112
      %s115 = sphi 0, %s114
      %s129 = sphi 0, %s115
      %s135 = sphi 0, %s137
      %s138 = sphi 0, %s135
      %s139 = sphi 0, %s138
      %s155 = sphi 0, %s139
    $region4: #{tpu_custom_call.1} parent=1 // loop_header_branch
      %18 = sbr.rel (%p16) target = $region8
    $region5: #{tpu_custom_call.1} parent=1 // loop_body
      %s20 = ssub.s32 %s15, 1
      %s21 = ssub.s32 %s15, 2
      %s22 = sadd.s32 %s15, 1
      %s23 = ssub.s32 %s15, %s22
      %p24 = scmp.eq.s32.totalorder %s23, 0
      %s26 = sadd.s32 %s25, 1
      %s27 = scalar_select %p24, %s25, %s26
      %p30 = pneg %p24
      %p31 = scmp.eq.s32.totalorder %s15, 1
      %p32 = por %p30, %p31
      %p33 = scmp.ne.s32.totalorder %s25, %s28
      %p34 = scmp.eq.s32.totalorder %s15, 0
      %p35 = por %p33, %p34
      %p36 = scmp.ne.s32.totalorder %s25, %s28
      %p37 = scmp.eq.s32.totalorder %s20, 1
      %p38 = por %p36, %p37
      %p39 = scmp.ne.s32.totalorder %s28, %s29
      %p40 = scmp.eq.s32.totalorder %s20, 0
      %p41 = por %p39, %p40
      %p42 = scmp.ne.s32.totalorder %s28, %s29
      %p43 = scmp.eq.s32.totalorder %s21, 1
      %p44 = por %p42, %p43
      %p46 = scmp.ne.s32.totalorder %s29, %s45
      %p47 = scmp.eq.s32.totalorder %s21, 0
      %p48 = por %p46, %p47
      %s50 = sadd.s32 %s49, 1
      %p53 = scmp.eq.s32.totalorder %s15, 1
      %p54 = scmp.ne.s32.totalorder %s49, %s51
      %p55 = scmp.eq.s32.totalorder %s15, 0
      %p56 = por %p54, %p55
      %p57 = scmp.ne.s32.totalorder %s49, %s51
      %p58 = scmp.eq.s32.totalorder %s20, 1
      %p59 = por %p57, %p58
      %p60 = scmp.ne.s32.totalorder %s51, %s52
      %p61 = scmp.eq.s32.totalorder %s20, 0
      %p62 = por %p60, %p61
      %p63 = scmp.ne.s32.totalorder %s51, %s52
      %p64 = scmp.eq.s32.totalorder %s21, 1
      %p65 = por %p63, %p64
      %p67 = scmp.ne.s32.totalorder %s52, %s66
      %p68 = scmp.eq.s32.totalorder %s21, 0
      %p69 = por %p67, %p68
      %s71 = sadd.s32 %s70, 1
      %p74 = scmp.eq.s32.totalorder %s15, 1
      %p75 = scmp.ne.s32.totalorder %s70, %s72
      %p76 = scmp.eq.s32.totalorder %s15, 0
      %p77 = por %p75, %p76
      %p78 = scmp.ne.s32.totalorder %s70, %s72
      %p79 = scmp.eq.s32.totalorder %s20, 1
      %p80 = por %p78, %p79
      %p81 = scmp.ne.s32.totalorder %s72, %s73
      %p82 = scmp.eq.s32.totalorder %s20, 0
      %p83 = por %p81, %p82
      %p84 = scmp.ne.s32.totalorder %s72, %s73
      %p85 = scmp.eq.s32.totalorder %s21, 1
      %p86 = por %p84, %p85
      %p88 = scmp.ne.s32.totalorder %s73, %s87
      %p89 = scmp.eq.s32.totalorder %s21, 0
      %p90 = por %p88, %p89
      %s92 = sadd.s32 %s91, 1
      %p95 = scmp.eq.s32.totalorder %s15, 1
      %p96 = scmp.ne.s32.totalorder %s91, %s93
      %p97 = scmp.eq.s32.totalorder %s15, 0
      %p98 = por %p96, %p97
      %p99 = scmp.ne.s32.totalorder %s91, %s93
      %p100 = scmp.eq.s32.totalorder %s20, 1
      %p101 = por %p99, %p100
      %p102 = scmp.ne.s32.totalorder %s93, %s94
      %p103 = scmp.eq.s32.totalorder %s20, 0
      %p104 = por %p102, %p103
      %p105 = scmp.ne.s32.totalorder %s93, %s94
      %p106 = scmp.eq.s32.totalorder %s21, 1
      %p107 = por %p105, %p106
      %p109 = scmp.ne.s32.totalorder %s94, %s108
      %p110 = scmp.eq.s32.totalorder %s21, 0
      %p111 = por %p109, %p110
      %s113 = sadd.s32 %s112, 1
      %p116 = scmp.eq.s32.totalorder %s15, 1
      %p117 = scmp.ne.s32.totalorder %s112, %s114
      %p118 = scmp.eq.s32.totalorder %s15, 0
      %p119 = por %p117, %p118
      %p120 = scmp.ne.s32.totalorder %s112, %s114
      %p121 = scmp.eq.s32.totalorder %s20, 1
      %p122 = por %p120, %p121
      %p123 = scmp.ne.s32.totalorder %s114, %s115
      %p124 = scmp.eq.s32.totalorder %s20, 0
      %p125 = por %p123, %p124
      %p126 = scmp.ne.s32.totalorder %s114, %s115
      %p127 = scmp.eq.s32.totalorder %s21, 1
      %p128 = por %p126, %p127
      %p130 = scmp.ne.s32.totalorder %s115, %s129
      %p131 = scmp.eq.s32.totalorder %s21, 0
      %p132 = por %p130, %p131
      %s133 = ssub.s32 %s15, %s22
      %p134 = scmp.eq.s32.totalorder %s133, 0
      %s136 = sadd.s32 %s135, 1
      %s137 = scalar_select %p134, %s135, %s136
      %p140 = pneg %p134
      %p141 = scmp.eq.s32.totalorder %s15, 1
      %p142 = por %p140, %p141
      %p143 = scmp.ne.s32.totalorder %s135, %s138
      %p144 = scmp.eq.s32.totalorder %s15, 0
      %p145 = por %p143, %p144
      %p146 = scmp.ne.s32.totalorder %s135, %s138
      %p147 = scmp.eq.s32.totalorder %s20, 1
      %p148 = por %p146, %p147
      %p149 = scmp.ne.s32.totalorder %s138, %s139
      %p150 = scmp.eq.s32.totalorder %s20, 0
      %p151 = por %p149, %p150
      %p152 = scmp.ne.s32.totalorder %s138, %s139
      %p153 = scmp.eq.s32.totalorder %s21, 1
      %p154 = por %p152, %p153
      %p156 = scmp.ne.s32.totalorder %s139, %s155
      %p157 = scmp.eq.s32.totalorder %s21, 0
      %p158 = por %p156, %p157
      %p159 = scmp.le.s32.totalorder 1, %s15
      %p160 = scmp.lt.s32.totalorder %s15, 3
      %p161 = pnand %p159, %p160
      %p162 = pneg %p161
      // Predicated region
      $region9: #{tpu_custom_call.1} parent=5 // pred_check
        _
      $region10: #{tpu_custom_call.1} parent=5 // pred_check_branch
        %164 = sbr.rel (%p161) target = $region12
      $region11: #{tpu_custom_call.1} parent=5 // pred_region
        %s165 = ssub.s32 %s15, 1
        // Predicated region
        $region13: #{tpu_custom_call.1} parent=11 // pred_check
          %p166 = pneg %p62
        $region14: #{tpu_custom_call.1} parent=11 // pred_check_branch
          %168 = sbr.rel (%p166) target = $region16
        $region15: #{tpu_custom_call.1} parent=11 // pred_region
          _
        $region16: #{tpu_custom_call.1} parent=11 // pred_fallthru
          _
        // Predicated region
        $region17: #{tpu_custom_call.1} parent=11 // pred_check
          %p169 = pneg %p83
        $region18: #{tpu_custom_call.1} parent=11 // pred_check_branch
          %171 = sbr.rel (%p169) target = $region20
        $region19: #{tpu_custom_call.1} parent=11 // pred_region
          _
        $region20: #{tpu_custom_call.1} parent=11 // pred_fallthru
          _
        // Predicated region
        $region21: #{tpu_custom_call.1} parent=11 // pred_check
          %p172 = pneg %p104
        $region22: #{tpu_custom_call.1} parent=11 // pred_check_branch
          %174 = sbr.rel (%p172) target = $region24
        $region23: #{tpu_custom_call.1} parent=11 // pred_region
          %s176 = ssub.s32 18432, 18432
          %177 = vsyncadd [#allocation7], %s176
          %s178 = sshll.u32 [#allocation6], 4
          %s179 = int_to_ptr.vmem [resolvable:$true] %s178
          %184 = dma.hbm_to_vmem [thread:$0]  %s3, 18432, %s179, [#allocation7], 128, 128, 8
        $region24: #{tpu_custom_call.1} parent=11 // pred_fallthru
          _
        // Predicated region
        $region25: #{tpu_custom_call.1} parent=11 // pred_check
          %p185 = pneg %p125
        $region26: #{tpu_custom_call.1} parent=11 // pred_check_branch
          %187 = sbr.rel (%p185) target = $region28
        $region27: #{tpu_custom_call.1} parent=11 // pred_region
          _
        $region28: #{tpu_custom_call.1} parent=11 // pred_fallthru
          _
      $region12: #{tpu_custom_call.1} parent=5 // pred_fallthru
        _
      %p188 = scmp.lt.s32.totalorder %s15, 2
      // Predicated region
      $region29: #{tpu_custom_call.1} parent=5 // pred_check
        %p189 = pneg %p188
      $region30: #{tpu_custom_call.1} parent=5 // pred_check_branch
        %191 = sbr.rel (%p189) target = $region32
      $region31: #{tpu_custom_call.1} parent=5 // pred_region
        // Predicated region
        $region33: #{tpu_custom_call.1} parent=31 // pred_check
          %p192 = pneg %p35
        $region34: #{tpu_custom_call.1} parent=31 // pred_check_branch
          %194 = sbr.rel (%p192) target = $region36
        $region35: #{tpu_custom_call.1} parent=31 // pred_region
          %p195 = scmp.lt.s32.totalorder %s15, 1
          %s196 = scalar_select %p195, %s15, 1
          %s197 = smul.addr %s196, 32
          %s198 = smul.addr %s197, 8
          %s199 = scalar_lea.vmem %s0, %s198
        $region36: #{tpu_custom_call.1} parent=31 // pred_fallthru
          _
      $region32: #{tpu_custom_call.1} parent=5 // pred_fallthru
        _
      %p200 = scmp.le.s32.totalorder 1, %s15
      %p201 = scmp.lt.s32.totalorder %s15, 3
      %p202 = pnand %p200, %p201
      %p203 = pneg %p202
      // Predicated region
      $region37: #{tpu_custom_call.1} parent=5 // pred_check
        _
      $region38: #{tpu_custom_call.1} parent=5 // pred_check_branch
        %205 = sbr.rel (%p202) target = $region40
      $region39: #{tpu_custom_call.1} parent=5 // pred_region
        %s206 = ssub.s32 %s15, 1
        // Predicated region
        $region41: #{tpu_custom_call.1} parent=39 // pred_check
          %p207 = pneg %p104
        $region42: #{tpu_custom_call.1} parent=39 // pred_check_branch
          %209 = sbr.rel (%p207) target = $region44
        $region43: #{tpu_custom_call.1} parent=39 // pred_region
          %210 = dma.done [#allocation7], 18432
        $region44: #{tpu_custom_call.1} parent=39 // pred_fallthru
          _
        %p211 = scmp.lt.s32.totalorder %s20, 1
        %s212 = scalar_select %p211, %s20, 1
        %s213 = smul.addr %s212, 32
        %s214 = smul.addr %s213, 8
        %s215 = scalar_lea.vmem %s0, %s214
        %p216 = pneg %p41
        %p217 = pneg %p38
        %p218 = pneg %p62
        %p219 = pneg %p59
        %p220 = pneg %p83
        %p221 = pneg %p80
        %p222 = pneg %p104
        %p223 = pneg %p101
        %p224 = pneg %p125
        %p225 = pneg %p122
        %p226 = pneg %p151
        %p227 = pneg %p148
        %s228 = sand.u32 %s138, 1
        %s229 = scalar_lea.sflag [#allocation8], %s228
        %s230 = sand.u32 %s138, 1
        %s231 = smul.addr %s230, 256
        %s232 = scalar_lea.vmem [#allocation9], %s231
        %p233 = scmp.lt.s32.totalorder %s20, 1
        %s234 = scalar_select %p233, %s20, 1
        %s235 = smul.addr %s234, 32
        %s236 = smul.addr %s235, 8
        %s237 = scalar_lea.vmem %s0, %s236
        %vm238 = vcmask 31744
        %239 = vst.msk [vmem:[#allocation2] sm:$0xff] %vm238, 0.0
        %240 = vst.msk [vmem:[#allocation2 + $0x8] sm:$0xff] %vm238, 0.0
        %vm241 = vcmask 25600
        %242 = vst.msk [vmem:[#allocation2 + $0x10] sm:$0x3] %vm241, 0.0
        %243 = vst.msk [vmem:[#allocation2 + $0x18] sm:$0xff] %vm238, 0.0
        %244 = vst.msk [vmem:[#allocation2 + $0x20] sm:$0xff] %vm238, 0.0
        %245 = vst.msk [vmem:[#allocation2 + $0x28] sm:$0x3] %vm241, 0.0
        %246 = vst.msk [vmem:[#allocation2 + $0x30] sm:$0xff] %vm238, 0.0
        %247 = vst.msk [vmem:[#allocation2 + $0x38] sm:$0xff] %vm238, 0.0
        %248 = vst.msk [vmem:[#allocation2 + $0x40] sm:$0x3] %vm241, 0.0
        %249 = vst.msk [vmem:[#allocation2 + $0x48] sm:$0xff] %vm238, 0.0
        %250 = vst.msk [vmem:[#allocation2 + $0x50] sm:$0xff] %vm238, 0.0
        %251 = vst.msk [vmem:[#allocation2 + $0x58] sm:$0x3] %vm241, 0.0
        %252 = vst.msk [vmem:[#allocation2 + $0x60] sm:$0xff] %vm238, 0.0
        %253 = vst.msk [vmem:[#allocation2 + $0x68] sm:$0xff] %vm238, 0.0
        %254 = vst.msk [vmem:[#allocation2 + $0x70] sm:$0x3] %vm241, 0.0
        %255 = vst.msk [vmem:[#allocation2 + $0x78] sm:$0xff] %vm238, 0.0
        %256 = vst.msk [vmem:[#allocation2 + $0x80] sm:$0xff] %vm238, 0.0
        %257 = vst.msk [vmem:[#allocation2 + $0x88] sm:$0x3] %vm241, 0.0
        %258 = vst.msk [vmem:[#allocation2 + $0x90] sm:$0xff] %vm238, 0.0
        %259 = vst.msk [vmem:[#allocation2 + $0x98] sm:$0xff] %vm238, 0.0
        %260 = vst.msk [vmem:[#allocation2 + $0xa0] sm:$0x3] %vm241, 0.0
        %261 = vst.msk [vmem:[#allocation2 + $0xa8] sm:$0xff] %vm238, 0.0
        %262 = vst.msk [vmem:[#allocation2 + $0xb0] sm:$0xff] %vm238, 0.0
        %263 = vst.msk [vmem:[#allocation2 + $0xb8] sm:$0x3] %vm241, 0.0
        %264 = vst.msk [vmem:[#allocation2 + $0xc0] sm:$0xff] %vm238, 0.0
        %265 = vst.msk [vmem:[#allocation2 + $0xc8] sm:$0xff] %vm238, 0.0
        %266 = vst.msk [vmem:[#allocation2 + $0xd0] sm:$0x3] %vm241, 0.0
        %267 = vst.msk [vmem:[#allocation2 + $0xd8] sm:$0xff] %vm238, 0.0
        %268 = vst.msk [vmem:[#allocation2 + $0xe0] sm:$0xff] %vm238, 0.0
        %269 = vst.msk [vmem:[#allocation2 + $0xe8] sm:$0x3] %vm241, 0.0
        %270 = vst.msk [vmem:[#allocation2 + $0xf0] sm:$0xff] %vm238, 0.0
        %271 = vst.msk [vmem:[#allocation2 + $0xf8] sm:$0xff] %vm238, 0.0
        %272 = vst.msk [vmem:[#allocation2 + $0x100] sm:$0x3] %vm241, 0.0
        %273 = vst.msk [vmem:[#allocation2 + $0x108] sm:$0xff] %vm238, 0.0
        %274 = vst.msk [vmem:[#allocation2 + $0x110] sm:$0xff] %vm238, 0.0
        %275 = vst.msk [vmem:[#allocation2 + $0x118] sm:$0x3] %vm241, 0.0
        %276 = vst.msk [vmem:[#allocation2 + $0x120] sm:$0xff] %vm238, 0.0
        %277 = vst.msk [vmem:[#allocation2 + $0x128] sm:$0xff] %vm238, 0.0
        %278 = vst.msk [vmem:[#allocation2 + $0x130] sm:$0x3] %vm241, 0.0
        %279 = vst.msk [vmem:[#allocation2 + $0x138] sm:$0xff] %vm238, 0.0
        %280 = vst.msk [vmem:[#allocation2 + $0x140] sm:$0xff] %vm238, 0.0
        %281 = vst.msk [vmem:[#allocation2 + $0x148] sm:$0x3] %vm241, 0.0
        %282 = vst.msk [vmem:[#allocation2 + $0x150] sm:$0xff] %vm238, 0.0
        %283 = vst.msk [vmem:[#allocation2 + $0x158] sm:$0xff] %vm238, 0.0
        %284 = vst.msk [vmem:[#allocation2 + $0x160] sm:$0x3] %vm241, 0.0
        %285 = vst.msk [vmem:[#allocation2 + $0x168] sm:$0xff] %vm238, 0.0
        %286 = vst.msk [vmem:[#allocation2 + $0x170] sm:$0xff] %vm238, 0.0
        %287 = vst.msk [vmem:[#allocation2 + $0x178] sm:$0x3] %vm241, 0.0
        %288 = vst.msk [vmem:[#allocation2 + $0x180] sm:$0xff] %vm238, 0.0
        %289 = vst.msk [vmem:[#allocation2 + $0x188] sm:$0xff] %vm238, 0.0
        %290 = vst.msk [vmem:[#allocation2 + $0x190] sm:$0x3] %vm241, 0.0
        %291 = vst.msk [vmem:[#allocation2 + $0x198] sm:$0xff] %vm238, 0.0
        %292 = vst.msk [vmem:[#allocation2 + $0x1a0] sm:$0xff] %vm238, 0.0
        %293 = vst.msk [vmem:[#allocation2 + $0x1a8] sm:$0x3] %vm241, 0.0
        %v294 = vld [vmem:[%s237] sm:$0xff]
        %v295 = vld [vmem:[%s237 + $0x8] sm:$0xff]
        %v296 = vld [vmem:[%s237 + $0x10] sm:$0xff]
        %v297 = vld [vmem:[%s237 + $0x18] sm:$0xff]
        %v298 = vld [vmem:[%s237 + $0x20] sm:$0xff]
        %v299 = vld [vmem:[%s237 + $0x28] sm:$0xff]
        %v300 = vld [vmem:[%s237 + $0x30] sm:$0xff]
        %v301 = vld [vmem:[%s237 + $0x38] sm:$0xff]
        %v302 = vld [vmem:[%s237 + $0x40] sm:$0xff]
        %v303 = vld [vmem:[%s237 + $0x48] sm:$0xff]
        %v304 = vld [vmem:[%s237 + $0x50] sm:$0xff]
        %v305 = vld [vmem:[%s237 + $0x58] sm:$0xff]
        %v306 = vld [vmem:[%s237 + $0x60] sm:$0xff]
        %v307 = vld [vmem:[%s237 + $0x68] sm:$0xff]
        %v308 = vld [vmem:[%s237 + $0x70] sm:$0xff]
        %v309 = vld [vmem:[%s237 + $0x78] sm:$0xff]
        %v310 = vld [vmem:[%s237 + $0x80] sm:$0xff]
        %v311 = vld [vmem:[%s237 + $0x88] sm:$0xff]
        %v312 = vld [vmem:[%s237 + $0x90] sm:$0xff]
        %v313 = vld [vmem:[%s237 + $0x98] sm:$0xff]
        %v314 = vld [vmem:[%s237 + $0xa0] sm:$0xff]
        %v315 = vld [vmem:[%s237 + $0xa8] sm:$0xff]
        %v316 = vld [vmem:[%s237 + $0xb0] sm:$0xff]
        %v317 = vld [vmem:[%s237 + $0xb8] sm:$0xff]
        %v318 = vld [vmem:[%s237 + $0xc0] sm:$0xff]
        %v319 = vld [vmem:[%s237 + $0xc8] sm:$0xff]
        %v320 = vld [vmem:[%s237 + $0xd0] sm:$0xff]
        %v321 = vld [vmem:[%s237 + $0xd8] sm:$0xff]
        %v322 = vld [vmem:[%s237 + $0xe0] sm:$0xff]
        %v323 = vld [vmem:[%s237 + $0xe8] sm:$0xff]
        %v324 = vld [vmem:[%s237 + $0xf0] sm:$0xff]
        %v325 = vld [vmem:[%s237 + $0xf8] sm:$0xff]
        %s326 = scalar_lea.vmem [#allocation2], 24
        %327 = vst.msk [vmem:[%s326 + $0x1] sm:$0xff] %vm238, %v294
        %328 = vst.msk [vmem:[%s326 + $0x9] sm:$0xff] %vm238, %v295
        %329 = vst.msk [vmem:[%s326 + $0x19] sm:$0xff] %vm238, %v296
        %330 = vst.msk [vmem:[%s326 + $0x21] sm:$0xff] %vm238, %v297
        %331 = vst.msk [vmem:[%s326 + $0x31] sm:$0xff] %vm238, %v298
        %332 = vst.msk [vmem:[%s326 + $0x39] sm:$0xff] %vm238, %v299
        %333 = vst.msk [vmem:[%s326 + $0x49] sm:$0xff] %vm238, %v300
        %334 = vst.msk [vmem:[%s326 + $0x51] sm:$0xff] %vm238, %v301
        %335 = vst.msk [vmem:[%s326 + $0x61] sm:$0xff] %vm238, %v302
        %336 = vst.msk [vmem:[%s326 + $0x69] sm:$0xff] %vm238, %v303
        %337 = vst.msk [vmem:[%s326 + $0x79] sm:$0xff] %vm238, %v304
        %338 = vst.msk [vmem:[%s326 + $0x81] sm:$0xff] %vm238, %v305
        %339 = vst.msk [vmem:[%s326 + $0x91] sm:$0xff] %vm238, %v306
        %340 = vst.msk [vmem:[%s326 + $0x99] sm:$0xff] %vm238, %v307
        %341 = vst.msk [vmem:[%s326 + $0xa9] sm:$0xff] %vm238, %v308
        %342 = vst.msk [vmem:[%s326 + $0xb1] sm:$0xff] %vm238, %v309
        %343 = vst.msk [vmem:[%s326 + $0xc1] sm:$0xff] %vm238, %v310
        %344 = vst.msk [vmem:[%s326 + $0xc9] sm:$0xff] %vm238, %v311
        %345 = vst.msk [vmem:[%s326 + $0xd9] sm:$0xff] %vm238, %v312
        %346 = vst.msk [vmem:[%s326 + $0xe1] sm:$0xff] %vm238, %v313
        %347 = vst.msk [vmem:[%s326 + $0xf1] sm:$0xff] %vm238, %v314
        %348 = vst.msk [vmem:[%s326 + $0xf9] sm:$0xff] %vm238, %v315
        %349 = vst.msk [vmem:[%s326 + $0x109] sm:$0xff] %vm238, %v316
        %350 = vst.msk [vmem:[%s326 + $0x111] sm:$0xff] %vm238, %v317
        %351 = vst.msk [vmem:[%s326 + $0x121] sm:$0xff] %vm238, %v318
        %352 = vst.msk [vmem:[%s326 + $0x129] sm:$0xff] %vm238, %v319
        %353 = vst.msk [vmem:[%s326 + $0x139] sm:$0xff] %vm238, %v320
        %354 = vst.msk [vmem:[%s326 + $0x141] sm:$0xff] %vm238, %v321
        %355 = vst.msk [vmem:[%s326 + $0x151] sm:$0xff] %vm238, %v322
        %356 = vst.msk [vmem:[%s326 + $0x159] sm:$0xff] %vm238, %v323
        %357 = vst.msk [vmem:[%s326 + $0x169] sm:$0xff] %vm238, %v324
        %358 = vst.msk [vmem:[%s326 + $0x171] sm:$0xff] %vm238, %v325
        %v359 = vld [vmem:[#allocation2] sm:$0xff]
        %v360 = vld [vmem:[#allocation2 + $0x8] sm:$0xff]
        %v361 = vld [vmem:[#allocation2 + $0x18] sm:$0xff]
        %v362 = vld [vmem:[#allocation2 + $0x20] sm:$0xff]
        %v363 = vld [vmem:[#allocation2 + $0x30] sm:$0xff]
        %v364 = vld [vmem:[#allocation2 + $0x38] sm:$0xff]
        %v365 = vld [vmem:[#allocation2 + $0x48] sm:$0xff]
        %v366 = vld [vmem:[#allocation2 + $0x50] sm:$0xff]
        %v367 = vld [vmem:[#allocation2 + $0x60] sm:$0xff]
        %v368 = vld [vmem:[#allocation2 + $0x68] sm:$0xff]
        %v369 = vld [vmem:[#allocation2 + $0x78] sm:$0xff]
        %v370 = vld [vmem:[#allocation2 + $0x80] sm:$0xff]
        %v371 = vld [vmem:[#allocation2 + $0x90] sm:$0xff]
        %v372 = vld [vmem:[#allocation2 + $0x98] sm:$0xff]
        %v373 = vld [vmem:[#allocation2 + $0xa8] sm:$0xff]
        %v374 = vld [vmem:[#allocation2 + $0xb0] sm:$0xff]
        %v375 = vld [vmem:[#allocation2 + $0xc0] sm:$0xff]
        %v376 = vld [vmem:[#allocation2 + $0xc8] sm:$0xff]
        %v377 = vld [vmem:[#allocation2 + $0xd8] sm:$0xff]
        %v378 = vld [vmem:[#allocation2 + $0xe0] sm:$0xff]
        %v379 = vld [vmem:[#allocation2 + $0xf0] sm:$0xff]
        %v380 = vld [vmem:[#allocation2 + $0xf8] sm:$0xff]
        %v381 = vld [vmem:[#allocation2 + $0x108] sm:$0xff]
        %v382 = vld [vmem:[#allocation2 + $0x110] sm:$0xff]
        %v383 = vld [vmem:[#allocation2 + $0x120] sm:$0xff]
        %v384 = vld [vmem:[#allocation2 + $0x128] sm:$0xff]
        %v385 = vld [vmem:[#allocation2 + $0x138] sm:$0xff]
        %v386 = vld [vmem:[#allocation2 + $0x140] sm:$0xff]
        %v387 = vld [vmem:[#allocation2 + $0x150] sm:$0xff]
        %v388 = vld [vmem:[#allocation2 + $0x158] sm:$0xff]
        %v389 = vld [vmem:[#allocation2 + $0x168] sm:$0xff]
        %v390 = vld [vmem:[#allocation2 + $0x170] sm:$0xff]
        %391 = vst.msk [vmem:[#allocation3] sm:$0xff] %vm238, %v359
        %392 = vst.msk [vmem:[#allocation3 + $0x8] sm:$0xff] %vm238, %v360
        %393 = vst.msk [vmem:[#allocation3 + $0x10] sm:$0xff] %vm238, %v361
        %394 = vst.msk [vmem:[#allocation3 + $0x18] sm:$0xff] %vm238, %v362
        %395 = vst.msk [vmem:[#allocation3 + $0x20] sm:$0xff] %vm238, %v363
        %396 = vst.msk [vmem:[#allocation3 + $0x28] sm:$0xff] %vm238, %v364
        %397 = vst.msk [vmem:[#allocation3 + $0x30] sm:$0xff] %vm238, %v365
        %398 = vst.msk [vmem:[#allocation3 + $0x38] sm:$0xff] %vm238, %v366
        %399 = vst.msk [vmem:[#allocation3 + $0x40] sm:$0xff] %vm238, %v367
        %400 = vst.msk [vmem:[#allocation3 + $0x48] sm:$0xff] %vm238, %v368
        %401 = vst.msk [vmem:[#allocation3 + $0x50] sm:$0xff] %vm238, %v369
        %402 = vst.msk [vmem:[#allocation3 + $0x58] sm:$0xff] %vm238, %v370
        %403 = vst.msk [vmem:[#allocation3 + $0x60] sm:$0xff] %vm238, %v371
        %404 = vst.msk [vmem:[#allocation3 + $0x68] sm:$0xff] %vm238, %v372
        %405 = vst.msk [vmem:[#allocation3 + $0x70] sm:$0xff] %vm238, %v373
        %406 = vst.msk [vmem:[#allocation3 + $0x78] sm:$0xff] %vm238, %v374
        %407 = vst.msk [vmem:[#allocation3 + $0x80] sm:$0xff] %vm238, %v375
        %408 = vst.msk [vmem:[#allocation3 + $0x88] sm:$0xff] %vm238, %v376
        %409 = vst.msk [vmem:[#allocation3 + $0x90] sm:$0xff] %vm238, %v377
        %410 = vst.msk [vmem:[#allocation3 + $0x98] sm:$0xff] %vm238, %v378
        %411 = vst.msk [vmem:[#allocation3 + $0xa0] sm:$0xff] %vm238, %v379
        %412 = vst.msk [vmem:[#allocation3 + $0xa8] sm:$0xff] %vm238, %v380
        %413 = vst.msk [vmem:[#allocation3 + $0xb0] sm:$0xff] %vm238, %v381
        %414 = vst.msk [vmem:[#allocation3 + $0xb8] sm:$0xff] %vm238, %v382
        %415 = vst.msk [vmem:[#allocation3 + $0xc0] sm:$0xff] %vm238, %v383
        %416 = vst.msk [vmem:[#allocation3 + $0xc8] sm:$0xff] %vm238, %v384
        %417 = vst.msk [vmem:[#allocation3 + $0xd0] sm:$0xff] %vm238, %v385
        %418 = vst.msk [vmem:[#allocation3 + $0xd8] sm:$0xff] %vm238, %v386
        %419 = vst.msk [vmem:[#allocation3 + $0xe0] sm:$0xff] %vm238, %v387
        %420 = vst.msk [vmem:[#allocation3 + $0xe8] sm:$0xff] %vm238, %v388
        %421 = vst.msk [vmem:[#allocation3 + $0xf0] sm:$0xff] %vm238, %v389
        %422 = vst.msk [vmem:[#allocation3 + $0xf8] sm:$0xff] %vm238, %v390
        %v423 = vld [vmem:[#allocation2 + $0x1] sm:$0xff]
        %v424 = vld [vmem:[#allocation2 + $0x9] sm:$0xff]
        %v425 = vld [vmem:[#allocation2 + $0x19] sm:$0xff]
        %v426 = vld [vmem:[#allocation2 + $0x21] sm:$0xff]
        %v427 = vld [vmem:[#allocation2 + $0x31] sm:$0xff]
        %v428 = vld [vmem:[#allocation2 + $0x39] sm:$0xff]
        %v429 = vld [vmem:[#allocation2 + $0x49] sm:$0xff]
        %v430 = vld [vmem:[#allocation2 + $0x51] sm:$0xff]
        %v431 = vld [vmem:[#allocation2 + $0x61] sm:$0xff]
        %v432 = vld [vmem:[#allocation2 + $0x69] sm:$0xff]
        %v433 = vld [vmem:[#allocation2 + $0x79] sm:$0xff]
        %v434 = vld [vmem:[#allocation2 + $0x81] sm:$0xff]
        %v435 = vld [vmem:[#allocation2 + $0x91] sm:$0xff]
        %v436 = vld [vmem:[#allocation2 + $0x99] sm:$0xff]
        %v437 = vld [vmem:[#allocation2 + $0xa9] sm:$0xff]
        %v438 = vld [vmem:[#allocation2 + $0xb1] sm:$0xff]
        %v439 = vld [vmem:[#allocation2 + $0xc1] sm:$0xff]
        %v440 = vld [vmem:[#allocation2 + $0xc9] sm:$0xff]
        %v441 = vld [vmem:[#allocation2 + $0xd9] sm:$0xff]
        %v442 = vld [vmem:[#allocation2 + $0xe1] sm:$0xff]
        %v443 = vld [vmem:[#allocation2 + $0xf1] sm:$0xff]
        %v444 = vld [vmem:[#allocation2 + $0xf9] sm:$0xff]
        %v445 = vld [vmem:[#allocation2 + $0x109] sm:$0xff]
        %v446 = vld [vmem:[#allocation2 + $0x111] sm:$0xff]
        %v447 = vld [vmem:[#allocation2 + $0x121] sm:$0xff]
        %v448 = vld [vmem:[#allocation2 + $0x129] sm:$0xff]
        %v449 = vld [vmem:[#allocation2 + $0x139] sm:$0xff]
        %v450 = vld [vmem:[#allocation2 + $0x141] sm:$0xff]
        %v451 = vld [vmem:[#allocation2 + $0x151] sm:$0xff]
        %v452 = vld [vmem:[#allocation2 + $0x159] sm:$0xff]
        %v453 = vld [vmem:[#allocation2 + $0x169] sm:$0xff]
        %v454 = vld [vmem:[#allocation2 + $0x171] sm:$0xff]
        %487 = vrot.lane.b32.xlu0 %v423, 4
        %v488 = vpop.permute.xlu0 %487
        %489 = vrot.lane.b32.xlu0 %v424, 4
        %v490 = vpop.permute.xlu0 %489
        %491 = vrot.lane.b32.xlu0 %v425, 4
        %v492 = vpop.permute.xlu0 %491
        %493 = vrot.lane.b32.xlu0 %v426, 4
        %v494 = vpop.permute.xlu0 %493
        %495 = vrot.lane.b32.xlu0 %v427, 4
        %v496 = vpop.permute.xlu0 %495
        %497 = vrot.lane.b32.xlu0 %v428, 4
        %v498 = vpop.permute.xlu0 %497
        %499 = vrot.lane.b32.xlu0 %v429, 4
        %v500 = vpop.permute.xlu0 %499
        %501 = vrot.lane.b32.xlu0 %v430, 4
        %v502 = vpop.permute.xlu0 %501
        %503 = vrot.lane.b32.xlu0 %v431, 4
        %v504 = vpop.permute.xlu0 %503
        %505 = vrot.lane.b32.xlu0 %v432, 4
        %v506 = vpop.permute.xlu0 %505
        %507 = vrot.lane.b32.xlu0 %v433, 4
        %v508 = vpop.permute.xlu0 %507
        %509 = vrot.lane.b32.xlu0 %v434, 4
        %v510 = vpop.permute.xlu0 %509
        %511 = vrot.lane.b32.xlu0 %v435, 4
        %v512 = vpop.permute.xlu0 %511
        %513 = vrot.lane.b32.xlu0 %v436, 4
        %v514 = vpop.permute.xlu0 %513
        %515 = vrot.lane.b32.xlu0 %v437, 4
        %v516 = vpop.permute.xlu0 %515
        %517 = vrot.lane.b32.xlu0 %v438, 4
        %v518 = vpop.permute.xlu0 %517
        %519 = vrot.lane.b32.xlu0 %v439, 4
        %v520 = vpop.permute.xlu0 %519
        %521 = vrot.lane.b32.xlu0 %v440, 4
        %v522 = vpop.permute.xlu0 %521
        %523 = vrot.lane.b32.xlu0 %v441, 4
        %v524 = vpop.permute.xlu0 %523
        %525 = vrot.lane.b32.xlu0 %v442, 4
        %v526 = vpop.permute.xlu0 %525
        %527 = vrot.lane.b32.xlu0 %v443, 4
        %v528 = vpop.permute.xlu0 %527
        %529 = vrot.lane.b32.xlu0 %v444, 4
        %v530 = vpop.permute.xlu0 %529
        %531 = vrot.lane.b32.xlu0 %v445, 4
        %v532 = vpop.permute.xlu0 %531
        %533 = vrot.lane.b32.xlu0 %v446, 4
        %v534 = vpop.permute.xlu0 %533
        %535 = vrot.lane.b32.xlu0 %v447, 4
        %v536 = vpop.permute.xlu0 %535
        %537 = vrot.lane.b32.xlu0 %v448, 4
        %v538 = vpop.permute.xlu0 %537
        %539 = vrot.lane.b32.xlu0 %v449, 4
        %v540 = vpop.permute.xlu0 %539
        %541 = vrot.lane.b32.xlu0 %v450, 4
        %v542 = vpop.permute.xlu0 %541
        %543 = vrot.lane.b32.xlu0 %v451, 4
        %v544 = vpop.permute.xlu0 %543
        %545 = vrot.lane.b32.xlu0 %v452, 4
        %v546 = vpop.permute.xlu0 %545
        %547 = vrot.lane.b32.xlu0 %v453, 4
        %v548 = vpop.permute.xlu0 %547
        %549 = vrot.lane.b32.xlu0 %v454, 4
        %v550 = vpop.permute.xlu0 %549
        %vm583 = vcmask 64544
        %584 = vst.msk [vmem:[#allocation3] sm:$0xff] %vm583, %v488
        %585 = vst.msk [vmem:[#allocation3 + $0x8] sm:$0xff] %vm583, %v490
        %586 = vst.msk [vmem:[#allocation3 + $0x10] sm:$0xff] %vm583, %v492
        %587 = vst.msk [vmem:[#allocation3 + $0x18] sm:$0xff] %vm583, %v494
        %588 = vst.msk [vmem:[#allocation3 + $0x20] sm:$0xff] %vm583, %v496
        %589 = vst.msk [vmem:[#allocation3 + $0x28] sm:$0xff] %vm583, %v498
        %590 = vst.msk [vmem:[#allocation3 + $0x30] sm:$0xff] %vm583, %v500
        %591 = vst.msk [vmem:[#allocation3 + $0x38] sm:$0xff] %vm583, %v502
        %592 = vst.msk [vmem:[#allocation3 + $0x40] sm:$0xff] %vm583, %v504
        %593 = vst.msk [vmem:[#allocation3 + $0x48] sm:$0xff] %vm583, %v506
        %594 = vst.msk [vmem:[#allocation3 + $0x50] sm:$0xff] %vm583, %v508
        %595 = vst.msk [vmem:[#allocation3 + $0x58] sm:$0xff] %vm583, %v510
        %596 = vst.msk [vmem:[#allocation3 + $0x60] sm:$0xff] %vm583, %v512
        %597 = vst.msk [vmem:[#allocation3 + $0x68] sm:$0xff] %vm583, %v514
        %598 = vst.msk [vmem:[#allocation3 + $0x70] sm:$0xff] %vm583, %v516
        %599 = vst.msk [vmem:[#allocation3 + $0x78] sm:$0xff] %vm583, %v518
        %600 = vst.msk [vmem:[#allocation3 + $0x80] sm:$0xff] %vm583, %v520
        %601 = vst.msk [vmem:[#allocation3 + $0x88] sm:$0xff] %vm583, %v522
        %602 = vst.msk [vmem:[#allocation3 + $0x90] sm:$0xff] %vm583, %v524
        %603 = vst.msk [vmem:[#allocation3 + $0x98] sm:$0xff] %vm583, %v526
        %604 = vst.msk [vmem:[#allocation3 + $0xa0] sm:$0xff] %vm583, %v528
        %605 = vst.msk [vmem:[#allocation3 + $0xa8] sm:$0xff] %vm583, %v530
        %606 = vst.msk [vmem:[#allocation3 + $0xb0] sm:$0xff] %vm583, %v532
        %607 = vst.msk [vmem:[#allocation3 + $0xb8] sm:$0xff] %vm583, %v534
        %608 = vst.msk [vmem:[#allocation3 + $0xc0] sm:$0xff] %vm583, %v536
        %609 = vst.msk [vmem:[#allocation3 + $0xc8] sm:$0xff] %vm583, %v538
        %610 = vst.msk [vmem:[#allocation3 + $0xd0] sm:$0xff] %vm583, %v540
        %611 = vst.msk [vmem:[#allocation3 + $0xd8] sm:$0xff] %vm583, %v542
        %612 = vst.msk [vmem:[#allocation3 + $0xe0] sm:$0xff] %vm583, %v544
        %613 = vst.msk [vmem:[#allocation3 + $0xe8] sm:$0xff] %vm583, %v546
        %614 = vst.msk [vmem:[#allocation3 + $0xf0] sm:$0xff] %vm583, %v548
        %615 = vst.msk [vmem:[#allocation3 + $0xf8] sm:$0xff] %vm583, %v550
        %v616 = vld [vmem:[#allocation2 + $0x2] sm:$0xff]
        %v617 = vld [vmem:[#allocation2 + $0xa] sm:$0xff]
        %v618 = vld [vmem:[#allocation2 + $0x1a] sm:$0xff]
        %v619 = vld [vmem:[#allocation2 + $0x22] sm:$0xff]
        %v620 = vld [vmem:[#allocation2 + $0x32] sm:$0xff]
        %v621 = vld [vmem:[#allocation2 + $0x3a] sm:$0xff]
        %v622 = vld [vmem:[#allocation2 + $0x4a] sm:$0xff]
        %v623 = vld [vmem:[#allocation2 + $0x52] sm:$0xff]
        %v624 = vld [vmem:[#allocation2 + $0x62] sm:$0xff]
        %v625 = vld [vmem:[#allocation2 + $0x6a] sm:$0xff]
        %v626 = vld [vmem:[#allocation2 + $0x7a] sm:$0xff]
        %v627 = vld [vmem:[#allocation2 + $0x82] sm:$0xff]
        %v628 = vld [vmem:[#allocation2 + $0x92] sm:$0xff]
        %v629 = vld [vmem:[#allocation2 + $0x9a] sm:$0xff]
        %v630 = vld [vmem:[#allocation2 + $0xaa] sm:$0xff]
        %v631 = vld [vmem:[#allocation2 + $0xb2] sm:$0xff]
        %v632 = vld [vmem:[#allocation2 + $0xc2] sm:$0xff]
        %v633 = vld [vmem:[#allocation2 + $0xca] sm:$0xff]
        %v634 = vld [vmem:[#allocation2 + $0xda] sm:$0xff]
        %v635 = vld [vmem:[#allocation2 + $0xe2] sm:$0xff]
        %v636 = vld [vmem:[#allocation2 + $0xf2] sm:$0xff]
        %v637 = vld [vmem:[#allocation2 + $0xfa] sm:$0xff]
        %v638 = vld [vmem:[#allocation2 + $0x10a] sm:$0xff]
        %v639 = vld [vmem:[#allocation2 + $0x112] sm:$0xff]
        %v640 = vld [vmem:[#allocation2 + $0x122] sm:$0xff]
        %v641 = vld [vmem:[#allocation2 + $0x12a] sm:$0xff]
        %v642 = vld [vmem:[#allocation2 + $0x13a] sm:$0xff]
        %v643 = vld [vmem:[#allocation2 + $0x142] sm:$0xff]
        %v644 = vld [vmem:[#allocation2 + $0x152] sm:$0xff]
        %v645 = vld [vmem:[#allocation2 + $0x15a] sm:$0xff]
        %v646 = vld [vmem:[#allocation2 + $0x16a] sm:$0xff]
        %v647 = vld [vmem:[#allocation2 + $0x172] sm:$0xff]
        %680 = vrot.lane.b32.xlu0 %v616, 8
        %v681 = vpop.permute.xlu0 %680
        %682 = vrot.lane.b32.xlu0 %v617, 8
        %v683 = vpop.permute.xlu0 %682
        %684 = vrot.lane.b32.xlu0 %v618, 8
        %v685 = vpop.permute.xlu0 %684
        %686 = vrot.lane.b32.xlu0 %v619, 8
        %v687 = vpop.permute.xlu0 %686
        %688 = vrot.lane.b32.xlu0 %v620, 8
        %v689 = vpop.permute.xlu0 %688
        %690 = vrot.lane.b32.xlu0 %v621, 8
        %v691 = vpop.permute.xlu0 %690
        %692 = vrot.lane.b32.xlu0 %v622, 8
        %v693 = vpop.permute.xlu0 %692
        %694 = vrot.lane.b32.xlu0 %v623, 8
        %v695 = vpop.permute.xlu0 %694
        %696 = vrot.lane.b32.xlu0 %v624, 8
        %v697 = vpop.permute.xlu0 %696
        %698 = vrot.lane.b32.xlu0 %v625, 8
        %v699 = vpop.permute.xlu0 %698
        %700 = vrot.lane.b32.xlu0 %v626, 8
        %v701 = vpop.permute.xlu0 %700
        %702 = vrot.lane.b32.xlu0 %v627, 8
        %v703 = vpop.permute.xlu0 %702
        %704 = vrot.lane.b32.xlu0 %v628, 8
        %v705 = vpop.permute.xlu0 %704
        %706 = vrot.lane.b32.xlu0 %v629, 8
        %v707 = vpop.permute.xlu0 %706
        %708 = vrot.lane.b32.xlu0 %v630, 8
        %v709 = vpop.permute.xlu0 %708
        %710 = vrot.lane.b32.xlu0 %v631, 8
        %v711 = vpop.permute.xlu0 %710
        %712 = vrot.lane.b32.xlu0 %v632, 8
        %v713 = vpop.permute.xlu0 %712
        %714 = vrot.lane.b32.xlu0 %v633, 8
        %v715 = vpop.permute.xlu0 %714
        %716 = vrot.lane.b32.xlu0 %v634, 8
        %v717 = vpop.permute.xlu0 %716
        %718 = vrot.lane.b32.xlu0 %v635, 8
        %v719 = vpop.permute.xlu0 %718
        %720 = vrot.lane.b32.xlu0 %v636, 8
        %v721 = vpop.permute.xlu0 %720
        %722 = vrot.lane.b32.xlu0 %v637, 8
        %v723 = vpop.permute.xlu0 %722
        %724 = vrot.lane.b32.xlu0 %v638, 8
        %v725 = vpop.permute.xlu0 %724
        %726 = vrot.lane.b32.xlu0 %v639, 8
        %v727 = vpop.permute.xlu0 %726
        %728 = vrot.lane.b32.xlu0 %v640, 8
        %v729 = vpop.permute.xlu0 %728
        %730 = vrot.lane.b32.xlu0 %v641, 8
        %v731 = vpop.permute.xlu0 %730
        %732 = vrot.lane.b32.xlu0 %v642, 8
        %v733 = vpop.permute.xlu0 %732
        %734 = vrot.lane.b32.xlu0 %v643, 8
        %v735 = vpop.permute.xlu0 %734
        %736 = vrot.lane.b32.xlu0 %v644, 8
        %v737 = vpop.permute.xlu0 %736
        %738 = vrot.lane.b32.xlu0 %v645, 8
        %v739 = vpop.permute.xlu0 %738
        %740 = vrot.lane.b32.xlu0 %v646, 8
        %v741 = vpop.permute.xlu0 %740
        %742 = vrot.lane.b32.xlu0 %v647, 8
        %v743 = vpop.permute.xlu0 %742
        %vm776 = vcmask 97344
        %777 = vst.msk [vmem:[#allocation3] sm:$0xff] %vm776, %v681
        %778 = vst.msk [vmem:[#allocation3 + $0x8] sm:$0xff] %vm776, %v683
        %779 = vst.msk [vmem:[#allocation3 + $0x10] sm:$0xff] %vm776, %v685
        %780 = vst.msk [vmem:[#allocation3 + $0x18] sm:$0xff] %vm776, %v687
        %781 = vst.msk [vmem:[#allocation3 + $0x20] sm:$0xff] %vm776, %v689
        %782 = vst.msk [vmem:[#allocation3 + $0x28] sm:$0xff] %vm776, %v691
        %783 = vst.msk [vmem:[#allocation3 + $0x30] sm:$0xff] %vm776, %v693
        %784 = vst.msk [vmem:[#allocation3 + $0x38] sm:$0xff] %vm776, %v695
        %785 = vst.msk [vmem:[#allocation3 + $0x40] sm:$0xff] %vm776, %v697
        %786 = vst.msk [vmem:[#allocation3 + $0x48] sm:$0xff] %vm776, %v699
        %787 = vst.msk [vmem:[#allocation3 + $0x50] sm:$0xff] %vm776, %v701
        %788 = vst.msk [vmem:[#allocation3 + $0x58] sm:$0xff] %vm776, %v703
        %789 = vst.msk [vmem:[#allocation3 + $0x60] sm:$0xff] %vm776, %v705
        %790 = vst.msk [vmem:[#allocation3 + $0x68] sm:$0xff] %vm776, %v707
        %791 = vst.msk [vmem:[#allocation3 + $0x70] sm:$0xff] %vm776, %v709
        %792 = vst.msk [vmem:[#allocation3 + $0x78] sm:$0xff] %vm776, %v711
        %793 = vst.msk [vmem:[#allocation3 + $0x80] sm:$0xff] %vm776, %v713
        %794 = vst.msk [vmem:[#allocation3 + $0x88] sm:$0xff] %vm776, %v715
        %795 = vst.msk [vmem:[#allocation3 + $0x90] sm:$0xff] %vm776, %v717
        %796 = vst.msk [vmem:[#allocation3 + $0x98] sm:$0xff] %vm776, %v719
        %797 = vst.msk [vmem:[#allocation3 + $0xa0] sm:$0xff] %vm776, %v721
        %798 = vst.msk [vmem:[#allocation3 + $0xa8] sm:$0xff] %vm776, %v723
        %799 = vst.msk [vmem:[#allocation3 + $0xb0] sm:$0xff] %vm776, %v725
        %800 = vst.msk [vmem:[#allocation3 + $0xb8] sm:$0xff] %vm776, %v727
        %801 = vst.msk [vmem:[#allocation3 + $0xc0] sm:$0xff] %vm776, %v729
        %802 = vst.msk [vmem:[#allocation3 + $0xc8] sm:$0xff] %vm776, %v731
        %803 = vst.msk [vmem:[#allocation3 + $0xd0] sm:$0xff] %vm776, %v733
        %804 = vst.msk [vmem:[#allocation3 + $0xd8] sm:$0xff] %vm776, %v735
        %805 = vst.msk [vmem:[#allocation3 + $0xe0] sm:$0xff] %vm776, %v737
        %806 = vst.msk [vmem:[#allocation3 + $0xe8] sm:$0xff] %vm776, %v739
        %807 = vst.msk [vmem:[#allocation3 + $0xf0] sm:$0xff] %vm776, %v741
        %808 = vst.msk [vmem:[#allocation3 + $0xf8] sm:$0xff] %vm776, %v743
        %v809 = vld [vmem:[%s326] sm:$0xff]
        %v810 = vld [vmem:[%s326 + $0x8] sm:$0xff]
        %v811 = vld [vmem:[%s326 + $0x18] sm:$0xff]
        %v812 = vld [vmem:[%s326 + $0x20] sm:$0xff]
        %v813 = vld [vmem:[%s326 + $0x30] sm:$0xff]
        %v814 = vld [vmem:[%s326 + $0x38] sm:$0xff]
        %v815 = vld [vmem:[%s326 + $0x48] sm:$0xff]
        %v816 = vld [vmem:[%s326 + $0x50] sm:$0xff]
        %v817 = vld [vmem:[%s326 + $0x60] sm:$0xff]
        %v818 = vld [vmem:[%s326 + $0x68] sm:$0xff]
        %v819 = vld [vmem:[%s326 + $0x78] sm:$0xff]
        %v820 = vld [vmem:[%s326 + $0x80] sm:$0xff]
        %v821 = vld [vmem:[%s326 + $0x90] sm:$0xff]
        %v822 = vld [vmem:[%s326 + $0x98] sm:$0xff]
        %v823 = vld [vmem:[%s326 + $0xa8] sm:$0xff]
        %v824 = vld [vmem:[%s326 + $0xb0] sm:$0xff]
        %v825 = vld [vmem:[%s326 + $0xc0] sm:$0xff]
        %v826 = vld [vmem:[%s326 + $0xc8] sm:$0xff]
        %v827 = vld [vmem:[%s326 + $0xd8] sm:$0xff]
        %v828 = vld [vmem:[%s326 + $0xe0] sm:$0xff]
        %v829 = vld [vmem:[%s326 + $0xf0] sm:$0xff]
        %v830 = vld [vmem:[%s326 + $0xf8] sm:$0xff]
        %v831 = vld [vmem:[%s326 + $0x108] sm:$0xff]
        %v832 = vld [vmem:[%s326 + $0x110] sm:$0xff]
        %v833 = vld [vmem:[%s326 + $0x120] sm:$0xff]
        %v834 = vld [vmem:[%s326 + $0x128] sm:$0xff]
        %v835 = vld [vmem:[%s326 + $0x138] sm:$0xff]
        %v836 = vld [vmem:[%s326 + $0x140] sm:$0xff]
        %v837 = vld [vmem:[%s326 + $0x150] sm:$0xff]
        %v838 = vld [vmem:[%s326 + $0x158] sm:$0xff]
        %v839 = vld [vmem:[%s326 + $0x168] sm:$0xff]
        %v840 = vld [vmem:[%s326 + $0x170] sm:$0xff]
        %873 = vrot.lane.b32.xlu0 %v809, 12
        %v874 = vpop.permute.xlu0 %873
        %875 = vrot.lane.b32.xlu0 %v810, 12
        %v876 = vpop.permute.xlu0 %875
        %877 = vrot.lane.b32.xlu0 %v811, 12
        %v878 = vpop.permute.xlu0 %877
        %879 = vrot.lane.b32.xlu0 %v812, 12
        %v880 = vpop.permute.xlu0 %879
        %881 = vrot.lane.b32.xlu0 %v813, 12
        %v882 = vpop.permute.xlu0 %881
        %883 = vrot.lane.b32.xlu0 %v814, 12
        %v884 = vpop.permute.xlu0 %883
        %885 = vrot.lane.b32.xlu0 %v815, 12
        %v886 = vpop.permute.xlu0 %885
        %887 = vrot.lane.b32.xlu0 %v816, 12
        %v888 = vpop.permute.xlu0 %887
        %889 = vrot.lane.b32.xlu0 %v817, 12
        %v890 = vpop.permute.xlu0 %889
        %891 = vrot.lane.b32.xlu0 %v818, 12
        %v892 = vpop.permute.xlu0 %891
        %893 = vrot.lane.b32.xlu0 %v819, 12
        %v894 = vpop.permute.xlu0 %893
        %895 = vrot.lane.b32.xlu0 %v820, 12
        %v896 = vpop.permute.xlu0 %895
        %897 = vrot.lane.b32.xlu0 %v821, 12
        %v898 = vpop.permute.xlu0 %897
        %899 = vrot.lane.b32.xlu0 %v822, 12
        %v900 = vpop.permute.xlu0 %899
        %901 = vrot.lane.b32.xlu0 %v823, 12
        %v902 = vpop.permute.xlu0 %901
        %903 = vrot.lane.b32.xlu0 %v824, 12
        %v904 = vpop.permute.xlu0 %903
        %905 = vrot.lane.b32.xlu0 %v825, 12
        %v906 = vpop.permute.xlu0 %905
        %907 = vrot.lane.b32.xlu0 %v826, 12
        %v908 = vpop.permute.xlu0 %907
        %909 = vrot.lane.b32.xlu0 %v827, 12
        %v910 = vpop.permute.xlu0 %909
        %911 = vrot.lane.b32.xlu0 %v828, 12
        %v912 = vpop.permute.xlu0 %911
        %913 = vrot.lane.b32.xlu0 %v829, 12
        %v914 = vpop.permute.xlu0 %913
        %915 = vrot.lane.b32.xlu0 %v830, 12
        %v916 = vpop.permute.xlu0 %915
        %917 = vrot.lane.b32.xlu0 %v831, 12
        %v918 = vpop.permute.xlu0 %917
        %919 = vrot.lane.b32.xlu0 %v832, 12
        %v920 = vpop.permute.xlu0 %919
        %921 = vrot.lane.b32.xlu0 %v833, 12
        %v922 = vpop.permute.xlu0 %921
        %923 = vrot.lane.b32.xlu0 %v834, 12
        %v924 = vpop.permute.xlu0 %923
        %925 = vrot.lane.b32.xlu0 %v835, 12
        %v926 = vpop.permute.xlu0 %925
        %927 = vrot.lane.b32.xlu0 %v836, 12
        %v928 = vpop.permute.xlu0 %927
        %929 = vrot.lane.b32.xlu0 %v837, 12
        %v930 = vpop.permute.xlu0 %929
        %931 = vrot.lane.b32.xlu0 %v838, 12
        %v932 = vpop.permute.xlu0 %931
        %933 = vrot.lane.b32.xlu0 %v839, 12
        %v934 = vpop.permute.xlu0 %933
        %935 = vrot.lane.b32.xlu0 %v840, 12
        %v936 = vpop.permute.xlu0 %935
        %vm969 = vcmask 130144
        %970 = vst.msk [vmem:[#allocation3] sm:$0xff] %vm969, %v874
        %971 = vst.msk [vmem:[#allocation3 + $0x8] sm:$0xff] %vm969, %v876
        %972 = vst.msk [vmem:[#allocation3 + $0x10] sm:$0xff] %vm969, %v878
        %973 = vst.msk [vmem:[#allocation3 + $0x18] sm:$0xff] %vm969, %v880
        %974 = vst.msk [vmem:[#allocation3 + $0x20] sm:$0xff] %vm969, %v882
        %975 = vst.msk [vmem:[#allocation3 + $0x28] sm:$0xff] %vm969, %v884
        %976 = vst.msk [vmem:[#allocation3 + $0x30] sm:$0xff] %vm969, %v886
        %977 = vst.msk [vmem:[#allocation3 + $0x38] sm:$0xff] %vm969, %v888
        %978 = vst.msk [vmem:[#allocation3 + $0x40] sm:$0xff] %vm969, %v890
        %979 = vst.msk [vmem:[#allocation3 + $0x48] sm:$0xff] %vm969, %v892
        %980 = vst.msk [vmem:[#allocation3 + $0x50] sm:$0xff] %vm969, %v894
        %981 = vst.msk [vmem:[#allocation3 + $0x58] sm:$0xff] %vm969, %v896
        %982 = vst.msk [vmem:[#allocation3 + $0x60] sm:$0xff] %vm969, %v898
        %983 = vst.msk [vmem:[#allocation3 + $0x68] sm:$0xff] %vm969, %v900
        %984 = vst.msk [vmem:[#allocation3 + $0x70] sm:$0xff] %vm969, %v902
        %985 = vst.msk [vmem:[#allocation3 + $0x78] sm:$0xff] %vm969, %v904
        %986 = vst.msk [vmem:[#allocation3 + $0x80] sm:$0xff] %vm969, %v906
        %987 = vst.msk [vmem:[#allocation3 + $0x88] sm:$0xff] %vm969, %v908
        %988 = vst.msk [vmem:[#allocation3 + $0x90] sm:$0xff] %vm969, %v910
        %989 = vst.msk [vmem:[#allocation3 + $0x98] sm:$0xff] %vm969, %v912
        %990 = vst.msk [vmem:[#allocation3 + $0xa0] sm:$0xff] %vm969, %v914
        %991 = vst.msk [vmem:[#allocation3 + $0xa8] sm:$0xff] %vm969, %v916
        %992 = vst.msk [vmem:[#allocation3 + $0xb0] sm:$0xff] %vm969, %v918
        %993 = vst.msk [vmem:[#allocation3 + $0xb8] sm:$0xff] %vm969, %v920
        %994 = vst.msk [vmem:[#allocation3 + $0xc0] sm:$0xff] %vm969, %v922
        %995 = vst.msk [vmem:[#allocation3 + $0xc8] sm:$0xff] %vm969, %v924
        %996 = vst.msk [vmem:[#allocation3 + $0xd0] sm:$0xff] %vm969, %v926
        %997 = vst.msk [vmem:[#allocation3 + $0xd8] sm:$0xff] %vm969, %v928
        %998 = vst.msk [vmem:[#allocation3 + $0xe0] sm:$0xff] %vm969, %v930
        %999 = vst.msk [vmem:[#allocation3 + $0xe8] sm:$0xff] %vm969, %v932
        %1000 = vst.msk [vmem:[#allocation3 + $0xf0] sm:$0xff] %vm969, %v934
        %1001 = vst.msk [vmem:[#allocation3 + $0xf8] sm:$0xff] %vm969, %v936
        %v1002 = vld [vmem:[%s326 + $0x1] sm:$0xff]
        %v1003 = vld [vmem:[%s326 + $0x9] sm:$0xff]
        %v1004 = vld [vmem:[%s326 + $0x19] sm:$0xff]
        %v1005 = vld [vmem:[%s326 + $0x21] sm:$0xff]
        %v1006 = vld [vmem:[%s326 + $0x31] sm:$0xff]
        %v1007 = vld [vmem:[%s326 + $0x39] sm:$0xff]
        %v1008 = vld [vmem:[%s326 + $0x49] sm:$0xff]
        %v1009 = vld [vmem:[%s326 + $0x51] sm:$0xff]
        %v1010 = vld [vmem:[%s326 + $0x61] sm:$0xff]
        %v1011 = vld [vmem:[%s326 + $0x69] sm:$0xff]
        %v1012 = vld [vmem:[%s326 + $0x79] sm:$0xff]
        %v1013 = vld [vmem:[%s326 + $0x81] sm:$0xff]
        %v1014 = vld [vmem:[%s326 + $0x91] sm:$0xff]
        %v1015 = vld [vmem:[%s326 + $0x99] sm:$0xff]
        %v1016 = vld [vmem:[%s326 + $0xa9] sm:$0xff]
        %v1017 = vld [vmem:[%s326 + $0xb1] sm:$0xff]
        %v1018 = vld [vmem:[%s326 + $0xc1] sm:$0xff]
        %v1019 = vld [vmem:[%s326 + $0xc9] sm:$0xff]
        %v1020 = vld [vmem:[%s326 + $0xd9] sm:$0xff]
        %v1021 = vld [vmem:[%s326 + $0xe1] sm:$0xff]
        %v1022 = vld [vmem:[%s326 + $0xf1] sm:$0xff]
        %v1023 = vld [vmem:[%s326 + $0xf9] sm:$0xff]
        %v1024 = vld [vmem:[%s326 + $0x109] sm:$0xff]
        %v1025 = vld [vmem:[%s326 + $0x111] sm:$0xff]
        %v1026 = vld [vmem:[%s326 + $0x121] sm:$0xff]
        %v1027 = vld [vmem:[%s326 + $0x129] sm:$0xff]
        %v1028 = vld [vmem:[%s326 + $0x139] sm:$0xff]
        %v1029 = vld [vmem:[%s326 + $0x141] sm:$0xff]
        %v1030 = vld [vmem:[%s326 + $0x151] sm:$0xff]
        %v1031 = vld [vmem:[%s326 + $0x159] sm:$0xff]
        %v1032 = vld [vmem:[%s326 + $0x169] sm:$0xff]
        %v1033 = vld [vmem:[%s326 + $0x171] sm:$0xff]
        %1066 = vrot.lane.b32.xlu0 %v1002, 16
        %v1067 = vpop.permute.xlu0 %1066
        %1068 = vrot.lane.b32.xlu0 %v1003, 16
        %v1069 = vpop.permute.xlu0 %1068
        %1070 = vrot.lane.b32.xlu0 %v1004, 16
        %v1071 = vpop.permute.xlu0 %1070
        %1072 = vrot.lane.b32.xlu0 %v1005, 16
        %v1073 = vpop.permute.xlu0 %1072
        %1074 = vrot.lane.b32.xlu0 %v1006, 16
        %v1075 = vpop.permute.xlu0 %1074
        %1076 = vrot.lane.b32.xlu0 %v1007, 16
        %v1077 = vpop.permute.xlu0 %1076
        %1078 = vrot.lane.b32.xlu0 %v1008, 16
        %v1079 = vpop.permute.xlu0 %1078
        %1080 = vrot.lane.b32.xlu0 %v1009, 16
        %v1081 = vpop.permute.xlu0 %1080
        %1082 = vrot.lane.b32.xlu0 %v1010, 16
        %v1083 = vpop.permute.xlu0 %1082
        %1084 = vrot.lane.b32.xlu0 %v1011, 16
        %v1085 = vpop.permute.xlu0 %1084
        %1086 = vrot.lane.b32.xlu0 %v1012, 16
        %v1087 = vpop.permute.xlu0 %1086
        %1088 = vrot.lane.b32.xlu0 %v1013, 16
        %v1089 = vpop.permute.xlu0 %1088
        %1090 = vrot.lane.b32.xlu0 %v1014, 16
        %v1091 = vpop.permute.xlu0 %1090
        %1092 = vrot.lane.b32.xlu0 %v1015, 16
        %v1093 = vpop.permute.xlu0 %1092
        %1094 = vrot.lane.b32.xlu0 %v1016, 16
        %v1095 = vpop.permute.xlu0 %1094
        %1096 = vrot.lane.b32.xlu0 %v1017, 16
        %v1097 = vpop.permute.xlu0 %1096
        %1098 = vrot.lane.b32.xlu0 %v1018, 16
        %v1099 = vpop.permute.xlu0 %1098
        %1100 = vrot.lane.b32.xlu0 %v1019, 16
        %v1101 = vpop.permute.xlu0 %1100
        %1102 = vrot.lane.b32.xlu0 %v1020, 16
        %v1103 = vpop.permute.xlu0 %1102
        %1104 = vrot.lane.b32.xlu0 %v1021, 16
        %v1105 = vpop.permute.xlu0 %1104
        %1106 = vrot.lane.b32.xlu0 %v1022, 16
        %v1107 = vpop.permute.xlu0 %1106
        %1108 = vrot.lane.b32.xlu0 %v1023, 16
        %v1109 = vpop.permute.xlu0 %1108
        %1110 = vrot.lane.b32.xlu0 %v1024, 16
        %v1111 = vpop.permute.xlu0 %1110
        %1112 = vrot.lane.b32.xlu0 %v1025, 16
        %v1113 = vpop.permute.xlu0 %1112
        %1114 = vrot.lane.b32.xlu0 %v1026, 16
        %v1115 = vpop.permute.xlu0 %1114
        %1116 = vrot.lane.b32.xlu0 %v1027, 16
        %v1117 = vpop.permute.xlu0 %1116
        %1118 = vrot.lane.b32.xlu0 %v1028, 16
        %v1119 = vpop.permute.xlu0 %1118
        %1120 = vrot.lane.b32.xlu0 %v1029, 16
        %v1121 = vpop.permute.xlu0 %1120
        %1122 = vrot.lane.b32.xlu0 %v1030, 16
        %v1123 = vpop.permute.xlu0 %1122
        %1124 = vrot.lane.b32.xlu0 %v1031, 16
        %v1125 = vpop.permute.xlu0 %1124
        %1126 = vrot.lane.b32.xlu0 %v1032, 16
        %v1127 = vpop.permute.xlu0 %1126
        %1128 = vrot.lane.b32.xlu0 %v1033, 16
        %v1129 = vpop.permute.xlu0 %1128
        %vm1162 = vcmask 162944
        %1163 = vst.msk [vmem:[#allocation3] sm:$0xff] %vm1162, %v1067
        %1164 = vst.msk [vmem:[#allocation3 + $0x8] sm:$0xff] %vm1162, %v1069
        %1165 = vst.msk [vmem:[#allocation3 + $0x10] sm:$0xff] %vm1162, %v1071
        %1166 = vst.msk [vmem:[#allocation3 + $0x18] sm:$0xff] %vm1162, %v1073
        %1167 = vst.msk [vmem:[#allocation3 + $0x20] sm:$0xff] %vm1162, %v1075
        %1168 = vst.msk [vmem:[#allocation3 + $0x28] sm:$0xff] %vm1162, %v1077
        %1169 = vst.msk [vmem:[#allocation3 + $0x30] sm:$0xff] %vm1162, %v1079
        %1170 = vst.msk [vmem:[#allocation3 + $0x38] sm:$0xff] %vm1162, %v1081
        %1171 = vst.msk [vmem:[#allocation3 + $0x40] sm:$0xff] %vm1162, %v1083
        %1172 = vst.msk [vmem:[#allocation3 + $0x48] sm:$0xff] %vm1162, %v1085
        %1173 = vst.msk [vmem:[#allocation3 + $0x50] sm:$0xff] %vm1162, %v1087
        %1174 = vst.msk [vmem:[#allocation3 + $0x58] sm:$0xff] %vm1162, %v1089
        %1175 = vst.msk [vmem:[#allocation3 + $0x60] sm:$0xff] %vm1162, %v1091
        %1176 = vst.msk [vmem:[#allocation3 + $0x68] sm:$0xff] %vm1162, %v1093
        %1177 = vst.msk [vmem:[#allocation3 + $0x70] sm:$0xff] %vm1162, %v1095
        %1178 = vst.msk [vmem:[#allocation3 + $0x78] sm:$0xff] %vm1162, %v1097
        %1179 = vst.msk [vmem:[#allocation3 + $0x80] sm:$0xff] %vm1162, %v1099
        %1180 = vst.msk [vmem:[#allocation3 + $0x88] sm:$0xff] %vm1162, %v1101
        %1181 = vst.msk [vmem:[#allocation3 + $0x90] sm:$0xff] %vm1162, %v1103
        %1182 = vst.msk [vmem:[#allocation3 + $0x98] sm:$0xff] %vm1162, %v1105
        %1183 = vst.msk [vmem:[#allocation3 + $0xa0] sm:$0xff] %vm1162, %v1107
        %1184 = vst.msk [vmem:[#allocation3 + $0xa8] sm:$0xff] %vm1162, %v1109
        %1185 = vst.msk [vmem:[#allocation3 + $0xb0] sm:$0xff] %vm1162, %v1111
        %1186 = vst.msk [vmem:[#allocation3 + $0xb8] sm:$0xff] %vm1162, %v1113
        %1187 = vst.msk [vmem:[#allocation3 + $0xc0] sm:$0xff] %vm1162, %v1115
        %1188 = vst.msk [vmem:[#allocation3 + $0xc8] sm:$0xff] %vm1162, %v1117
        %1189 = vst.msk [vmem:[#allocation3 + $0xd0] sm:$0xff] %vm1162, %v1119
        %1190 = vst.msk [vmem:[#allocation3 + $0xd8] sm:$0xff] %vm1162, %v1121
        %1191 = vst.msk [vmem:[#allocation3 + $0xe0] sm:$0xff] %vm1162, %v1123
        %1192 = vst.msk [vmem:[#allocation3 + $0xe8] sm:$0xff] %vm1162, %v1125
        %1193 = vst.msk [vmem:[#allocation3 + $0xf0] sm:$0xff] %vm1162, %v1127
        %1194 = vst.msk [vmem:[#allocation3 + $0xf8] sm:$0xff] %vm1162, %v1129
        %v1195 = vld [vmem:[%s326 + $0x2] sm:$0xff]
        %v1196 = vld [vmem:[%s326 + $0xa] sm:$0xff]
        %v1197 = vld [vmem:[%s326 + $0x1a] sm:$0xff]
        %v1198 = vld [vmem:[%s326 + $0x22] sm:$0xff]
        %v1199 = vld [vmem:[%s326 + $0x32] sm:$0xff]
        %v1200 = vld [vmem:[%s326 + $0x3a] sm:$0xff]
        %v1201 = vld [vmem:[%s326 + $0x4a] sm:$0xff]
        %v1202 = vld [vmem:[%s326 + $0x52] sm:$0xff]
        %v1203 = vld [vmem:[%s326 + $0x62] sm:$0xff]
        %v1204 = vld [vmem:[%s326 + $0x6a] sm:$0xff]
        %v1205 = vld [vmem:[%s326 + $0x7a] sm:$0xff]
        %v1206 = vld [vmem:[%s326 + $0x82] sm:$0xff]
        %v1207 = vld [vmem:[%s326 + $0x92] sm:$0xff]
        %v1208 = vld [vmem:[%s326 + $0x9a] sm:$0xff]
        %v1209 = vld [vmem:[%s326 + $0xaa] sm:$0xff]
        %v1210 = vld [vmem:[%s326 + $0xb2] sm:$0xff]
        %v1211 = vld [vmem:[%s326 + $0xc2] sm:$0xff]
        %v1212 = vld [vmem:[%s326 + $0xca] sm:$0xff]
        %v1213 = vld [vmem:[%s326 + $0xda] sm:$0xff]
        %v1214 = vld [vmem:[%s326 + $0xe2] sm:$0xff]
        %v1215 = vld [vmem:[%s326 + $0xf2] sm:$0xff]
        %v1216 = vld [vmem:[%s326 + $0xfa] sm:$0xff]
        %v1217 = vld [vmem:[%s326 + $0x10a] sm:$0xff]
        %v1218 = vld [vmem:[%s326 + $0x112] sm:$0xff]
        %v1219 = vld [vmem:[%s326 + $0x122] sm:$0xff]
        %v1220 = vld [vmem:[%s326 + $0x12a] sm:$0xff]
        %v1221 = vld [vmem:[%s326 + $0x13a] sm:$0xff]
        %v1222 = vld [vmem:[%s326 + $0x142] sm:$0xff]
        %v1223 = vld [vmem:[%s326 + $0x152] sm:$0xff]
        %v1224 = vld [vmem:[%s326 + $0x15a] sm:$0xff]
        %v1225 = vld [vmem:[%s326 + $0x16a] sm:$0xff]
        %v1226 = vld [vmem:[%s326 + $0x172] sm:$0xff]
        %1259 = vrot.lane.b32.xlu0 %v1195, 20
        %v1260 = vpop.permute.xlu0 %1259
        %1261 = vrot.lane.b32.xlu0 %v1196, 20
        %v1262 = vpop.permute.xlu0 %1261
        %1263 = vrot.lane.b32.xlu0 %v1197, 20
        %v1264 = vpop.permute.xlu0 %1263
        %1265 = vrot.lane.b32.xlu0 %v1198, 20
        %v1266 = vpop.permute.xlu0 %1265
        %1267 = vrot.lane.b32.xlu0 %v1199, 20
        %v1268 = vpop.permute.xlu0 %1267
        %1269 = vrot.lane.b32.xlu0 %v1200, 20
        %v1270 = vpop.permute.xlu0 %1269
        %1271 = vrot.lane.b32.xlu0 %v1201, 20
        %v1272 = vpop.permute.xlu0 %1271
        %1273 = vrot.lane.b32.xlu0 %v1202, 20
        %v1274 = vpop.permute.xlu0 %1273
        %1275 = vrot.lane.b32.xlu0 %v1203, 20
        %v1276 = vpop.permute.xlu0 %1275
        %1277 = vrot.lane.b32.xlu0 %v1204, 20
        %v1278 = vpop.permute.xlu0 %1277
        %1279 = vrot.lane.b32.xlu0 %v1205, 20
        %v1280 = vpop.permute.xlu0 %1279
        %1281 = vrot.lane.b32.xlu0 %v1206, 20
        %v1282 = vpop.permute.xlu0 %1281
        %1283 = vrot.lane.b32.xlu0 %v1207, 20
        %v1284 = vpop.permute.xlu0 %1283
        %1285 = vrot.lane.b32.xlu0 %v1208, 20
        %v1286 = vpop.permute.xlu0 %1285
        %1287 = vrot.lane.b32.xlu0 %v1209, 20
        %v1288 = vpop.permute.xlu0 %1287
        %1289 = vrot.lane.b32.xlu0 %v1210, 20
        %v1290 = vpop.permute.xlu0 %1289
        %1291 = vrot.lane.b32.xlu0 %v1211, 20
        %v1292 = vpop.permute.xlu0 %1291
        %1293 = vrot.lane.b32.xlu0 %v1212, 20
        %v1294 = vpop.permute.xlu0 %1293
        %1295 = vrot.lane.b32.xlu0 %v1213, 20
        %v1296 = vpop.permute.xlu0 %1295
        %1297 = vrot.lane.b32.xlu0 %v1214, 20
        %v1298 = vpop.permute.xlu0 %1297
        %1299 = vrot.lane.b32.xlu0 %v1215, 20
        %v1300 = vpop.permute.xlu0 %1299
        %1301 = vrot.lane.b32.xlu0 %v1216, 20
        %v1302 = vpop.permute.xlu0 %1301
        %1303 = vrot.lane.b32.xlu0 %v1217, 20
        %v1304 = vpop.permute.xlu0 %1303
        %1305 = vrot.lane.b32.xlu0 %v1218, 20
        %v1306 = vpop.permute.xlu0 %1305
        %1307 = vrot.lane.b32.xlu0 %v1219, 20
        %v1308 = vpop.permute.xlu0 %1307
        %1309 = vrot.lane.b32.xlu0 %v1220, 20
        %v1310 = vpop.permute.xlu0 %1309
        %1311 = vrot.lane.b32.xlu0 %v1221, 20
        %v1312 = vpop.permute.xlu0 %1311
        %1313 = vrot.lane.b32.xlu0 %v1222, 20
        %v1314 = vpop.permute.xlu0 %1313
        %1315 = vrot.lane.b32.xlu0 %v1223, 20
        %v1316 = vpop.permute.xlu0 %1315
        %1317 = vrot.lane.b32.xlu0 %v1224, 20
        %v1318 = vpop.permute.xlu0 %1317
        %1319 = vrot.lane.b32.xlu0 %v1225, 20
        %v1320 = vpop.permute.xlu0 %1319
        %1321 = vrot.lane.b32.xlu0 %v1226, 20
        %v1322 = vpop.permute.xlu0 %1321
        %vm1355 = vcmask 195744
        %1356 = vst.msk [vmem:[#allocation3] sm:$0xff] %vm1355, %v1260
        %1357 = vst.msk [vmem:[#allocation3 + $0x8] sm:$0xff] %vm1355, %v1262
        %1358 = vst.msk [vmem:[#allocation3 + $0x10] sm:$0xff] %vm1355, %v1264
        %1359 = vst.msk [vmem:[#allocation3 + $0x18] sm:$0xff] %vm1355, %v1266
        %1360 = vst.msk [vmem:[#allocation3 + $0x20] sm:$0xff] %vm1355, %v1268
        %1361 = vst.msk [vmem:[#allocation3 + $0x28] sm:$0xff] %vm1355, %v1270
        %1362 = vst.msk [vmem:[#allocation3 + $0x30] sm:$0xff] %vm1355, %v1272
        %1363 = vst.msk [vmem:[#allocation3 + $0x38] sm:$0xff] %vm1355, %v1274
        %1364 = vst.msk [vmem:[#allocation3 + $0x40] sm:$0xff] %vm1355, %v1276
        %1365 = vst.msk [vmem:[#allocation3 + $0x48] sm:$0xff] %vm1355, %v1278
        %1366 = vst.msk [vmem:[#allocation3 + $0x50] sm:$0xff] %vm1355, %v1280
        %1367 = vst.msk [vmem:[#allocation3 + $0x58] sm:$0xff] %vm1355, %v1282
        %1368 = vst.msk [vmem:[#allocation3 + $0x60] sm:$0xff] %vm1355, %v1284
        %1369 = vst.msk [vmem:[#allocation3 + $0x68] sm:$0xff] %vm1355, %v1286
        %1370 = vst.msk [vmem:[#allocation3 + $0x70] sm:$0xff] %vm1355, %v1288
        %1371 = vst.msk [vmem:[#allocation3 + $0x78] sm:$0xff] %vm1355, %v1290
        %1372 = vst.msk [vmem:[#allocation3 + $0x80] sm:$0xff] %vm1355, %v1292
        %1373 = vst.msk [vmem:[#allocation3 + $0x88] sm:$0xff] %vm1355, %v1294
        %1374 = vst.msk [vmem:[#allocation3 + $0x90] sm:$0xff] %vm1355, %v1296
        %1375 = vst.msk [vmem:[#allocation3 + $0x98] sm:$0xff] %vm1355, %v1298
        %1376 = vst.msk [vmem:[#allocation3 + $0xa0] sm:$0xff] %vm1355, %v1300
        %1377 = vst.msk [vmem:[#allocation3 + $0xa8] sm:$0xff] %vm1355, %v1302
        %1378 = vst.msk [vmem:[#allocation3 + $0xb0] sm:$0xff] %vm1355, %v1304
        %1379 = vst.msk [vmem:[#allocation3 + $0xb8] sm:$0xff] %vm1355, %v1306
        %1380 = vst.msk [vmem:[#allocation3 + $0xc0] sm:$0xff] %vm1355, %v1308
        %1381 = vst.msk [vmem:[#allocation3 + $0xc8] sm:$0xff] %vm1355, %v1310
        %1382 = vst.msk [vmem:[#allocation3 + $0xd0] sm:$0xff] %vm1355, %v1312
        %1383 = vst.msk [vmem:[#allocation3 + $0xd8] sm:$0xff] %vm1355, %v1314
        %1384 = vst.msk [vmem:[#allocation3 + $0xe0] sm:$0xff] %vm1355, %v1316
        %1385 = vst.msk [vmem:[#allocation3 + $0xe8] sm:$0xff] %vm1355, %v1318
        %1386 = vst.msk [vmem:[#allocation3 + $0xf0] sm:$0xff] %vm1355, %v1320
        %1387 = vst.msk [vmem:[#allocation3 + $0xf8] sm:$0xff] %vm1355, %v1322
        %s1388 = scalar_lea.vmem [#allocation2], 48
        %v1389 = vld [vmem:[%s1388] sm:$0xff]
        %v1390 = vld [vmem:[%s1388 + $0x8] sm:$0xff]
        %v1391 = vld [vmem:[%s1388 + $0x18] sm:$0xff]
        %v1392 = vld [vmem:[%s1388 + $0x20] sm:$0xff]
        %v1393 = vld [vmem:[%s1388 + $0x30] sm:$0xff]
        %v1394 = vld [vmem:[%s1388 + $0x38] sm:$0xff]
        %v1395 = vld [vmem:[%s1388 + $0x48] sm:$0xff]
        %v1396 = vld [vmem:[%s1388 + $0x50] sm:$0xff]
        %v1397 = vld [vmem:[%s1388 + $0x60] sm:$0xff]
        %v1398 = vld [vmem:[%s1388 + $0x68] sm:$0xff]
        %v1399 = vld [vmem:[%s1388 + $0x78] sm:$0xff]
        %v1400 = vld [vmem:[%s1388 + $0x80] sm:$0xff]
        %v1401 = vld [vmem:[%s1388 + $0x90] sm:$0xff]
        %v1402 = vld [vmem:[%s1388 + $0x98] sm:$0xff]
        %v1403 = vld [vmem:[%s1388 + $0xa8] sm:$0xff]
        %v1404 = vld [vmem:[%s1388 + $0xb0] sm:$0xff]
        %v1405 = vld [vmem:[%s1388 + $0xc0] sm:$0xff]
        %v1406 = vld [vmem:[%s1388 + $0xc8] sm:$0xff]
        %v1407 = vld [vmem:[%s1388 + $0xd8] sm:$0xff]
        %v1408 = vld [vmem:[%s1388 + $0xe0] sm:$0xff]
        %v1409 = vld [vmem:[%s1388 + $0xf0] sm:$0xff]
        %v1410 = vld [vmem:[%s1388 + $0xf8] sm:$0xff]
        %v1411 = vld [vmem:[%s1388 + $0x108] sm:$0xff]
        %v1412 = vld [vmem:[%s1388 + $0x110] sm:$0xff]
        %v1413 = vld [vmem:[%s1388 + $0x120] sm:$0xff]
        %v1414 = vld [vmem:[%s1388 + $0x128] sm:$0xff]
        %v1415 = vld [vmem:[%s1388 + $0x138] sm:$0xff]
        %v1416 = vld [vmem:[%s1388 + $0x140] sm:$0xff]
        %v1417 = vld [vmem:[%s1388 + $0x150] sm:$0xff]
        %v1418 = vld [vmem:[%s1388 + $0x158] sm:$0xff]
        %v1419 = vld [vmem:[%s1388 + $0x168] sm:$0xff]
        %v1420 = vld [vmem:[%s1388 + $0x170] sm:$0xff]
        %1453 = vrot.lane.b32.xlu0 %v1389, 24
        %v1454 = vpop.permute.xlu0 %1453
        %1455 = vrot.lane.b32.xlu0 %v1390, 24
        %v1456 = vpop.permute.xlu0 %1455
        %1457 = vrot.lane.b32.xlu0 %v1391, 24
        %v1458 = vpop.permute.xlu0 %1457
        %1459 = vrot.lane.b32.xlu0 %v1392, 24
        %v1460 = vpop.permute.xlu0 %1459
        %1461 = vrot.lane.b32.xlu0 %v1393, 24
        %v1462 = vpop.permute.xlu0 %1461
        %1463 = vrot.lane.b32.xlu0 %v1394, 24
        %v1464 = vpop.permute.xlu0 %1463
        %1465 = vrot.lane.b32.xlu0 %v1395, 24
        %v1466 = vpop.permute.xlu0 %1465
        %1467 = vrot.lane.b32.xlu0 %v1396, 24
        %v1468 = vpop.permute.xlu0 %1467
        %1469 = vrot.lane.b32.xlu0 %v1397, 24
        %v1470 = vpop.permute.xlu0 %1469
        %1471 = vrot.lane.b32.xlu0 %v1398, 24
        %v1472 = vpop.permute.xlu0 %1471
        %1473 = vrot.lane.b32.xlu0 %v1399, 24
        %v1474 = vpop.permute.xlu0 %1473
        %1475 = vrot.lane.b32.xlu0 %v1400, 24
        %v1476 = vpop.permute.xlu0 %1475
        %1477 = vrot.lane.b32.xlu0 %v1401, 24
        %v1478 = vpop.permute.xlu0 %1477
        %1479 = vrot.lane.b32.xlu0 %v1402, 24
        %v1480 = vpop.permute.xlu0 %1479
        %1481 = vrot.lane.b32.xlu0 %v1403, 24
        %v1482 = vpop.permute.xlu0 %1481
        %1483 = vrot.lane.b32.xlu0 %v1404, 24
        %v1484 = vpop.permute.xlu0 %1483
        %1485 = vrot.lane.b32.xlu0 %v1405, 24
        %v1486 = vpop.permute.xlu0 %1485
        %1487 = vrot.lane.b32.xlu0 %v1406, 24
        %v1488 = vpop.permute.xlu0 %1487
        %1489 = vrot.lane.b32.xlu0 %v1407, 24
        %v1490 = vpop.permute.xlu0 %1489
        %1491 = vrot.lane.b32.xlu0 %v1408, 24
        %v1492 = vpop.permute.xlu0 %1491
        %1493 = vrot.lane.b32.xlu0 %v1409, 24
        %v1494 = vpop.permute.xlu0 %1493
        %1495 = vrot.lane.b32.xlu0 %v1410, 24
        %v1496 = vpop.permute.xlu0 %1495
        %1497 = vrot.lane.b32.xlu0 %v1411, 24
        %v1498 = vpop.permute.xlu0 %1497
        %1499 = vrot.lane.b32.xlu0 %v1412, 24
        %v1500 = vpop.permute.xlu0 %1499
        %1501 = vrot.lane.b32.xlu0 %v1413, 24
        %v1502 = vpop.permute.xlu0 %1501
        %1503 = vrot.lane.b32.xlu0 %v1414, 24
        %v1504 = vpop.permute.xlu0 %1503
        %1505 = vrot.lane.b32.xlu0 %v1415, 24
        %v1506 = vpop.permute.xlu0 %1505
        %1507 = vrot.lane.b32.xlu0 %v1416, 24
        %v1508 = vpop.permute.xlu0 %1507
        %1509 = vrot.lane.b32.xlu0 %v1417, 24
        %v1510 = vpop.permute.xlu0 %1509
        %1511 = vrot.lane.b32.xlu0 %v1418, 24
        %v1512 = vpop.permute.xlu0 %1511
        %1513 = vrot.lane.b32.xlu0 %v1419, 24
        %v1514 = vpop.permute.xlu0 %1513
        %1515 = vrot.lane.b32.xlu0 %v1420, 24
        %v1516 = vpop.permute.xlu0 %1515
        %vm1549 = vcmask 228544
        %1550 = vst.msk [vmem:[#allocation3] sm:$0xff] %vm1549, %v1454
        %1551 = vst.msk [vmem:[#allocation3 + $0x8] sm:$0xff] %vm1549, %v1456
        %1552 = vst.msk [vmem:[#allocation3 + $0x10] sm:$0xff] %vm1549, %v1458
        %1553 = vst.msk [vmem:[#allocation3 + $0x18] sm:$0xff] %vm1549, %v1460
        %1554 = vst.msk [vmem:[#allocation3 + $0x20] sm:$0xff] %vm1549, %v1462
        %1555 = vst.msk [vmem:[#allocation3 + $0x28] sm:$0xff] %vm1549, %v1464
        %1556 = vst.msk [vmem:[#allocation3 + $0x30] sm:$0xff] %vm1549, %v1466
        %1557 = vst.msk [vmem:[#allocation3 + $0x38] sm:$0xff] %vm1549, %v1468
        %1558 = vst.msk [vmem:[#allocation3 + $0x40] sm:$0xff] %vm1549, %v1470
        %1559 = vst.msk [vmem:[#allocation3 + $0x48] sm:$0xff] %vm1549, %v1472
        %1560 = vst.msk [vmem:[#allocation3 + $0x50] sm:$0xff] %vm1549, %v1474
        %1561 = vst.msk [vmem:[#allocation3 + $0x58] sm:$0xff] %vm1549, %v1476
        %1562 = vst.msk [vmem:[#allocation3 + $0x60] sm:$0xff] %vm1549, %v1478
        %1563 = vst.msk [vmem:[#allocation3 + $0x68] sm:$0xff] %vm1549, %v1480
        %1564 = vst.msk [vmem:[#allocation3 + $0x70] sm:$0xff] %vm1549, %v1482
        %1565 = vst.msk [vmem:[#allocation3 + $0x78] sm:$0xff] %vm1549, %v1484
        %1566 = vst.msk [vmem:[#allocation3 + $0x80] sm:$0xff] %vm1549, %v1486
        %1567 = vst.msk [vmem:[#allocation3 + $0x88] sm:$0xff] %vm1549, %v1488
        %1568 = vst.msk [vmem:[#allocation3 + $0x90] sm:$0xff] %vm1549, %v1490
        %1569 = vst.msk [vmem:[#allocation3 + $0x98] sm:$0xff] %vm1549, %v1492
        %1570 = vst.msk [vmem:[#allocation3 + $0xa0] sm:$0xff] %vm1549, %v1494
        %1571 = vst.msk [vmem:[#allocation3 + $0xa8] sm:$0xff] %vm1549, %v1496
        %1572 = vst.msk [vmem:[#allocation3 + $0xb0] sm:$0xff] %vm1549, %v1498
        %1573 = vst.msk [vmem:[#allocation3 + $0xb8] sm:$0xff] %vm1549, %v1500
        %1574 = vst.msk [vmem:[#allocation3 + $0xc0] sm:$0xff] %vm1549, %v1502
        %1575 = vst.msk [vmem:[#allocation3 + $0xc8] sm:$0xff] %vm1549, %v1504
        %1576 = vst.msk [vmem:[#allocation3 + $0xd0] sm:$0xff] %vm1549, %v1506
        %1577 = vst.msk [vmem:[#allocation3 + $0xd8] sm:$0xff] %vm1549, %v1508
        %1578 = vst.msk [vmem:[#allocation3 + $0xe0] sm:$0xff] %vm1549, %v1510
        %1579 = vst.msk [vmem:[#allocation3 + $0xe8] sm:$0xff] %vm1549, %v1512
        %1580 = vst.msk [vmem:[#allocation3 + $0xf0] sm:$0xff] %vm1549, %v1514
        %1581 = vst.msk [vmem:[#allocation3 + $0xf8] sm:$0xff] %vm1549, %v1516
        %v1582 = vld [vmem:[%s1388 + $0x1] sm:$0xff]
        %v1583 = vld [vmem:[%s1388 + $0x9] sm:$0xff]
        %v1584 = vld [vmem:[%s1388 + $0x19] sm:$0xff]
        %v1585 = vld [vmem:[%s1388 + $0x21] sm:$0xff]
        %v1586 = vld [vmem:[%s1388 + $0x31] sm:$0xff]
        %v1587 = vld [vmem:[%s1388 + $0x39] sm:$0xff]
        %v1588 = vld [vmem:[%s1388 + $0x49] sm:$0xff]
        %v1589 = vld [vmem:[%s1388 + $0x51] sm:$0xff]
        %v1590 = vld [vmem:[%s1388 + $0x61] sm:$0xff]
        %v1591 = vld [vmem:[%s1388 + $0x69] sm:$0xff]
        %v1592 = vld [vmem:[%s1388 + $0x79] sm:$0xff]
        %v1593 = vld [vmem:[%s1388 + $0x81] sm:$0xff]
        %v1594 = vld [vmem:[%s1388 + $0x91] sm:$0xff]
        %v1595 = vld [vmem:[%s1388 + $0x99] sm:$0xff]
        %v1596 = vld [vmem:[%s1388 + $0xa9] sm:$0xff]
        %v1597 = vld [vmem:[%s1388 + $0xb1] sm:$0xff]
        %v1598 = vld [vmem:[%s1388 + $0xc1] sm:$0xff]
        %v1599 = vld [vmem:[%s1388 + $0xc9] sm:$0xff]
        %v1600 = vld [vmem:[%s1388 + $0xd9] sm:$0xff]
        %v1601 = vld [vmem:[%s1388 + $0xe1] sm:$0xff]
        %v1602 = vld [vmem:[%s1388 + $0xf1] sm:$0xff]
        %v1603 = vld [vmem:[%s1388 + $0xf9] sm:$0xff]
        %v1604 = vld [vmem:[%s1388 + $0x109] sm:$0xff]
        %v1605 = vld [vmem:[%s1388 + $0x111] sm:$0xff]
        %v1606 = vld [vmem:[%s1388 + $0x121] sm:$0xff]
        %v1607 = vld [vmem:[%s1388 + $0x129] sm:$0xff]
        %v1608 = vld [vmem:[%s1388 + $0x139] sm:$0xff]
        %v1609 = vld [vmem:[%s1388 + $0x141] sm:$0xff]
        %v1610 = vld [vmem:[%s1388 + $0x151] sm:$0xff]
        %v1611 = vld [vmem:[%s1388 + $0x159] sm:$0xff]
        %v1612 = vld [vmem:[%s1388 + $0x169] sm:$0xff]
        %v1613 = vld [vmem:[%s1388 + $0x171] sm:$0xff]
        %1646 = vrot.lane.b32.xlu0 %v1582, 28
        %v1647 = vpop.permute.xlu0 %1646
        %1648 = vrot.lane.b32.xlu0 %v1583, 28
        %v1649 = vpop.permute.xlu0 %1648
        %1650 = vrot.lane.b32.xlu0 %v1584, 28
        %v1651 = vpop.permute.xlu0 %1650
        %1652 = vrot.lane.b32.xlu0 %v1585, 28
        %v1653 = vpop.permute.xlu0 %1652
        %1654 = vrot.lane.b32.xlu0 %v1586, 28
        %v1655 = vpop.permute.xlu0 %1654
        %1656 = vrot.lane.b32.xlu0 %v1587, 28
        %v1657 = vpop.permute.xlu0 %1656
        %1658 = vrot.lane.b32.xlu0 %v1588, 28
        %v1659 = vpop.permute.xlu0 %1658
        %1660 = vrot.lane.b32.xlu0 %v1589, 28
        %v1661 = vpop.permute.xlu0 %1660
        %1662 = vrot.lane.b32.xlu0 %v1590, 28
        %v1663 = vpop.permute.xlu0 %1662
        %1664 = vrot.lane.b32.xlu0 %v1591, 28
        %v1665 = vpop.permute.xlu0 %1664
        %1666 = vrot.lane.b32.xlu0 %v1592, 28
        %v1667 = vpop.permute.xlu0 %1666
        %1668 = vrot.lane.b32.xlu0 %v1593, 28
        %v1669 = vpop.permute.xlu0 %1668
        %1670 = vrot.lane.b32.xlu0 %v1594, 28
        %v1671 = vpop.permute.xlu0 %1670
        %1672 = vrot.lane.b32.xlu0 %v1595, 28
        %v1673 = vpop.permute.xlu0 %1672
        %1674 = vrot.lane.b32.xlu0 %v1596, 28
        %v1675 = vpop.permute.xlu0 %1674
        %1676 = vrot.lane.b32.xlu0 %v1597, 28
        %v1677 = vpop.permute.xlu0 %1676
        %1678 = vrot.lane.b32.xlu0 %v1598, 28
        %v1679 = vpop.permute.xlu0 %1678
        %1680 = vrot.lane.b32.xlu0 %v1599, 28
        %v1681 = vpop.permute.xlu0 %1680
        %1682 = vrot.lane.b32.xlu0 %v1600, 28
        %v1683 = vpop.permute.xlu0 %1682
        %1684 = vrot.lane.b32.xlu0 %v1601, 28
        %v1685 = vpop.permute.xlu0 %1684
        %1686 = vrot.lane.b32.xlu0 %v1602, 28
        %v1687 = vpop.permute.xlu0 %1686
        %1688 = vrot.lane.b32.xlu0 %v1603, 28
        %v1689 = vpop.permute.xlu0 %1688
        %1690 = vrot.lane.b32.xlu0 %v1604, 28
        %v1691 = vpop.permute.xlu0 %1690
        %1692 = vrot.lane.b32.xlu0 %v1605, 28
        %v1693 = vpop.permute.xlu0 %1692
        %1694 = vrot.lane.b32.xlu0 %v1606, 28
        %v1695 = vpop.permute.xlu0 %1694
        %1696 = vrot.lane.b32.xlu0 %v1607, 28
        %v1697 = vpop.permute.xlu0 %1696
        %1698 = vrot.lane.b32.xlu0 %v1608, 28
        %v1699 = vpop.permute.xlu0 %1698
        %1700 = vrot.lane.b32.xlu0 %v1609, 28
        %v1701 = vpop.permute.xlu0 %1700
        %1702 = vrot.lane.b32.xlu0 %v1610, 28
        %v1703 = vpop.permute.xlu0 %1702
        %1704 = vrot.lane.b32.xlu0 %v1611, 28
        %v1705 = vpop.permute.xlu0 %1704
        %1706 = vrot.lane.b32.xlu0 %v1612, 28
        %v1707 = vpop.permute.xlu0 %1706
        %1708 = vrot.lane.b32.xlu0 %v1613, 28
        %v1709 = vpop.permute.xlu0 %1708
        %vm1742 = vcmask 261344
        %1743 = vst.msk [vmem:[#allocation3] sm:$0xff] %vm1742, %v1647
        %1744 = vst.msk [vmem:[#allocation3 + $0x8] sm:$0xff] %vm1742, %v1649
        %1745 = vst.msk [vmem:[#allocation3 + $0x10] sm:$0xff] %vm1742, %v1651
        %1746 = vst.msk [vmem:[#allocation3 + $0x18] sm:$0xff] %vm1742, %v1653
        %1747 = vst.msk [vmem:[#allocation3 + $0x20] sm:$0xff] %vm1742, %v1655
        %1748 = vst.msk [vmem:[#allocation3 + $0x28] sm:$0xff] %vm1742, %v1657
        %1749 = vst.msk [vmem:[#allocation3 + $0x30] sm:$0xff] %vm1742, %v1659
        %1750 = vst.msk [vmem:[#allocation3 + $0x38] sm:$0xff] %vm1742, %v1661
        %1751 = vst.msk [vmem:[#allocation3 + $0x40] sm:$0xff] %vm1742, %v1663
        %1752 = vst.msk [vmem:[#allocation3 + $0x48] sm:$0xff] %vm1742, %v1665
        %1753 = vst.msk [vmem:[#allocation3 + $0x50] sm:$0xff] %vm1742, %v1667
        %1754 = vst.msk [vmem:[#allocation3 + $0x58] sm:$0xff] %vm1742, %v1669
        %1755 = vst.msk [vmem:[#allocation3 + $0x60] sm:$0xff] %vm1742, %v1671
        %1756 = vst.msk [vmem:[#allocation3 + $0x68] sm:$0xff] %vm1742, %v1673
        %1757 = vst.msk [vmem:[#allocation3 + $0x70] sm:$0xff] %vm1742, %v1675
        %1758 = vst.msk [vmem:[#allocation3 + $0x78] sm:$0xff] %vm1742, %v1677
        %1759 = vst.msk [vmem:[#allocation3 + $0x80] sm:$0xff] %vm1742, %v1679
        %1760 = vst.msk [vmem:[#allocation3 + $0x88] sm:$0xff] %vm1742, %v1681
        %1761 = vst.msk [vmem:[#allocation3 + $0x90] sm:$0xff] %vm1742, %v1683
        %1762 = vst.msk [vmem:[#allocation3 + $0x98] sm:$0xff] %vm1742, %v1685
        %1763 = vst.msk [vmem:[#allocation3 + $0xa0] sm:$0xff] %vm1742, %v1687
        %1764 = vst.msk [vmem:[#allocation3 + $0xa8] sm:$0xff] %vm1742, %v1689
        %1765 = vst.msk [vmem:[#allocation3 + $0xb0] sm:$0xff] %vm1742, %v1691
        %1766 = vst.msk [vmem:[#allocation3 + $0xb8] sm:$0xff] %vm1742, %v1693
        %1767 = vst.msk [vmem:[#allocation3 + $0xc0] sm:$0xff] %vm1742, %v1695
        %1768 = vst.msk [vmem:[#allocation3 + $0xc8] sm:$0xff] %vm1742, %v1697
        %1769 = vst.msk [vmem:[#allocation3 + $0xd0] sm:$0xff] %vm1742, %v1699
        %1770 = vst.msk [vmem:[#allocation3 + $0xd8] sm:$0xff] %vm1742, %v1701
        %1771 = vst.msk [vmem:[#allocation3 + $0xe0] sm:$0xff] %vm1742, %v1703
        %1772 = vst.msk [vmem:[#allocation3 + $0xe8] sm:$0xff] %vm1742, %v1705
        %1773 = vst.msk [vmem:[#allocation3 + $0xf0] sm:$0xff] %vm1742, %v1707
        %1774 = vst.msk [vmem:[#allocation3 + $0xf8] sm:$0xff] %vm1742, %v1709
        %v1775 = vld [vmem:[%s1388 + $0x2] sm:$0xff]
        %v1776 = vld [vmem:[%s1388 + $0xa] sm:$0xff]
        %v1777 = vld [vmem:[%s1388 + $0x1a] sm:$0xff]
        %v1778 = vld [vmem:[%s1388 + $0x22] sm:$0xff]
        %v1779 = vld [vmem:[%s1388 + $0x32] sm:$0xff]
        %v1780 = vld [vmem:[%s1388 + $0x3a] sm:$0xff]
        %v1781 = vld [vmem:[%s1388 + $0x4a] sm:$0xff]
        %v1782 = vld [vmem:[%s1388 + $0x52] sm:$0xff]
        %v1783 = vld [vmem:[%s1388 + $0x62] sm:$0xff]
        %v1784 = vld [vmem:[%s1388 + $0x6a] sm:$0xff]
        %v1785 = vld [vmem:[%s1388 + $0x7a] sm:$0xff]
        %v1786 = vld [vmem:[%s1388 + $0x82] sm:$0xff]
        %v1787 = vld [vmem:[%s1388 + $0x92] sm:$0xff]
        %v1788 = vld [vmem:[%s1388 + $0x9a] sm:$0xff]
        %v1789 = vld [vmem:[%s1388 + $0xaa] sm:$0xff]
        %v1790 = vld [vmem:[%s1388 + $0xb2] sm:$0xff]
        %v1791 = vld [vmem:[%s1388 + $0xc2] sm:$0xff]
        %v1792 = vld [vmem:[%s1388 + $0xca] sm:$0xff]
        %v1793 = vld [vmem:[%s1388 + $0xda] sm:$0xff]
        %v1794 = vld [vmem:[%s1388 + $0xe2] sm:$0xff]
        %v1795 = vld [vmem:[%s1388 + $0xf2] sm:$0xff]
        %v1796 = vld [vmem:[%s1388 + $0xfa] sm:$0xff]
        %v1797 = vld [vmem:[%s1388 + $0x10a] sm:$0xff]
        %v1798 = vld [vmem:[%s1388 + $0x112] sm:$0xff]
        %v1799 = vld [vmem:[%s1388 + $0x122] sm:$0xff]
        %v1800 = vld [vmem:[%s1388 + $0x12a] sm:$0xff]
        %v1801 = vld [vmem:[%s1388 + $0x13a] sm:$0xff]
        %v1802 = vld [vmem:[%s1388 + $0x142] sm:$0xff]
        %v1803 = vld [vmem:[%s1388 + $0x152] sm:$0xff]
        %v1804 = vld [vmem:[%s1388 + $0x15a] sm:$0xff]
        %v1805 = vld [vmem:[%s1388 + $0x16a] sm:$0xff]
        %v1806 = vld [vmem:[%s1388 + $0x172] sm:$0xff]
        %1839 = vrot.lane.b32.xlu0 %v1775, 32
        %v1840 = vpop.permute.xlu0 %1839
        %1841 = vrot.lane.b32.xlu0 %v1776, 32
        %v1842 = vpop.permute.xlu0 %1841
        %1843 = vrot.lane.b32.xlu0 %v1777, 32
        %v1844 = vpop.permute.xlu0 %1843
        %1845 = vrot.lane.b32.xlu0 %v1778, 32
        %v1846 = vpop.permute.xlu0 %1845
        %1847 = vrot.lane.b32.xlu0 %v1779, 32
        %v1848 = vpop.permute.xlu0 %1847
        %1849 = vrot.lane.b32.xlu0 %v1780, 32
        %v1850 = vpop.permute.xlu0 %1849
        %1851 = vrot.lane.b32.xlu0 %v1781, 32
        %v1852 = vpop.permute.xlu0 %1851
        %1853 = vrot.lane.b32.xlu0 %v1782, 32
        %v1854 = vpop.permute.xlu0 %1853
        %1855 = vrot.lane.b32.xlu0 %v1783, 32
        %v1856 = vpop.permute.xlu0 %1855
        %1857 = vrot.lane.b32.xlu0 %v1784, 32
        %v1858 = vpop.permute.xlu0 %1857
        %1859 = vrot.lane.b32.xlu0 %v1785, 32
        %v1860 = vpop.permute.xlu0 %1859
        %1861 = vrot.lane.b32.xlu0 %v1786, 32
        %v1862 = vpop.permute.xlu0 %1861
        %1863 = vrot.lane.b32.xlu0 %v1787, 32
        %v1864 = vpop.permute.xlu0 %1863
        %1865 = vrot.lane.b32.xlu0 %v1788, 32
        %v1866 = vpop.permute.xlu0 %1865
        %1867 = vrot.lane.b32.xlu0 %v1789, 32
        %v1868 = vpop.permute.xlu0 %1867
        %1869 = vrot.lane.b32.xlu0 %v1790, 32
        %v1870 = vpop.permute.xlu0 %1869
        %1871 = vrot.lane.b32.xlu0 %v1791, 32
        %v1872 = vpop.permute.xlu0 %1871
        %1873 = vrot.lane.b32.xlu0 %v1792, 32
        %v1874 = vpop.permute.xlu0 %1873
        %1875 = vrot.lane.b32.xlu0 %v1793, 32
        %v1876 = vpop.permute.xlu0 %1875
        %1877 = vrot.lane.b32.xlu0 %v1794, 32
        %v1878 = vpop.permute.xlu0 %1877
        %1879 = vrot.lane.b32.xlu0 %v1795, 32
        %v1880 = vpop.permute.xlu0 %1879
        %1881 = vrot.lane.b32.xlu0 %v1796, 32
        %v1882 = vpop.permute.xlu0 %1881
        %1883 = vrot.lane.b32.xlu0 %v1797, 32
        %v1884 = vpop.permute.xlu0 %1883
        %1885 = vrot.lane.b32.xlu0 %v1798, 32
        %v1886 = vpop.permute.xlu0 %1885
        %1887 = vrot.lane.b32.xlu0 %v1799, 32
        %v1888 = vpop.permute.xlu0 %1887
        %1889 = vrot.lane.b32.xlu0 %v1800, 32
        %v1890 = vpop.permute.xlu0 %1889
        %1891 = vrot.lane.b32.xlu0 %v1801, 32
        %v1892 = vpop.permute.xlu0 %1891
        %1893 = vrot.lane.b32.xlu0 %v1802, 32
        %v1894 = vpop.permute.xlu0 %1893
        %1895 = vrot.lane.b32.xlu0 %v1803, 32
        %v1896 = vpop.permute.xlu0 %1895
        %1897 = vrot.lane.b32.xlu0 %v1804, 32
        %v1898 = vpop.permute.xlu0 %1897
        %1899 = vrot.lane.b32.xlu0 %v1805, 32
        %v1900 = vpop.permute.xlu0 %1899
        %1901 = vrot.lane.b32.xlu0 %v1806, 32
        %v1902 = vpop.permute.xlu0 %1901
        %vm1935 = vcmask 294144
        %1936 = vst.msk [vmem:[#allocation3] sm:$0xff] %vm1935, %v1840
        %1937 = vst.msk [vmem:[#allocation3 + $0x8] sm:$0xff] %vm1935, %v1842
        %1938 = vst.msk [vmem:[#allocation3 + $0x10] sm:$0xff] %vm1935, %v1844
        %1939 = vst.msk [vmem:[#allocation3 + $0x18] sm:$0xff] %vm1935, %v1846
        %1940 = vst.msk [vmem:[#allocation3 + $0x20] sm:$0xff] %vm1935, %v1848
        %1941 = vst.msk [vmem:[#allocation3 + $0x28] sm:$0xff] %vm1935, %v1850
        %1942 = vst.msk [vmem:[#allocation3 + $0x30] sm:$0xff] %vm1935, %v1852
        %1943 = vst.msk [vmem:[#allocation3 + $0x38] sm:$0xff] %vm1935, %v1854
        %1944 = vst.msk [vmem:[#allocation3 + $0x40] sm:$0xff] %vm1935, %v1856
        %1945 = vst.msk [vmem:[#allocation3 + $0x48] sm:$0xff] %vm1935, %v1858
        %1946 = vst.msk [vmem:[#allocation3 + $0x50] sm:$0xff] %vm1935, %v1860
        %1947 = vst.msk [vmem:[#allocation3 + $0x58] sm:$0xff] %vm1935, %v1862
        %1948 = vst.msk [vmem:[#allocation3 + $0x60] sm:$0xff] %vm1935, %v1864
        %1949 = vst.msk [vmem:[#allocation3 + $0x68] sm:$0xff] %vm1935, %v1866
        %1950 = vst.msk [vmem:[#allocation3 + $0x70] sm:$0xff] %vm1935, %v1868
        %1951 = vst.msk [vmem:[#allocation3 + $0x78] sm:$0xff] %vm1935, %v1870
        %1952 = vst.msk [vmem:[#allocation3 + $0x80] sm:$0xff] %vm1935, %v1872
        %1953 = vst.msk [vmem:[#allocation3 + $0x88] sm:$0xff] %vm1935, %v1874
        %1954 = vst.msk [vmem:[#allocation3 + $0x90] sm:$0xff] %vm1935, %v1876
        %1955 = vst.msk [vmem:[#allocation3 + $0x98] sm:$0xff] %vm1935, %v1878
        %1956 = vst.msk [vmem:[#allocation3 + $0xa0] sm:$0xff] %vm1935, %v1880
        %1957 = vst.msk [vmem:[#allocation3 + $0xa8] sm:$0xff] %vm1935, %v1882
        %1958 = vst.msk [vmem:[#allocation3 + $0xb0] sm:$0xff] %vm1935, %v1884
        %1959 = vst.msk [vmem:[#allocation3 + $0xb8] sm:$0xff] %vm1935, %v1886
        %1960 = vst.msk [vmem:[#allocation3 + $0xc0] sm:$0xff] %vm1935, %v1888
        %1961 = vst.msk [vmem:[#allocation3 + $0xc8] sm:$0xff] %vm1935, %v1890
        %1962 = vst.msk [vmem:[#allocation3 + $0xd0] sm:$0xff] %vm1935, %v1892
        %1963 = vst.msk [vmem:[#allocation3 + $0xd8] sm:$0xff] %vm1935, %v1894
        %1964 = vst.msk [vmem:[#allocation3 + $0xe0] sm:$0xff] %vm1935, %v1896
        %1965 = vst.msk [vmem:[#allocation3 + $0xe8] sm:$0xff] %vm1935, %v1898
        %1966 = vst.msk [vmem:[#allocation3 + $0xf0] sm:$0xff] %vm1935, %v1900
        %1967 = vst.msk [vmem:[#allocation3 + $0xf8] sm:$0xff] %vm1935, %v1902
        %v1968 = vld [vmem:[#allocation3] sm:$0xff]
        %v1969 = vld [vmem:[#allocation3 + $0x8] sm:$0xff]
        %v1970 = vld [vmem:[#allocation3 + $0x10] sm:$0xff]
        %v1971 = vld [vmem:[#allocation3 + $0x18] sm:$0xff]
        %v1972 = vld [vmem:[#allocation3 + $0x20] sm:$0xff]
        %v1973 = vld [vmem:[#allocation3 + $0x28] sm:$0xff]
        %v1974 = vld [vmem:[#allocation3 + $0x30] sm:$0xff]
        %v1975 = vld [vmem:[#allocation3 + $0x38] sm:$0xff]
        %v1976 = vld [vmem:[#allocation3 + $0x40] sm:$0xff]
        %v1977 = vld [vmem:[#allocation3 + $0x48] sm:$0xff]
        %v1978 = vld [vmem:[#allocation3 + $0x50] sm:$0xff]
        %v1979 = vld [vmem:[#allocation3 + $0x58] sm:$0xff]
        %v1980 = vld [vmem:[#allocation3 + $0x60] sm:$0xff]
        %v1981 = vld [vmem:[#allocation3 + $0x68] sm:$0xff]
        %v1982 = vld [vmem:[#allocation3 + $0x70] sm:$0xff]
        %v1983 = vld [vmem:[#allocation3 + $0x78] sm:$0xff]
        %v1984 = vld [vmem:[#allocation3 + $0x80] sm:$0xff]
        %v1985 = vld [vmem:[#allocation3 + $0x88] sm:$0xff]
        %v1986 = vld [vmem:[#allocation3 + $0x90] sm:$0xff]
        %v1987 = vld [vmem:[#allocation3 + $0x98] sm:$0xff]
        %v1988 = vld [vmem:[#allocation3 + $0xa0] sm:$0xff]
        %v1989 = vld [vmem:[#allocation3 + $0xa8] sm:$0xff]
        %v1990 = vld [vmem:[#allocation3 + $0xb0] sm:$0xff]
        %v1991 = vld [vmem:[#allocation3 + $0xb8] sm:$0xff]
        %v1992 = vld [vmem:[#allocation3 + $0xc0] sm:$0xff]
        %v1993 = vld [vmem:[#allocation3 + $0xc8] sm:$0xff]
        %v1994 = vld [vmem:[#allocation3 + $0xd0] sm:$0xff]
        %v1995 = vld [vmem:[#allocation3 + $0xd8] sm:$0xff]
        %v1996 = vld [vmem:[#allocation3 + $0xe0] sm:$0xff]
        %v1997 = vld [vmem:[#allocation3 + $0xe8] sm:$0xff]
        %v1998 = vld [vmem:[#allocation3 + $0xf0] sm:$0xff]
        %v1999 = vld [vmem:[#allocation3 + $0xf8] sm:$0xff]
        %v2000 = vld [vmem:[%s1] sm:$0xff]
        %v2001 = vld [vmem:[%s1 + $0x8] sm:$0xff]
        %v2002 = vld [vmem:[%s1 + $0x10] sm:$0xff]
        %v2003 = vld [vmem:[%s1 + $0x18] sm:$0xff]
        %v2004 = vld [vmem:[%s1 + $0x20] sm:$0xf]
        %v2005 = vld [vmem:[%s2] sm:$0x1]
        %v2007 = vlaneseq
        %v2008 = vshrl.u32 %v2007, 7
        %v2009 = vsub.s32 0, %v2008
        %v2010 = vrot.slane %v2005, %v2009
        %vm2012 = vcmask 293888
        %v2014 = vsel %vm2012, %v1968, 0
        %v2017 = vsel %vm2012, %v1969, 0
        %v2020 = vsel %vm2012, %v1970, 0
        %v2023 = vsel %vm2012, %v1971, 0
        %v2026 = vsel %vm2012, %v1972, 0
        %v2029 = vsel %vm2012, %v1973, 0
        %v2032 = vsel %vm2012, %v1974, 0
        %v2035 = vsel %vm2012, %v1975, 0
        %v2038 = vsel %vm2012, %v1976, 0
        %v2041 = vsel %vm2012, %v1977, 0
        %v2044 = vsel %vm2012, %v1978, 0
        %v2047 = vsel %vm2012, %v1979, 0
        %v2050 = vsel %vm2012, %v1980, 0
        %v2053 = vsel %vm2012, %v1981, 0
        %v2056 = vsel %vm2012, %v1982, 0
        %v2059 = vsel %vm2012, %v1983, 0
        %v2062 = vsel %vm2012, %v1984, 0
        %v2065 = vsel %vm2012, %v1985, 0
        %v2068 = vsel %vm2012, %v1986, 0
        %v2071 = vsel %vm2012, %v1987, 0
        %v2074 = vsel %vm2012, %v1988, 0
        %v2077 = vsel %vm2012, %v1989, 0
        %v2080 = vsel %vm2012, %v1990, 0
        %v2083 = vsel %vm2012, %v1991, 0
        %v2086 = vsel %vm2012, %v1992, 0
        %v2089 = vsel %vm2012, %v1993, 0
        %v2092 = vsel %vm2012, %v1994, 0
        %v2095 = vsel %vm2012, %v1995, 0
        %v2098 = vsel %vm2012, %v1996, 0
        %v2101 = vsel %vm2012, %v1997, 0
        %v2104 = vsel %vm2012, %v1998, 0
        %v2107 = vsel %vm2012, %v1999, 0
        %vm2109 = vcmask 1043456
        %v2111 = vsel %vm2109, %v2004, 0
        %2113 = vmatprep.subr.mxu0 0.0
        %2114 = vmatpush1.msra.mxu0 %v2000
        %2115 = vmatprep.subr.mxu0 0.0
        %2116 = vmatpush1.msra.mxu0 %v2001
        %2117 = vmatprep.subr.mxu0 0.0
        %2118 = vmatpush1.msra.mxu0 %v2002
        %2119 = vmatprep.subr.mxu0 0.0
        %2120 = vmatpush1.msra.mxu0 %v2003
        %2121 = vmatprep.subr.mxu0 0.0
        %2122 = vmatpush1.msra.mxu0 %v2111
        %2123 = vmatprep.subr.mxu0 0.0
        %2124 = vmatpush1.msra.mxu0 0.0
        %2125 = vmatprep.subr.mxu0 0.0
        %2126 = vmatpush1.msra.mxu0 0.0
        %2127 = vmatprep.subr.mxu0 0.0
        %2128 = vmatpush1.msra.mxu0 0.0
        %2129 = vmatprep.subr.mxu0 0.0
        %2130 = vmatpush1.msra.mxu0 0.0
        %2131 = vmatprep.subr.mxu0 0.0
        %2132 = vmatpush1.msra.mxu0 0.0
        %2133 = vmatprep.subr.mxu0 0.0
        %2134 = vmatpush1.msra.mxu0 0.0
        %2135 = vmatprep.subr.mxu0 0.0
        %2136 = vmatpush1.msra.mxu0 0.0
        %2137 = vmatprep.subr.mxu0 0.0
        %2138 = vmatpush1.msra.mxu0 0.0
        %2139 = vmatprep.subr.mxu0 0.0
        %2140 = vmatpush1.msra.mxu0 0.0
        %2141 = vmatprep.subr.mxu0 0.0
        %2142 = vmatpush1.msra.mxu0 0.0
        %2143 = vmatprep.subr.mxu0 0.0
        %2144 = vmatpush1.msra.mxu0 0.0
        %2145 = vmatprep.subr.mxu0 0.0
        %2146 = vmatpush1.msra.mxu0 0.0
        %2147 = vmatprep.subr.mxu0 0.0
        %2148 = vmatpush1.msra.mxu0 0.0
        %2149 = vmatprep.subr.mxu0 0.0
        %2150 = vmatpush1.msra.mxu0 0.0
        %2151 = vmatprep.subr.mxu0 0.0
        %2152 = vmatpush1.msra.mxu0 0.0
        %2153 = vmatprep.subr.mxu0 0.0
        %2154 = vmatpush1.msra.mxu0 0.0
        %2155 = vmatprep.subr.mxu0 0.0
        %2156 = vmatpush1.msra.mxu0 0.0
        %2157 = vmatprep.subr.mxu0 0.0
        %2158 = vmatpush1.msra.mxu0 0.0
        %2159 = vmatprep.subr.mxu0 0.0
        %2160 = vmatpush1.msra.mxu0 0.0
        %2161 = vmatprep.subr.mxu0 0.0
        %2162 = vmatpush1.msra.mxu0 0.0
        %2163 = vmatprep.subr.mxu0 0.0
        %2164 = vmatpush1.msra.mxu0 0.0
        %2165 = vmatprep.subr.mxu0 0.0
        %2166 = vmatpush1.msra.mxu0 0.0
        %2167 = vmatprep.subr.mxu0 0.0
        %2168 = vmatpush1.msra.mxu0 0.0
        %2169 = vmatprep.subr.mxu0 0.0
        %2170 = vmatpush1.msra.mxu0 0.0
        %2171 = vmatprep.subr.mxu0 0.0
        %2172 = vmatpush1.msra.mxu0 0.0
        %2173 = vmatprep.subr.mxu0 0.0
        %2174 = vmatpush1.msra.mxu0 0.0
        %2175 = vmatprep.subr.mxu0 0.0
        %2176 = vmatpush1.msra.mxu0 0.0
        %2177 = vmatprep.mubr.f32.mxu0 0.0
        %2178 = vmatmul.mubr.f32.gmra.mrb[0].mxu0 %v2014
        %v2179 = vpop.f32.mrb[0].mxu0
        %v2180 = vadd.f32 %v2010, %v2179
        %v2181 = vpop.f32.mrb[0].mxu0
        %2182 = vmatprep.mubr.f32.mxu0 0.0
        %2183 = vmatmul.mubr.f32.gmra.mrb[0].mxu0 %v2017
        %v2184 = vpop.f32.mrb[0].mxu0
        %v2185 = vadd.f32 %v2010, %v2184
        %v2186 = vpop.f32.mrb[0].mxu0
        %2187 = vmatprep.mubr.f32.mxu0 0.0
        %2188 = vmatmul.mubr.f32.gmra.mrb[0].mxu0 %v2020
        %v2189 = vpop.f32.mrb[0].mxu0
        %v2190 = vadd.f32 %v2010, %v2189
        %v2191 = vpop.f32.mrb[0].mxu0
        %2192 = vmatprep.mubr.f32.mxu0 0.0
        %2193 = vmatmul.mubr.f32.gmra.mrb[0].mxu0 %v2023
        %v2194 = vpop.f32.mrb[0].mxu0
        %v2195 = vadd.f32 %v2010, %v2194
        %v2196 = vpop.f32.mrb[0].mxu0
        %2197 = vmatprep.mubr.f32.mxu0 0.0
        %2198 = vmatmul.mubr.f32.gmra.mrb[0].mxu0 %v2026
        %v2199 = vpop.f32.mrb[0].mxu0
        %v2200 = vadd.f32 %v2010, %v2199
        %v2201 = vpop.f32.mrb[0].mxu0
        %2202 = vmatprep.mubr.f32.mxu0 0.0
        %2203 = vmatmul.mubr.f32.gmra.mrb[0].mxu0 %v2029
        %v2204 = vpop.f32.mrb[0].mxu0
        %v2205 = vadd.f32 %v2010, %v2204
        %v2206 = vpop.f32.mrb[0].mxu0
        %2207 = vmatprep.mubr.f32.mxu0 0.0
        %2208 = vmatmul.mubr.f32.gmra.mrb[0].mxu0 %v2032
        %v2209 = vpop.f32.mrb[0].mxu0
        %v2210 = vadd.f32 %v2010, %v2209
        %v2211 = vpop.f32.mrb[0].mxu0
        %2212 = vmatprep.mubr.f32.mxu0 0.0
        %2213 = vmatmul.mubr.f32.gmra.mrb[0].mxu0 %v2035
        %v2214 = vpop.f32.mrb[0].mxu0
        %v2215 = vadd.f32 %v2010, %v2214
        %v2216 = vpop.f32.mrb[0].mxu0
        %2217 = vmatprep.mubr.f32.mxu0 0.0
        %2218 = vmatmul.mubr.f32.gmra.mrb[0].mxu0 %v2038
        %v2219 = vpop.f32.mrb[0].mxu0
        %v2220 = vadd.f32 %v2010, %v2219
        %v2221 = vpop.f32.mrb[0].mxu0
        %2222 = vmatprep.mubr.f32.mxu0 0.0
        %2223 = vmatmul.mubr.f32.gmra.mrb[0].mxu0 %v2041
        %v2224 = vpop.f32.mrb[0].mxu0
        %v2225 = vadd.f32 %v2010, %v2224
        %v2226 = vpop.f32.mrb[0].mxu0
        %2227 = vmatprep.mubr.f32.mxu0 0.0
        %2228 = vmatmul.mubr.f32.gmra.mrb[0].mxu0 %v2044
        %v2229 = vpop.f32.mrb[0].mxu0
        %v2230 = vadd.f32 %v2010, %v2229
        %v2231 = vpop.f32.mrb[0].mxu0
        %2232 = vmatprep.mubr.f32.mxu0 0.0
        %2233 = vmatmul.mubr.f32.gmra.mrb[0].mxu0 %v2047
        %v2234 = vpop.f32.mrb[0].mxu0
        %v2235 = vadd.f32 %v2010, %v2234
        %v2236 = vpop.f32.mrb[0].mxu0
        %2237 = vmatprep.mubr.f32.mxu0 0.0
        %2238 = vmatmul.mubr.f32.gmra.mrb[0].mxu0 %v2050
        %v2239 = vpop.f32.mrb[0].mxu0
        %v2240 = vadd.f32 %v2010, %v2239
        %v2241 = vpop.f32.mrb[0].mxu0
        %2242 = vmatprep.mubr.f32.mxu0 0.0
        %2243 = vmatmul.mubr.f32.gmra.mrb[0].mxu0 %v2053
        %v2244 = vpop.f32.mrb[0].mxu0
        %v2245 = vadd.f32 %v2010, %v2244
        %v2246 = vpop.f32.mrb[0].mxu0
        %2247 = vmatprep.mubr.f32.mxu0 0.0
        %2248 = vmatmul.mubr.f32.gmra.mrb[0].mxu0 %v2056
        %v2249 = vpop.f32.mrb[0].mxu0
        %v2250 = vadd.f32 %v2010, %v2249
        %v2251 = vpop.f32.mrb[0].mxu0
        %2252 = vmatprep.mubr.f32.mxu0 0.0
        %2253 = vmatmul.mubr.f32.gmra.mrb[0].mxu0 %v2059
        %v2254 = vpop.f32.mrb[0].mxu0
        %v2255 = vadd.f32 %v2010, %v2254
        %v2256 = vpop.f32.mrb[0].mxu0
        %2257 = vmatprep.mubr.f32.mxu0 0.0
        %2258 = vmatmul.mubr.f32.gmra.mrb[0].mxu0 %v2062
        %v2259 = vpop.f32.mrb[0].mxu0
        %v2260 = vadd.f32 %v2010, %v2259
        %v2261 = vpop.f32.mrb[0].mxu0
        %2262 = vmatprep.mubr.f32.mxu0 0.0
        %2263 = vmatmul.mubr.f32.gmra.mrb[0].mxu0 %v2065
        %v2264 = vpop.f32.mrb[0].mxu0
        %v2265 = vadd.f32 %v2010, %v2264
        %v2266 = vpop.f32.mrb[0].mxu0
        %2267 = vmatprep.mubr.f32.mxu0 0.0
        %2268 = vmatmul.mubr.f32.gmra.mrb[0].mxu0 %v2068
        %v2269 = vpop.f32.mrb[0].mxu0
        %v2270 = vadd.f32 %v2010, %v2269
        %v2271 = vpop.f32.mrb[0].mxu0
        %2272 = vmatprep.mubr.f32.mxu0 0.0
        %2273 = vmatmul.mubr.f32.gmra.mrb[0].mxu0 %v2071
        %v2274 = vpop.f32.mrb[0].mxu0
        %v2275 = vadd.f32 %v2010, %v2274
        %v2276 = vpop.f32.mrb[0].mxu0
        %2277 = vmatprep.mubr.f32.mxu0 0.0
        %2278 = vmatmul.mubr.f32.gmra.mrb[0].mxu0 %v2074
        %v2279 = vpop.f32.mrb[0].mxu0
        %v2280 = vadd.f32 %v2010, %v2279
        %v2281 = vpop.f32.mrb[0].mxu0
        %2282 = vmatprep.mubr.f32.mxu0 0.0
        %2283 = vmatmul.mubr.f32.gmra.mrb[0].mxu0 %v2077
        %v2284 = vpop.f32.mrb[0].mxu0
        %v2285 = vadd.f32 %v2010, %v2284
        %v2286 = vpop.f32.mrb[0].mxu0
        %2287 = vmatprep.mubr.f32.mxu0 0.0
        %2288 = vmatmul.mubr.f32.gmra.mrb[0].mxu0 %v2080
        %v2289 = vpop.f32.mrb[0].mxu0
        %v2290 = vadd.f32 %v2010, %v2289
        %v2291 = vpop.f32.mrb[0].mxu0
        %2292 = vmatprep.mubr.f32.mxu0 0.0
        %2293 = vmatmul.mubr.f32.gmra.mrb[0].mxu0 %v2083
        %v2294 = vpop.f32.mrb[0].mxu0
        %v2295 = vadd.f32 %v2010, %v2294
        %v2296 = vpop.f32.mrb[0].mxu0
        %2297 = vmatprep.mubr.f32.mxu0 0.0
        %2298 = vmatmul.mubr.f32.gmra.mrb[0].mxu0 %v2086
        %v2299 = vpop.f32.mrb[0].mxu0
        %v2300 = vadd.f32 %v2010, %v2299
        %v2301 = vpop.f32.mrb[0].mxu0
        %2302 = vmatprep.mubr.f32.mxu0 0.0
        %2303 = vmatmul.mubr.f32.gmra.mrb[0].mxu0 %v2089
        %v2304 = vpop.f32.mrb[0].mxu0
        %v2305 = vadd.f32 %v2010, %v2304
        %v2306 = vpop.f32.mrb[0].mxu0
        %2307 = vmatprep.mubr.f32.mxu0 0.0
        %2308 = vmatmul.mubr.f32.gmra.mrb[0].mxu0 %v2092
        %v2309 = vpop.f32.mrb[0].mxu0
        %v2310 = vadd.f32 %v2010, %v2309
        %v2311 = vpop.f32.mrb[0].mxu0
        %2312 = vmatprep.mubr.f32.mxu0 0.0
        %2313 = vmatmul.mubr.f32.gmra.mrb[0].mxu0 %v2095
        %v2314 = vpop.f32.mrb[0].mxu0
        %v2315 = vadd.f32 %v2010, %v2314
        %v2316 = vpop.f32.mrb[0].mxu0
        %2317 = vmatprep.mubr.f32.mxu0 0.0
        %2318 = vmatmul.mubr.f32.gmra.mrb[0].mxu0 %v2098
        %v2319 = vpop.f32.mrb[0].mxu0
        %v2320 = vadd.f32 %v2010, %v2319
        %v2321 = vpop.f32.mrb[0].mxu0
        %2322 = vmatprep.mubr.f32.mxu0 0.0
        %2323 = vmatmul.mubr.f32.gmra.mrb[0].mxu0 %v2101
        %v2324 = vpop.f32.mrb[0].mxu0
        %v2325 = vadd.f32 %v2010, %v2324
        %v2326 = vpop.f32.mrb[0].mxu0
        %2327 = vmatprep.mubr.f32.mxu0 0.0
        %2328 = vmatmul.mubr.f32.gmra.mrb[0].mxu0 %v2104
        %v2329 = vpop.f32.mrb[0].mxu0
        %v2330 = vadd.f32 %v2010, %v2329
        %v2331 = vpop.f32.mrb[0].mxu0
        %2332 = vmatprep.mubr.f32.mxu0 0.0
        %2333 = vmatmul.mubr.f32.gmra.mrb[0].mxu0 %v2107
        %v2334 = vpop.f32.mrb[0].mxu0
        %v2335 = vadd.f32 %v2010, %v2334
        %v2336 = vpop.f32.mrb[0].mxu0
        %2337 = vdwg.mxu0
        %v2338 = vmax.f32 %v2180, 0.0
        %v2339 = vmax.f32 %v2185, 0.0
        %v2340 = vmax.f32 %v2190, 0.0
        %v2341 = vmax.f32 %v2195, 0.0
        %v2342 = vmax.f32 %v2200, 0.0
        %v2343 = vmax.f32 %v2205, 0.0
        %v2344 = vmax.f32 %v2210, 0.0
        %v2345 = vmax.f32 %v2215, 0.0
        %v2346 = vmax.f32 %v2220, 0.0
        %v2347 = vmax.f32 %v2225, 0.0
        %v2348 = vmax.f32 %v2230, 0.0
        %v2349 = vmax.f32 %v2235, 0.0
        %v2350 = vmax.f32 %v2240, 0.0
        %v2351 = vmax.f32 %v2245, 0.0
        %v2352 = vmax.f32 %v2250, 0.0
        %v2353 = vmax.f32 %v2255, 0.0
        %v2354 = vmax.f32 %v2260, 0.0
        %v2355 = vmax.f32 %v2265, 0.0
        %v2356 = vmax.f32 %v2270, 0.0
        %v2357 = vmax.f32 %v2275, 0.0
        %v2358 = vmax.f32 %v2280, 0.0
        %v2359 = vmax.f32 %v2285, 0.0
        %v2360 = vmax.f32 %v2290, 0.0
        %v2361 = vmax.f32 %v2295, 0.0
        %v2362 = vmax.f32 %v2300, 0.0
        %v2363 = vmax.f32 %v2305, 0.0
        %v2364 = vmax.f32 %v2310, 0.0
        %v2365 = vmax.f32 %v2315, 0.0
        %v2366 = vmax.f32 %v2320, 0.0
        %v2367 = vmax.f32 %v2325, 0.0
        %v2368 = vmax.f32 %v2330, 0.0
        %v2369 = vmax.f32 %v2335, 0.0
        %2370 = vst [vmem:[#allocation4] sm:$0xff] 0.0
        %2371 = vst [vmem:[#allocation4 + $0x8] sm:$0xff] 0.0
        %2372 = vst [vmem:[#allocation4 + $0x10] sm:$0x3] 0.0
        %2373 = vst [vmem:[#allocation4 + $0x18] sm:$0xff] 0.0
        %2374 = vst [vmem:[#allocation4 + $0x20] sm:$0xff] 0.0
        %2375 = vst [vmem:[#allocation4 + $0x28] sm:$0x3] 0.0
        %2376 = vst [vmem:[#allocation4 + $0x30] sm:$0xff] 0.0
        %2377 = vst [vmem:[#allocation4 + $0x38] sm:$0xff] 0.0
        %2378 = vst [vmem:[#allocation4 + $0x40] sm:$0x3] 0.0
        %2379 = vst [vmem:[#allocation4 + $0x48] sm:$0xff] 0.0
        %2380 = vst [vmem:[#allocation4 + $0x50] sm:$0xff] 0.0
        %2381 = vst [vmem:[#allocation4 + $0x58] sm:$0x3] 0.0
        %2382 = vst [vmem:[#allocation4 + $0x60] sm:$0xff] 0.0
        %2383 = vst [vmem:[#allocation4 + $0x68] sm:$0xff] 0.0
        %2384 = vst [vmem:[#allocation4 + $0x70] sm:$0x3] 0.0
        %2385 = vst [vmem:[#allocation4 + $0x78] sm:$0xff] 0.0
        %2386 = vst [vmem:[#allocation4 + $0x80] sm:$0xff] 0.0
        %2387 = vst [vmem:[#allocation4 + $0x88] sm:$0x3] 0.0
        %2388 = vst [vmem:[#allocation4 + $0x90] sm:$0xff] 0.0
        %2389 = vst [vmem:[#allocation4 + $0x98] sm:$0xff] 0.0
        %2390 = vst [vmem:[#allocation4 + $0xa0] sm:$0x3] 0.0
        %2391 = vst [vmem:[#allocation4 + $0xa8] sm:$0xff] 0.0
        %2392 = vst [vmem:[#allocation4 + $0xb0] sm:$0xff] 0.0
        %2393 = vst [vmem:[#allocation4 + $0xb8] sm:$0x3] 0.0
        %2394 = vst [vmem:[#allocation4 + $0xc0] sm:$0xff] 0.0
        %2395 = vst [vmem:[#allocation4 + $0xc8] sm:$0xff] 0.0
        %2396 = vst [vmem:[#allocation4 + $0xd0] sm:$0x3] 0.0
        %2397 = vst [vmem:[#allocation4 + $0xd8] sm:$0xff] 0.0
        %2398 = vst [vmem:[#allocation4 + $0xe0] sm:$0xff] 0.0
        %2399 = vst [vmem:[#allocation4 + $0xe8] sm:$0x3] 0.0
        %2400 = vst [vmem:[#allocation4 + $0xf0] sm:$0xff] 0.0
        %2401 = vst [vmem:[#allocation4 + $0xf8] sm:$0xff] 0.0
        %2402 = vst [vmem:[#allocation4 + $0x100] sm:$0x3] 0.0
        %2403 = vst [vmem:[#allocation4 + $0x108] sm:$0xff] 0.0
        %2404 = vst [vmem:[#allocation4 + $0x110] sm:$0xff] 0.0
        %2405 = vst [vmem:[#allocation4 + $0x118] sm:$0x3] 0.0
        %2406 = vst [vmem:[#allocation4 + $0x120] sm:$0xff] 0.0
        %2407 = vst [vmem:[#allocation4 + $0x128] sm:$0xff] 0.0
        %2408 = vst [vmem:[#allocation4 + $0x130] sm:$0x3] 0.0
        %2409 = vst [vmem:[#allocation4 + $0x138] sm:$0xff] 0.0
        %2410 = vst [vmem:[#allocation4 + $0x140] sm:$0xff] 0.0
        %2411 = vst [vmem:[#allocation4 + $0x148] sm:$0x3] 0.0
        %2412 = vst [vmem:[#allocation4 + $0x150] sm:$0xff] 0.0
        %2413 = vst [vmem:[#allocation4 + $0x158] sm:$0xff] 0.0
        %2414 = vst [vmem:[#allocation4 + $0x160] sm:$0x3] 0.0
        %2415 = vst [vmem:[#allocation4 + $0x168] sm:$0xff] 0.0
        %2416 = vst [vmem:[#allocation4 + $0x170] sm:$0xff] 0.0
        %2417 = vst [vmem:[#allocation4 + $0x178] sm:$0x3] 0.0
        %2418 = vst [vmem:[#allocation4 + $0x180] sm:$0xff] 0.0
        %2419 = vst [vmem:[#allocation4 + $0x188] sm:$0xff] 0.0
        %2420 = vst [vmem:[#allocation4 + $0x190] sm:$0x3] 0.0
        %2421 = vst [vmem:[#allocation4 + $0x198] sm:$0xff] 0.0
        %2422 = vst [vmem:[#allocation4 + $0x1a0] sm:$0xff] 0.0
        %2423 = vst [vmem:[#allocation4 + $0x1a8] sm:$0x3] 0.0
        %s2424 = scalar_lea.vmem [#allocation4], 24
        %2425 = vst [vmem:[%s2424 + $0x1] sm:$0xff] %v2338
        %2426 = vst [vmem:[%s2424 + $0x9] sm:$0xff] %v2339
        %2427 = vst [vmem:[%s2424 + $0x19] sm:$0xff] %v2340
        %2428 = vst [vmem:[%s2424 + $0x21] sm:$0xff] %v2341
        %2429 = vst [vmem:[%s2424 + $0x31] sm:$0xff] %v2342
        %2430 = vst [vmem:[%s2424 + $0x39] sm:$0xff] %v2343
        %2431 = vst [vmem:[%s2424 + $0x49] sm:$0xff] %v2344
        %2432 = vst [vmem:[%s2424 + $0x51] sm:$0xff] %v2345
        %2433 = vst [vmem:[%s2424 + $0x61] sm:$0xff] %v2346
        %2434 = vst [vmem:[%s2424 + $0x69] sm:$0xff] %v2347
        %2435 = vst [vmem:[%s2424 + $0x79] sm:$0xff] %v2348
        %2436 = vst [vmem:[%s2424 + $0x81] sm:$0xff] %v2349
        %2437 = vst [vmem:[%s2424 + $0x91] sm:$0xff] %v2350
        %2438 = vst [vmem:[%s2424 + $0x99] sm:$0xff] %v2351
        %2439 = vst [vmem:[%s2424 + $0xa9] sm:$0xff] %v2352
        %2440 = vst [vmem:[%s2424 + $0xb1] sm:$0xff] %v2353
        %2441 = vst [vmem:[%s2424 + $0xc1] sm:$0xff] %v2354
        %2442 = vst [vmem:[%s2424 + $0xc9] sm:$0xff] %v2355
        %2443 = vst [vmem:[%s2424 + $0xd9] sm:$0xff] %v2356
        %2444 = vst [vmem:[%s2424 + $0xe1] sm:$0xff] %v2357
        %2445 = vst [vmem:[%s2424 + $0xf1] sm:$0xff] %v2358
        %2446 = vst [vmem:[%s2424 + $0xf9] sm:$0xff] %v2359
        %2447 = vst [vmem:[%s2424 + $0x109] sm:$0xff] %v2360
        %2448 = vst [vmem:[%s2424 + $0x111] sm:$0xff] %v2361
        %2449 = vst [vmem:[%s2424 + $0x121] sm:$0xff] %v2362
        %2450 = vst [vmem:[%s2424 + $0x129] sm:$0xff] %v2363
        %2451 = vst [vmem:[%s2424 + $0x139] sm:$0xff] %v2364
        %2452 = vst [vmem:[%s2424 + $0x141] sm:$0xff] %v2365
        %2453 = vst [vmem:[%s2424 + $0x151] sm:$0xff] %v2366
        %2454 = vst [vmem:[%s2424 + $0x159] sm:$0xff] %v2367
        %2455 = vst [vmem:[%s2424 + $0x169] sm:$0xff] %v2368
        %2456 = vst [vmem:[%s2424 + $0x171] sm:$0xff] %v2369
        %v2457 = vld [vmem:[#allocation4] sm:$0xff]
        %v2458 = vld [vmem:[#allocation4 + $0x8] sm:$0xff]
        %v2459 = vld [vmem:[#allocation4 + $0x18] sm:$0xff]
        %v2460 = vld [vmem:[#allocation4 + $0x20] sm:$0xff]
        %v2461 = vld [vmem:[#allocation4 + $0x30] sm:$0xff]
        %v2462 = vld [vmem:[#allocation4 + $0x38] sm:$0xff]
        %v2463 = vld [vmem:[#allocation4 + $0x48] sm:$0xff]
        %v2464 = vld [vmem:[#allocation4 + $0x50] sm:$0xff]
        %v2465 = vld [vmem:[#allocation4 + $0x60] sm:$0xff]
        %v2466 = vld [vmem:[#allocation4 + $0x68] sm:$0xff]
        %v2467 = vld [vmem:[#allocation4 + $0x78] sm:$0xff]
        %v2468 = vld [vmem:[#allocation4 + $0x80] sm:$0xff]
        %v2469 = vld [vmem:[#allocation4 + $0x90] sm:$0xff]
        %v2470 = vld [vmem:[#allocation4 + $0x98] sm:$0xff]
        %v2471 = vld [vmem:[#allocation4 + $0xa8] sm:$0xff]
        %v2472 = vld [vmem:[#allocation4 + $0xb0] sm:$0xff]
        %v2473 = vld [vmem:[#allocation4 + $0xc0] sm:$0xff]
        %v2474 = vld [vmem:[#allocation4 + $0xc8] sm:$0xff]
        %v2475 = vld [vmem:[#allocation4 + $0xd8] sm:$0xff]
        %v2476 = vld [vmem:[#allocation4 + $0xe0] sm:$0xff]
        %v2477 = vld [vmem:[#allocation4 + $0xf0] sm:$0xff]
        %v2478 = vld [vmem:[#allocation4 + $0xf8] sm:$0xff]
        %v2479 = vld [vmem:[#allocation4 + $0x108] sm:$0xff]
        %v2480 = vld [vmem:[#allocation4 + $0x110] sm:$0xff]
        %v2481 = vld [vmem:[#allocation4 + $0x120] sm:$0xff]
        %v2482 = vld [vmem:[#allocation4 + $0x128] sm:$0xff]
        %v2483 = vld [vmem:[#allocation4 + $0x138] sm:$0xff]
        %v2484 = vld [vmem:[#allocation4 + $0x140] sm:$0xff]
        %v2485 = vld [vmem:[#allocation4 + $0x150] sm:$0xff]
        %v2486 = vld [vmem:[#allocation4 + $0x158] sm:$0xff]
        %v2487 = vld [vmem:[#allocation4 + $0x168] sm:$0xff]
        %v2488 = vld [vmem:[#allocation4 + $0x170] sm:$0xff]
        %2489 = vst [vmem:[#allocation5] sm:$0xff] %v2457
        %2490 = vst [vmem:[#allocation5 + $0x48] sm:$0xff] %v2458
        %2491 = vst [vmem:[#allocation5 + $0x90] sm:$0xff] %v2459
        %2492 = vst [vmem:[#allocation5 + $0xd8] sm:$0xff] %v2460
        %2493 = vst [vmem:[#allocation5 + $0x120] sm:$0xff] %v2461
        %2494 = vst [vmem:[#allocation5 + $0x168] sm:$0xff] %v2462
        %2495 = vst [vmem:[#allocation5 + $0x1b0] sm:$0xff] %v2463
        %2496 = vst [vmem:[#allocation5 + $0x1f8] sm:$0xff] %v2464
        %2497 = vst [vmem:[#allocation5 + $0x240] sm:$0xff] %v2465
        %2498 = vst [vmem:[#allocation5 + $0x288] sm:$0xff] %v2466
        %2499 = vst [vmem:[#allocation5 + $0x2d0] sm:$0xff] %v2467
        %2500 = vst [vmem:[#allocation5 + $0x318] sm:$0xff] %v2468
        %2501 = vst [vmem:[#allocation5 + $0x360] sm:$0xff] %v2469
        %2502 = vst [vmem:[#allocation5 + $0x3a8] sm:$0xff] %v2470
        %2503 = vst [vmem:[#allocation5 + $0x3f0] sm:$0xff] %v2471
        %2504 = vst [vmem:[#allocation5 + $0x438] sm:$0xff] %v2472
        %2505 = vst [vmem:[#allocation5 + $0x480] sm:$0xff] %v2473
        %2506 = vst [vmem:[#allocation5 + $0x4c8] sm:$0xff] %v2474
        %2507 = vst [vmem:[#allocation5 + $0x510] sm:$0xff] %v2475
        %2508 = vst [vmem:[#allocation5 + $0x558] sm:$0xff] %v2476
        %2509 = vst [vmem:[#allocation5 + $0x5a0] sm:$0xff] %v2477
        %2510 = vst [vmem:[#allocation5 + $0x5e8] sm:$0xff] %v2478
        %2511 = vst [vmem:[#allocation5 + $0x630] sm:$0xff] %v2479
        %2512 = vst [vmem:[#allocation5 + $0x678] sm:$0xff] %v2480
        %2513 = vst [vmem:[#allocation5 + $0x6c0] sm:$0xff] %v2481
        %2514 = vst [vmem:[#allocation5 + $0x708] sm:$0xff] %v2482
        %2515 = vst [vmem:[#allocation5 + $0x750] sm:$0xff] %v2483
        %2516 = vst [vmem:[#allocation5 + $0x798] sm:$0xff] %v2484
        %2517 = vst [vmem:[#allocation5 + $0x7e0] sm:$0xff] %v2485
        %2518 = vst [vmem:[#allocation5 + $0x828] sm:$0xff] %v2486
        %2519 = vst [vmem:[#allocation5 + $0x870] sm:$0xff] %v2487
        %2520 = vst [vmem:[#allocation5 + $0x8b8] sm:$0xff] %v2488
        %v2521 = vld [vmem:[#allocation4 + $0x1] sm:$0xff]
        %v2522 = vld [vmem:[#allocation4 + $0x9] sm:$0xff]
        %v2523 = vld [vmem:[#allocation4 + $0x19] sm:$0xff]
        %v2524 = vld [vmem:[#allocation4 + $0x21] sm:$0xff]
        %v2525 = vld [vmem:[#allocation4 + $0x31] sm:$0xff]
        %v2526 = vld [vmem:[#allocation4 + $0x39] sm:$0xff]
        %v2527 = vld [vmem:[#allocation4 + $0x49] sm:$0xff]
        %v2528 = vld [vmem:[#allocation4 + $0x51] sm:$0xff]
        %v2529 = vld [vmem:[#allocation4 + $0x61] sm:$0xff]
        %v2530 = vld [vmem:[#allocation4 + $0x69] sm:$0xff]
        %v2531 = vld [vmem:[#allocation4 + $0x79] sm:$0xff]
        %v2532 = vld [vmem:[#allocation4 + $0x81] sm:$0xff]
        %v2533 = vld [vmem:[#allocation4 + $0x91] sm:$0xff]
        %v2534 = vld [vmem:[#allocation4 + $0x99] sm:$0xff]
        %v2535 = vld [vmem:[#allocation4 + $0xa9] sm:$0xff]
        %v2536 = vld [vmem:[#allocation4 + $0xb1] sm:$0xff]
        %v2537 = vld [vmem:[#allocation4 + $0xc1] sm:$0xff]
        %v2538 = vld [vmem:[#allocation4 + $0xc9] sm:$0xff]
        %v2539 = vld [vmem:[#allocation4 + $0xd9] sm:$0xff]
        %v2540 = vld [vmem:[#allocation4 + $0xe1] sm:$0xff]
        %v2541 = vld [vmem:[#allocation4 + $0xf1] sm:$0xff]
        %v2542 = vld [vmem:[#allocation4 + $0xf9] sm:$0xff]
        %v2543 = vld [vmem:[#allocation4 + $0x109] sm:$0xff]
        %v2544 = vld [vmem:[#allocation4 + $0x111] sm:$0xff]
        %v2545 = vld [vmem:[#allocation4 + $0x121] sm:$0xff]
        %v2546 = vld [vmem:[#allocation4 + $0x129] sm:$0xff]
        %v2547 = vld [vmem:[#allocation4 + $0x139] sm:$0xff]
        %v2548 = vld [vmem:[#allocation4 + $0x141] sm:$0xff]
        %v2549 = vld [vmem:[#allocation4 + $0x151] sm:$0xff]
        %v2550 = vld [vmem:[#allocation4 + $0x159] sm:$0xff]
        %v2551 = vld [vmem:[#allocation4 + $0x169] sm:$0xff]
        %v2552 = vld [vmem:[#allocation4 + $0x171] sm:$0xff]
        %2553 = vst [vmem:[#allocation5 + $0x8] sm:$0xff] %v2521
        %2554 = vst [vmem:[#allocation5 + $0x50] sm:$0xff] %v2522
        %2555 = vst [vmem:[#allocation5 + $0x98] sm:$0xff] %v2523
        %2556 = vst [vmem:[#allocation5 + $0xe0] sm:$0xff] %v2524
        %2557 = vst [vmem:[#allocation5 + $0x128] sm:$0xff] %v2525
        %2558 = vst [vmem:[#allocation5 + $0x170] sm:$0xff] %v2526
        %2559 = vst [vmem:[#allocation5 + $0x1b8] sm:$0xff] %v2527
        %2560 = vst [vmem:[#allocation5 + $0x200] sm:$0xff] %v2528
        %2561 = vst [vmem:[#allocation5 + $0x248] sm:$0xff] %v2529
        %2562 = vst [vmem:[#allocation5 + $0x290] sm:$0xff] %v2530
        %2563 = vst [vmem:[#allocation5 + $0x2d8] sm:$0xff] %v2531
        %2564 = vst [vmem:[#allocation5 + $0x320] sm:$0xff] %v2532
        %2565 = vst [vmem:[#allocation5 + $0x368] sm:$0xff] %v2533
        %2566 = vst [vmem:[#allocation5 + $0x3b0] sm:$0xff] %v2534
        %2567 = vst [vmem:[#allocation5 + $0x3f8] sm:$0xff] %v2535
        %2568 = vst [vmem:[#allocation5 + $0x440] sm:$0xff] %v2536
        %2569 = vst [vmem:[#allocation5 + $0x488] sm:$0xff] %v2537
        %2570 = vst [vmem:[#allocation5 + $0x4d0] sm:$0xff] %v2538
        %2571 = vst [vmem:[#allocation5 + $0x518] sm:$0xff] %v2539
        %2572 = vst [vmem:[#allocation5 + $0x560] sm:$0xff] %v2540
        %2573 = vst [vmem:[#allocation5 + $0x5a8] sm:$0xff] %v2541
        %2574 = vst [vmem:[#allocation5 + $0x5f0] sm:$0xff] %v2542
        %2575 = vst [vmem:[#allocation5 + $0x638] sm:$0xff] %v2543
        %2576 = vst [vmem:[#allocation5 + $0x680] sm:$0xff] %v2544
        %2577 = vst [vmem:[#allocation5 + $0x6c8] sm:$0xff] %v2545
        %2578 = vst [vmem:[#allocation5 + $0x710] sm:$0xff] %v2546
        %2579 = vst [vmem:[#allocation5 + $0x758] sm:$0xff] %v2547
        %2580 = vst [vmem:[#allocation5 + $0x7a0] sm:$0xff] %v2548
        %2581 = vst [vmem:[#allocation5 + $0x7e8] sm:$0xff] %v2549
        %2582 = vst [vmem:[#allocation5 + $0x830] sm:$0xff] %v2550
        %2583 = vst [vmem:[#allocation5 + $0x878] sm:$0xff] %v2551
        %2584 = vst [vmem:[#allocation5 + $0x8c0] sm:$0xff] %v2552
        %v2585 = vld [vmem:[#allocation4 + $0x2] sm:$0xff]
        %v2586 = vld [vmem:[#allocation4 + $0xa] sm:$0xff]
        %v2587 = vld [vmem:[#allocation4 + $0x1a] sm:$0xff]
        %v2588 = vld [vmem:[#allocation4 + $0x22] sm:$0xff]
        %v2589 = vld [vmem:[#allocation4 + $0x32] sm:$0xff]
        %v2590 = vld [vmem:[#allocation4 + $0x3a] sm:$0xff]
        %v2591 = vld [vmem:[#allocation4 + $0x4a] sm:$0xff]
        %v2592 = vld [vmem:[#allocation4 + $0x52] sm:$0xff]
        %v2593 = vld [vmem:[#allocation4 + $0x62] sm:$0xff]
        %v2594 = vld [vmem:[#allocation4 + $0x6a] sm:$0xff]
        %v2595 = vld [vmem:[#allocation4 + $0x7a] sm:$0xff]
        %v2596 = vld [vmem:[#allocation4 + $0x82] sm:$0xff]
        %v2597 = vld [vmem:[#allocation4 + $0x92] sm:$0xff]
        %v2598 = vld [vmem:[#allocation4 + $0x9a] sm:$0xff]
        %v2599 = vld [vmem:[#allocation4 + $0xaa] sm:$0xff]
        %v2600 = vld [vmem:[#allocation4 + $0xb2] sm:$0xff]
        %v2601 = vld [vmem:[#allocation4 + $0xc2] sm:$0xff]
        %v2602 = vld [vmem:[#allocation4 + $0xca] sm:$0xff]
        %v2603 = vld [vmem:[#allocation4 + $0xda] sm:$0xff]
        %v2604 = vld [vmem:[#allocation4 + $0xe2] sm:$0xff]
        %v2605 = vld [vmem:[#allocation4 + $0xf2] sm:$0xff]
        %v2606 = vld [vmem:[#allocation4 + $0xfa] sm:$0xff]
        %v2607 = vld [vmem:[#allocation4 + $0x10a] sm:$0xff]
        %v2608 = vld [vmem:[#allocation4 + $0x112] sm:$0xff]
        %v2609 = vld [vmem:[#allocation4 + $0x122] sm:$0xff]
        %v2610 = vld [vmem:[#allocation4 + $0x12a] sm:$0xff]
        %v2611 = vld [vmem:[#allocation4 + $0x13a] sm:$0xff]
        %v2612 = vld [vmem:[#allocation4 + $0x142] sm:$0xff]
        %v2613 = vld [vmem:[#allocation4 + $0x152] sm:$0xff]
        %v2614 = vld [vmem:[#allocation4 + $0x15a] sm:$0xff]
        %v2615 = vld [vmem:[#allocation4 + $0x16a] sm:$0xff]
        %v2616 = vld [vmem:[#allocation4 + $0x172] sm:$0xff]
        %2617 = vst [vmem:[#allocation5 + $0x10] sm:$0xff] %v2585
        %2618 = vst [vmem:[#allocation5 + $0x58] sm:$0xff] %v2586
        %2619 = vst [vmem:[#allocation5 + $0xa0] sm:$0xff] %v2587
        %2620 = vst [vmem:[#allocation5 + $0xe8] sm:$0xff] %v2588
        %2621 = vst [vmem:[#allocation5 + $0x130] sm:$0xff] %v2589
        %2622 = vst [vmem:[#allocation5 + $0x178] sm:$0xff] %v2590
        %2623 = vst [vmem:[#allocation5 + $0x1c0] sm:$0xff] %v2591
        %2624 = vst [vmem:[#allocation5 + $0x208] sm:$0xff] %v2592
        %2625 = vst [vmem:[#allocation5 + $0x250] sm:$0xff] %v2593
        %2626 = vst [vmem:[#allocation5 + $0x298] sm:$0xff] %v2594
        %2627 = vst [vmem:[#allocation5 + $0x2e0] sm:$0xff] %v2595
        %2628 = vst [vmem:[#allocation5 + $0x328] sm:$0xff] %v2596
        %2629 = vst [vmem:[#allocation5 + $0x370] sm:$0xff] %v2597
        %2630 = vst [vmem:[#allocation5 + $0x3b8] sm:$0xff] %v2598
        %2631 = vst [vmem:[#allocation5 + $0x400] sm:$0xff] %v2599
        %2632 = vst [vmem:[#allocation5 + $0x448] sm:$0xff] %v2600
        %2633 = vst [vmem:[#allocation5 + $0x490] sm:$0xff] %v2601
        %2634 = vst [vmem:[#allocation5 + $0x4d8] sm:$0xff] %v2602
        %2635 = vst [vmem:[#allocation5 + $0x520] sm:$0xff] %v2603
        %2636 = vst [vmem:[#allocation5 + $0x568] sm:$0xff] %v2604
        %2637 = vst [vmem:[#allocation5 + $0x5b0] sm:$0xff] %v2605
        %2638 = vst [vmem:[#allocation5 + $0x5f8] sm:$0xff] %v2606
        %2639 = vst [vmem:[#allocation5 + $0x640] sm:$0xff] %v2607
        %2640 = vst [vmem:[#allocation5 + $0x688] sm:$0xff] %v2608
        %2641 = vst [vmem:[#allocation5 + $0x6d0] sm:$0xff] %v2609
        %2642 = vst [vmem:[#allocation5 + $0x718] sm:$0xff] %v2610
        %2643 = vst [vmem:[#allocation5 + $0x760] sm:$0xff] %v2611
        %2644 = vst [vmem:[#allocation5 + $0x7a8] sm:$0xff] %v2612
        %2645 = vst [vmem:[#allocation5 + $0x7f0] sm:$0xff] %v2613
        %2646 = vst [vmem:[#allocation5 + $0x838] sm:$0xff] %v2614
        %2647 = vst [vmem:[#allocation5 + $0x880] sm:$0xff] %v2615
        %2648 = vst [vmem:[#allocation5 + $0x8c8] sm:$0xff] %v2616
        %v2649 = vld [vmem:[%s2424] sm:$0xff]
        %v2650 = vld [vmem:[%s2424 + $0x8] sm:$0xff]
        %v2651 = vld [vmem:[%s2424 + $0x18] sm:$0xff]
        %v2652 = vld [vmem:[%s2424 + $0x20] sm:$0xff]
        %v2653 = vld [vmem:[%s2424 + $0x30] sm:$0xff]
        %v2654 = vld [vmem:[%s2424 + $0x38] sm:$0xff]
        %v2655 = vld [vmem:[%s2424 + $0x48] sm:$0xff]
        %v2656 = vld [vmem:[%s2424 + $0x50] sm:$0xff]
        %v2657 = vld [vmem:[%s2424 + $0x60] sm:$0xff]
        %v2658 = vld [vmem:[%s2424 + $0x68] sm:$0xff]
        %v2659 = vld [vmem:[%s2424 + $0x78] sm:$0xff]
        %v2660 = vld [vmem:[%s2424 + $0x80] sm:$0xff]
        %v2661 = vld [vmem:[%s2424 + $0x90] sm:$0xff]
        %v2662 = vld [vmem:[%s2424 + $0x98] sm:$0xff]
        %v2663 = vld [vmem:[%s2424 + $0xa8] sm:$0xff]
        %v2664 = vld [vmem:[%s2424 + $0xb0] sm:$0xff]
        %v2665 = vld [vmem:[%s2424 + $0xc0] sm:$0xff]
        %v2666 = vld [vmem:[%s2424 + $0xc8] sm:$0xff]
        %v2667 = vld [vmem:[%s2424 + $0xd8] sm:$0xff]
        %v2668 = vld [vmem:[%s2424 + $0xe0] sm:$0xff]
        %v2669 = vld [vmem:[%s2424 + $0xf0] sm:$0xff]
        %v2670 = vld [vmem:[%s2424 + $0xf8] sm:$0xff]
        %v2671 = vld [vmem:[%s2424 + $0x108] sm:$0xff]
        %v2672 = vld [vmem:[%s2424 + $0x110] sm:$0xff]
        %v2673 = vld [vmem:[%s2424 + $0x120] sm:$0xff]
        %v2674 = vld [vmem:[%s2424 + $0x128] sm:$0xff]
        %v2675 = vld [vmem:[%s2424 + $0x138] sm:$0xff]
        %v2676 = vld [vmem:[%s2424 + $0x140] sm:$0xff]
        %v2677 = vld [vmem:[%s2424 + $0x150] sm:$0xff]
        %v2678 = vld [vmem:[%s2424 + $0x158] sm:$0xff]
        %v2679 = vld [vmem:[%s2424 + $0x168] sm:$0xff]
        %v2680 = vld [vmem:[%s2424 + $0x170] sm:$0xff]
        %2681 = vst [vmem:[#allocation5 + $0x18] sm:$0xff] %v2649
        %2682 = vst [vmem:[#allocation5 + $0x60] sm:$0xff] %v2650
        %2683 = vst [vmem:[#allocation5 + $0xa8] sm:$0xff] %v2651
        %2684 = vst [vmem:[#allocation5 + $0xf0] sm:$0xff] %v2652
        %2685 = vst [vmem:[#allocation5 + $0x138] sm:$0xff] %v2653
        %2686 = vst [vmem:[#allocation5 + $0x180] sm:$0xff] %v2654
        %2687 = vst [vmem:[#allocation5 + $0x1c8] sm:$0xff] %v2655
        %2688 = vst [vmem:[#allocation5 + $0x210] sm:$0xff] %v2656
        %2689 = vst [vmem:[#allocation5 + $0x258] sm:$0xff] %v2657
        %2690 = vst [vmem:[#allocation5 + $0x2a0] sm:$0xff] %v2658
        %2691 = vst [vmem:[#allocation5 + $0x2e8] sm:$0xff] %v2659
        %2692 = vst [vmem:[#allocation5 + $0x330] sm:$0xff] %v2660
        %2693 = vst [vmem:[#allocation5 + $0x378] sm:$0xff] %v2661
        %2694 = vst [vmem:[#allocation5 + $0x3c0] sm:$0xff] %v2662
        %2695 = vst [vmem:[#allocation5 + $0x408] sm:$0xff] %v2663
        %2696 = vst [vmem:[#allocation5 + $0x450] sm:$0xff] %v2664
        %2697 = vst [vmem:[#allocation5 + $0x498] sm:$0xff] %v2665
        %2698 = vst [vmem:[#allocation5 + $0x4e0] sm:$0xff] %v2666
        %2699 = vst [vmem:[#allocation5 + $0x528] sm:$0xff] %v2667
        %2700 = vst [vmem:[#allocation5 + $0x570] sm:$0xff] %v2668
        %2701 = vst [vmem:[#allocation5 + $0x5b8] sm:$0xff] %v2669
        %2702 = vst [vmem:[#allocation5 + $0x600] sm:$0xff] %v2670
        %2703 = vst [vmem:[#allocation5 + $0x648] sm:$0xff] %v2671
        %2704 = vst [vmem:[#allocation5 + $0x690] sm:$0xff] %v2672
        %2705 = vst [vmem:[#allocation5 + $0x6d8] sm:$0xff] %v2673
        %2706 = vst [vmem:[#allocation5 + $0x720] sm:$0xff] %v2674
        %2707 = vst [vmem:[#allocation5 + $0x768] sm:$0xff] %v2675
        %2708 = vst [vmem:[#allocation5 + $0x7b0] sm:$0xff] %v2676
        %2709 = vst [vmem:[#allocation5 + $0x7f8] sm:$0xff] %v2677
        %2710 = vst [vmem:[#allocation5 + $0x840] sm:$0xff] %v2678
        %2711 = vst [vmem:[#allocation5 + $0x888] sm:$0xff] %v2679
        %2712 = vst [vmem:[#allocation5 + $0x8d0] sm:$0xff] %v2680
        %v2713 = vld [vmem:[%s2424 + $0x1] sm:$0xff]
        %v2714 = vld [vmem:[%s2424 + $0x9] sm:$0xff]
        %v2715 = vld [vmem:[%s2424 + $0x19] sm:$0xff]
        %v2716 = vld [vmem:[%s2424 + $0x21] sm:$0xff]
        %v2717 = vld [vmem:[%s2424 + $0x31] sm:$0xff]
        %v2718 = vld [vmem:[%s2424 + $0x39] sm:$0xff]
        %v2719 = vld [vmem:[%s2424 + $0x49] sm:$0xff]
        %v2720 = vld [vmem:[%s2424 + $0x51] sm:$0xff]
        %v2721 = vld [vmem:[%s2424 + $0x61] sm:$0xff]
        %v2722 = vld [vmem:[%s2424 + $0x69] sm:$0xff]
        %v2723 = vld [vmem:[%s2424 + $0x79] sm:$0xff]
        %v2724 = vld [vmem:[%s2424 + $0x81] sm:$0xff]
        %v2725 = vld [vmem:[%s2424 + $0x91] sm:$0xff]
        %v2726 = vld [vmem:[%s2424 + $0x99] sm:$0xff]
        %v2727 = vld [vmem:[%s2424 + $0xa9] sm:$0xff]
        %v2728 = vld [vmem:[%s2424 + $0xb1] sm:$0xff]
        %v2729 = vld [vmem:[%s2424 + $0xc1] sm:$0xff]
        %v2730 = vld [vmem:[%s2424 + $0xc9] sm:$0xff]
        %v2731 = vld [vmem:[%s2424 + $0xd9] sm:$0xff]
        %v2732 = vld [vmem:[%s2424 + $0xe1] sm:$0xff]
        %v2733 = vld [vmem:[%s2424 + $0xf1] sm:$0xff]
        %v2734 = vld [vmem:[%s2424 + $0xf9] sm:$0xff]
        %v2735 = vld [vmem:[%s2424 + $0x109] sm:$0xff]
        %v2736 = vld [vmem:[%s2424 + $0x111] sm:$0xff]
        %v2737 = vld [vmem:[%s2424 + $0x121] sm:$0xff]
        %v2738 = vld [vmem:[%s2424 + $0x129] sm:$0xff]
        %v2739 = vld [vmem:[%s2424 + $0x139] sm:$0xff]
        %v2740 = vld [vmem:[%s2424 + $0x141] sm:$0xff]
        %v2741 = vld [vmem:[%s2424 + $0x151] sm:$0xff]
        %v2742 = vld [vmem:[%s2424 + $0x159] sm:$0xff]
        %v2743 = vld [vmem:[%s2424 + $0x169] sm:$0xff]
        %v2744 = vld [vmem:[%s2424 + $0x171] sm:$0xff]
        %2745 = vst [vmem:[#allocation5 + $0x20] sm:$0xff] %v2713
        %2746 = vst [vmem:[#allocation5 + $0x68] sm:$0xff] %v2714
        %2747 = vst [vmem:[#allocation5 + $0xb0] sm:$0xff] %v2715
        %2748 = vst [vmem:[#allocation5 + $0xf8] sm:$0xff] %v2716
        %2749 = vst [vmem:[#allocation5 + $0x140] sm:$0xff] %v2717
        %2750 = vst [vmem:[#allocation5 + $0x188] sm:$0xff] %v2718
        %2751 = vst [vmem:[#allocation5 + $0x1d0] sm:$0xff] %v2719
        %2752 = vst [vmem:[#allocation5 + $0x218] sm:$0xff] %v2720
        %2753 = vst [vmem:[#allocation5 + $0x260] sm:$0xff] %v2721
        %2754 = vst [vmem:[#allocation5 + $0x2a8] sm:$0xff] %v2722
        %2755 = vst [vmem:[#allocation5 + $0x2f0] sm:$0xff] %v2723
        %2756 = vst [vmem:[#allocation5 + $0x338] sm:$0xff] %v2724
        %2757 = vst [vmem:[#allocation5 + $0x380] sm:$0xff] %v2725
        %2758 = vst [vmem:[#allocation5 + $0x3c8] sm:$0xff] %v2726
        %2759 = vst [vmem:[#allocation5 + $0x410] sm:$0xff] %v2727
        %2760 = vst [vmem:[#allocation5 + $0x458] sm:$0xff] %v2728
        %2761 = vst [vmem:[#allocation5 + $0x4a0] sm:$0xff] %v2729
        %2762 = vst [vmem:[#allocation5 + $0x4e8] sm:$0xff] %v2730
        %2763 = vst [vmem:[#allocation5 + $0x530] sm:$0xff] %v2731
        %2764 = vst [vmem:[#allocation5 + $0x578] sm:$0xff] %v2732
        %2765 = vst [vmem:[#allocation5 + $0x5c0] sm:$0xff] %v2733
        %2766 = vst [vmem:[#allocation5 + $0x608] sm:$0xff] %v2734
        %2767 = vst [vmem:[#allocation5 + $0x650] sm:$0xff] %v2735
        %2768 = vst [vmem:[#allocation5 + $0x698] sm:$0xff] %v2736
        %2769 = vst [vmem:[#allocation5 + $0x6e0] sm:$0xff] %v2737
        %2770 = vst [vmem:[#allocation5 + $0x728] sm:$0xff] %v2738
        %2771 = vst [vmem:[#allocation5 + $0x770] sm:$0xff] %v2739
        %2772 = vst [vmem:[#allocation5 + $0x7b8] sm:$0xff] %v2740
        %2773 = vst [vmem:[#allocation5 + $0x800] sm:$0xff] %v2741
        %2774 = vst [vmem:[#allocation5 + $0x848] sm:$0xff] %v2742
        %2775 = vst [vmem:[#allocation5 + $0x890] sm:$0xff] %v2743
        %2776 = vst [vmem:[#allocation5 + $0x8d8] sm:$0xff] %v2744
        %v2777 = vld [vmem:[%s2424 + $0x2] sm:$0xff]
        %v2778 = vld [vmem:[%s2424 + $0xa] sm:$0xff]
        %v2779 = vld [vmem:[%s2424 + $0x1a] sm:$0xff]
        %v2780 = vld [vmem:[%s2424 + $0x22] sm:$0xff]
        %v2781 = vld [vmem:[%s2424 + $0x32] sm:$0xff]
        %v2782 = vld [vmem:[%s2424 + $0x3a] sm:$0xff]
        %v2783 = vld [vmem:[%s2424 + $0x4a] sm:$0xff]
        %v2784 = vld [vmem:[%s2424 + $0x52] sm:$0xff]
        %v2785 = vld [vmem:[%s2424 + $0x62] sm:$0xff]
        %v2786 = vld [vmem:[%s2424 + $0x6a] sm:$0xff]
        %v2787 = vld [vmem:[%s2424 + $0x7a] sm:$0xff]
        %v2788 = vld [vmem:[%s2424 + $0x82] sm:$0xff]
        %v2789 = vld [vmem:[%s2424 + $0x92] sm:$0xff]
        %v2790 = vld [vmem:[%s2424 + $0x9a] sm:$0xff]
        %v2791 = vld [vmem:[%s2424 + $0xaa] sm:$0xff]
        %v2792 = vld [vmem:[%s2424 + $0xb2] sm:$0xff]
        %v2793 = vld [vmem:[%s2424 + $0xc2] sm:$0xff]
        %v2794 = vld [vmem:[%s2424 + $0xca] sm:$0xff]
        %v2795 = vld [vmem:[%s2424 + $0xda] sm:$0xff]
        %v2796 = vld [vmem:[%s2424 + $0xe2] sm:$0xff]
        %v2797 = vld [vmem:[%s2424 + $0xf2] sm:$0xff]
        %v2798 = vld [vmem:[%s2424 + $0xfa] sm:$0xff]
        %v2799 = vld [vmem:[%s2424 + $0x10a] sm:$0xff]
        %v2800 = vld [vmem:[%s2424 + $0x112] sm:$0xff]
        %v2801 = vld [vmem:[%s2424 + $0x122] sm:$0xff]
        %v2802 = vld [vmem:[%s2424 + $0x12a] sm:$0xff]
        %v2803 = vld [vmem:[%s2424 + $0x13a] sm:$0xff]
        %v2804 = vld [vmem:[%s2424 + $0x142] sm:$0xff]
        %v2805 = vld [vmem:[%s2424 + $0x152] sm:$0xff]
        %v2806 = vld [vmem:[%s2424 + $0x15a] sm:$0xff]
        %v2807 = vld [vmem:[%s2424 + $0x16a] sm:$0xff]
        %v2808 = vld [vmem:[%s2424 + $0x172] sm:$0xff]
        %2809 = vst [vmem:[#allocation5 + $0x28] sm:$0xff] %v2777
        %2810 = vst [vmem:[#allocation5 + $0x70] sm:$0xff] %v2778
        %2811 = vst [vmem:[#allocation5 + $0xb8] sm:$0xff] %v2779
        %2812 = vst [vmem:[#allocation5 + $0x100] sm:$0xff] %v2780
        %2813 = vst [vmem:[#allocation5 + $0x148] sm:$0xff] %v2781
        %2814 = vst [vmem:[#allocation5 + $0x190] sm:$0xff] %v2782
        %2815 = vst [vmem:[#allocation5 + $0x1d8] sm:$0xff] %v2783
        %2816 = vst [vmem:[#allocation5 + $0x220] sm:$0xff] %v2784
        %2817 = vst [vmem:[#allocation5 + $0x268] sm:$0xff] %v2785
        %2818 = vst [vmem:[#allocation5 + $0x2b0] sm:$0xff] %v2786
        %2819 = vst [vmem:[#allocation5 + $0x2f8] sm:$0xff] %v2787
        %2820 = vst [vmem:[#allocation5 + $0x340] sm:$0xff] %v2788
        %2821 = vst [vmem:[#allocation5 + $0x388] sm:$0xff] %v2789
        %2822 = vst [vmem:[#allocation5 + $0x3d0] sm:$0xff] %v2790
        %2823 = vst [vmem:[#allocation5 + $0x418] sm:$0xff] %v2791
        %2824 = vst [vmem:[#allocation5 + $0x460] sm:$0xff] %v2792
        %2825 = vst [vmem:[#allocation5 + $0x4a8] sm:$0xff] %v2793
        %2826 = vst [vmem:[#allocation5 + $0x4f0] sm:$0xff] %v2794
        %2827 = vst [vmem:[#allocation5 + $0x538] sm:$0xff] %v2795
        %2828 = vst [vmem:[#allocation5 + $0x580] sm:$0xff] %v2796
        %2829 = vst [vmem:[#allocation5 + $0x5c8] sm:$0xff] %v2797
        %2830 = vst [vmem:[#allocation5 + $0x610] sm:$0xff] %v2798
        %2831 = vst [vmem:[#allocation5 + $0x658] sm:$0xff] %v2799
        %2832 = vst [vmem:[#allocation5 + $0x6a0] sm:$0xff] %v2800
        %2833 = vst [vmem:[#allocation5 + $0x6e8] sm:$0xff] %v2801
        %2834 = vst [vmem:[#allocation5 + $0x730] sm:$0xff] %v2802
        %2835 = vst [vmem:[#allocation5 + $0x778] sm:$0xff] %v2803
        %2836 = vst [vmem:[#allocation5 + $0x7c0] sm:$0xff] %v2804
        %2837 = vst [vmem:[#allocation5 + $0x808] sm:$0xff] %v2805
        %2838 = vst [vmem:[#allocation5 + $0x850] sm:$0xff] %v2806
        %2839 = vst [vmem:[#allocation5 + $0x898] sm:$0xff] %v2807
        %2840 = vst [vmem:[#allocation5 + $0x8e0] sm:$0xff] %v2808
        %s2841 = scalar_lea.vmem [#allocation4], 48
        %v2842 = vld [vmem:[%s2841] sm:$0xff]
        %v2843 = vld [vmem:[%s2841 + $0x8] sm:$0xff]
        %v2844 = vld [vmem:[%s2841 + $0x18] sm:$0xff]
        %v2845 = vld [vmem:[%s2841 + $0x20] sm:$0xff]
        %v2846 = vld [vmem:[%s2841 + $0x30] sm:$0xff]
        %v2847 = vld [vmem:[%s2841 + $0x38] sm:$0xff]
        %v2848 = vld [vmem:[%s2841 + $0x48] sm:$0xff]
        %v2849 = vld [vmem:[%s2841 + $0x50] sm:$0xff]
        %v2850 = vld [vmem:[%s2841 + $0x60] sm:$0xff]
        %v2851 = vld [vmem:[%s2841 + $0x68] sm:$0xff]
        %v2852 = vld [vmem:[%s2841 + $0x78] sm:$0xff]
        %v2853 = vld [vmem:[%s2841 + $0x80] sm:$0xff]
        %v2854 = vld [vmem:[%s2841 + $0x90] sm:$0xff]
        %v2855 = vld [vmem:[%s2841 + $0x98] sm:$0xff]
        %v2856 = vld [vmem:[%s2841 + $0xa8] sm:$0xff]
        %v2857 = vld [vmem:[%s2841 + $0xb0] sm:$0xff]
        %v2858 = vld [vmem:[%s2841 + $0xc0] sm:$0xff]
        %v2859 = vld [vmem:[%s2841 + $0xc8] sm:$0xff]
        %v2860 = vld [vmem:[%s2841 + $0xd8] sm:$0xff]
        %v2861 = vld [vmem:[%s2841 + $0xe0] sm:$0xff]
        %v2862 = vld [vmem:[%s2841 + $0xf0] sm:$0xff]
        %v2863 = vld [vmem:[%s2841 + $0xf8] sm:$0xff]
        %v2864 = vld [vmem:[%s2841 + $0x108] sm:$0xff]
        %v2865 = vld [vmem:[%s2841 + $0x110] sm:$0xff]
        %v2866 = vld [vmem:[%s2841 + $0x120] sm:$0xff]
        %v2867 = vld [vmem:[%s2841 + $0x128] sm:$0xff]
        %v2868 = vld [vmem:[%s2841 + $0x138] sm:$0xff]
        %v2869 = vld [vmem:[%s2841 + $0x140] sm:$0xff]
        %v2870 = vld [vmem:[%s2841 + $0x150] sm:$0xff]
        %v2871 = vld [vmem:[%s2841 + $0x158] sm:$0xff]
        %v2872 = vld [vmem:[%s2841 + $0x168] sm:$0xff]
        %v2873 = vld [vmem:[%s2841 + $0x170] sm:$0xff]
        %2874 = vst [vmem:[#allocation5 + $0x30] sm:$0xff] %v2842
        %2875 = vst [vmem:[#allocation5 + $0x78] sm:$0xff] %v2843
        %2876 = vst [vmem:[#allocation5 + $0xc0] sm:$0xff] %v2844
        %2877 = vst [vmem:[#allocation5 + $0x108] sm:$0xff] %v2845
        %2878 = vst [vmem:[#allocation5 + $0x150] sm:$0xff] %v2846
        %2879 = vst [vmem:[#allocation5 + $0x198] sm:$0xff] %v2847
        %2880 = vst [vmem:[#allocation5 + $0x1e0] sm:$0xff] %v2848
        %2881 = vst [vmem:[#allocation5 + $0x228] sm:$0xff] %v2849
        %2882 = vst [vmem:[#allocation5 + $0x270] sm:$0xff] %v2850
        %2883 = vst [vmem:[#allocation5 + $0x2b8] sm:$0xff] %v2851
        %2884 = vst [vmem:[#allocation5 + $0x300] sm:$0xff] %v2852
        %2885 = vst [vmem:[#allocation5 + $0x348] sm:$0xff] %v2853
        %2886 = vst [vmem:[#allocation5 + $0x390] sm:$0xff] %v2854
        %2887 = vst [vmem:[#allocation5 + $0x3d8] sm:$0xff] %v2855
        %2888 = vst [vmem:[#allocation5 + $0x420] sm:$0xff] %v2856
        %2889 = vst [vmem:[#allocation5 + $0x468] sm:$0xff] %v2857
        %2890 = vst [vmem:[#allocation5 + $0x4b0] sm:$0xff] %v2858
        %2891 = vst [vmem:[#allocation5 + $0x4f8] sm:$0xff] %v2859
        %2892 = vst [vmem:[#allocation5 + $0x540] sm:$0xff] %v2860
        %2893 = vst [vmem:[#allocation5 + $0x588] sm:$0xff] %v2861
        %2894 = vst [vmem:[#allocation5 + $0x5d0] sm:$0xff] %v2862
        %2895 = vst [vmem:[#allocation5 + $0x618] sm:$0xff] %v2863
        %2896 = vst [vmem:[#allocation5 + $0x660] sm:$0xff] %v2864
        %2897 = vst [vmem:[#allocation5 + $0x6a8] sm:$0xff] %v2865
        %2898 = vst [vmem:[#allocation5 + $0x6f0] sm:$0xff] %v2866
        %2899 = vst [vmem:[#allocation5 + $0x738] sm:$0xff] %v2867
        %2900 = vst [vmem:[#allocation5 + $0x780] sm:$0xff] %v2868
        %2901 = vst [vmem:[#allocation5 + $0x7c8] sm:$0xff] %v2869
        %2902 = vst [vmem:[#allocation5 + $0x810] sm:$0xff] %v2870
        %2903 = vst [vmem:[#allocation5 + $0x858] sm:$0xff] %v2871
        %2904 = vst [vmem:[#allocation5 + $0x8a0] sm:$0xff] %v2872
        %2905 = vst [vmem:[#allocation5 + $0x8e8] sm:$0xff] %v2873
        %v2906 = vld [vmem:[%s2841 + $0x1] sm:$0xff]
        %v2907 = vld [vmem:[%s2841 + $0x9] sm:$0xff]
        %v2908 = vld [vmem:[%s2841 + $0x19] sm:$0xff]
        %v2909 = vld [vmem:[%s2841 + $0x21] sm:$0xff]
        %v2910 = vld [vmem:[%s2841 + $0x31] sm:$0xff]
        %v2911 = vld [vmem:[%s2841 + $0x39] sm:$0xff]
        %v2912 = vld [vmem:[%s2841 + $0x49] sm:$0xff]
        %v2913 = vld [vmem:[%s2841 + $0x51] sm:$0xff]
        %v2914 = vld [vmem:[%s2841 + $0x61] sm:$0xff]
        %v2915 = vld [vmem:[%s2841 + $0x69] sm:$0xff]
        %v2916 = vld [vmem:[%s2841 + $0x79] sm:$0xff]
        %v2917 = vld [vmem:[%s2841 + $0x81] sm:$0xff]
        %v2918 = vld [vmem:[%s2841 + $0x91] sm:$0xff]
        %v2919 = vld [vmem:[%s2841 + $0x99] sm:$0xff]
        %v2920 = vld [vmem:[%s2841 + $0xa9] sm:$0xff]
        %v2921 = vld [vmem:[%s2841 + $0xb1] sm:$0xff]
        %v2922 = vld [vmem:[%s2841 + $0xc1] sm:$0xff]
        %v2923 = vld [vmem:[%s2841 + $0xc9] sm:$0xff]
        %v2924 = vld [vmem:[%s2841 + $0xd9] sm:$0xff]
        %v2925 = vld [vmem:[%s2841 + $0xe1] sm:$0xff]
        %v2926 = vld [vmem:[%s2841 + $0xf1] sm:$0xff]
        %v2927 = vld [vmem:[%s2841 + $0xf9] sm:$0xff]
        %v2928 = vld [vmem:[%s2841 + $0x109] sm:$0xff]
        %v2929 = vld [vmem:[%s2841 + $0x111] sm:$0xff]
        %v2930 = vld [vmem:[%s2841 + $0x121] sm:$0xff]
        %v2931 = vld [vmem:[%s2841 + $0x129] sm:$0xff]
        %v2932 = vld [vmem:[%s2841 + $0x139] sm:$0xff]
        %v2933 = vld [vmem:[%s2841 + $0x141] sm:$0xff]
        %v2934 = vld [vmem:[%s2841 + $0x151] sm:$0xff]
        %v2935 = vld [vmem:[%s2841 + $0x159] sm:$0xff]
        %v2936 = vld [vmem:[%s2841 + $0x169] sm:$0xff]
        %v2937 = vld [vmem:[%s2841 + $0x171] sm:$0xff]
        %2938 = vst [vmem:[#allocation5 + $0x38] sm:$0xff] %v2906
        %2939 = vst [vmem:[#allocation5 + $0x80] sm:$0xff] %v2907
        %2940 = vst [vmem:[#allocation5 + $0xc8] sm:$0xff] %v2908
        %2941 = vst [vmem:[#allocation5 + $0x110] sm:$0xff] %v2909
        %2942 = vst [vmem:[#allocation5 + $0x158] sm:$0xff] %v2910
        %2943 = vst [vmem:[#allocation5 + $0x1a0] sm:$0xff] %v2911
        %2944 = vst [vmem:[#allocation5 + $0x1e8] sm:$0xff] %v2912
        %2945 = vst [vmem:[#allocation5 + $0x230] sm:$0xff] %v2913
        %2946 = vst [vmem:[#allocation5 + $0x278] sm:$0xff] %v2914
        %2947 = vst [vmem:[#allocation5 + $0x2c0] sm:$0xff] %v2915
        %2948 = vst [vmem:[#allocation5 + $0x308] sm:$0xff] %v2916
        %2949 = vst [vmem:[#allocation5 + $0x350] sm:$0xff] %v2917
        %2950 = vst [vmem:[#allocation5 + $0x398] sm:$0xff] %v2918
        %2951 = vst [vmem:[#allocation5 + $0x3e0] sm:$0xff] %v2919
        %2952 = vst [vmem:[#allocation5 + $0x428] sm:$0xff] %v2920
        %2953 = vst [vmem:[#allocation5 + $0x470] sm:$0xff] %v2921
        %2954 = vst [vmem:[#allocation5 + $0x4b8] sm:$0xff] %v2922
        %2955 = vst [vmem:[#allocation5 + $0x500] sm:$0xff] %v2923
        %2956 = vst [vmem:[#allocation5 + $0x548] sm:$0xff] %v2924
        %2957 = vst [vmem:[#allocation5 + $0x590] sm:$0xff] %v2925
        %2958 = vst [vmem:[#allocation5 + $0x5d8] sm:$0xff] %v2926
        %2959 = vst [vmem:[#allocation5 + $0x620] sm:$0xff] %v2927
        %2960 = vst [vmem:[#allocation5 + $0x668] sm:$0xff] %v2928
        %2961 = vst [vmem:[#allocation5 + $0x6b0] sm:$0xff] %v2929
        %2962 = vst [vmem:[#allocation5 + $0x6f8] sm:$0xff] %v2930
        %2963 = vst [vmem:[#allocation5 + $0x740] sm:$0xff] %v2931
        %2964 = vst [vmem:[#allocation5 + $0x788] sm:$0xff] %v2932
        %2965 = vst [vmem:[#allocation5 + $0x7d0] sm:$0xff] %v2933
        %2966 = vst [vmem:[#allocation5 + $0x818] sm:$0xff] %v2934
        %2967 = vst [vmem:[#allocation5 + $0x860] sm:$0xff] %v2935
        %2968 = vst [vmem:[#allocation5 + $0x8a8] sm:$0xff] %v2936
        %2969 = vst [vmem:[#allocation5 + $0x8f0] sm:$0xff] %v2937
        %v2970 = vld [vmem:[%s2841 + $0x2] sm:$0xff]
        %v2971 = vld [vmem:[%s2841 + $0xa] sm:$0xff]
        %v2972 = vld [vmem:[%s2841 + $0x1a] sm:$0xff]
        %v2973 = vld [vmem:[%s2841 + $0x22] sm:$0xff]
        %v2974 = vld [vmem:[%s2841 + $0x32] sm:$0xff]
        %v2975 = vld [vmem:[%s2841 + $0x3a] sm:$0xff]
        %v2976 = vld [vmem:[%s2841 + $0x4a] sm:$0xff]
        %v2977 = vld [vmem:[%s2841 + $0x52] sm:$0xff]
        %v2978 = vld [vmem:[%s2841 + $0x62] sm:$0xff]
        %v2979 = vld [vmem:[%s2841 + $0x6a] sm:$0xff]
        %v2980 = vld [vmem:[%s2841 + $0x7a] sm:$0xff]
        %v2981 = vld [vmem:[%s2841 + $0x82] sm:$0xff]
        %v2982 = vld [vmem:[%s2841 + $0x92] sm:$0xff]
        %v2983 = vld [vmem:[%s2841 + $0x9a] sm:$0xff]
        %v2984 = vld [vmem:[%s2841 + $0xaa] sm:$0xff]
        %v2985 = vld [vmem:[%s2841 + $0xb2] sm:$0xff]
        %v2986 = vld [vmem:[%s2841 + $0xc2] sm:$0xff]
        %v2987 = vld [vmem:[%s2841 + $0xca] sm:$0xff]
        %v2988 = vld [vmem:[%s2841 + $0xda] sm:$0xff]
        %v2989 = vld [vmem:[%s2841 + $0xe2] sm:$0xff]
        %v2990 = vld [vmem:[%s2841 + $0xf2] sm:$0xff]
        %v2991 = vld [vmem:[%s2841 + $0xfa] sm:$0xff]
        %v2992 = vld [vmem:[%s2841 + $0x10a] sm:$0xff]
        %v2993 = vld [vmem:[%s2841 + $0x112] sm:$0xff]
        %v2994 = vld [vmem:[%s2841 + $0x122] sm:$0xff]
        %v2995 = vld [vmem:[%s2841 + $0x12a] sm:$0xff]
        %v2996 = vld [vmem:[%s2841 + $0x13a] sm:$0xff]
        %v2997 = vld [vmem:[%s2841 + $0x142] sm:$0xff]
        %v2998 = vld [vmem:[%s2841 + $0x152] sm:$0xff]
        %v2999 = vld [vmem:[%s2841 + $0x15a] sm:$0xff]
        %v3000 = vld [vmem:[%s2841 + $0x16a] sm:$0xff]
        %v3001 = vld [vmem:[%s2841 + $0x172] sm:$0xff]
        %3002 = vst [vmem:[#allocation5 + $0x40] sm:$0xff] %v2970
        %3003 = vst [vmem:[#allocation5 + $0x88] sm:$0xff] %v2971
        %3004 = vst [vmem:[#allocation5 + $0xd0] sm:$0xff] %v2972
        %3005 = vst [vmem:[#allocation5 + $0x118] sm:$0xff] %v2973
        %3006 = vst [vmem:[#allocation5 + $0x160] sm:$0xff] %v2974
        %3007 = vst [vmem:[#allocation5 + $0x1a8] sm:$0xff] %v2975
        %3008 = vst [vmem:[#allocation5 + $0x1f0] sm:$0xff] %v2976
        %3009 = vst [vmem:[#allocation5 + $0x238] sm:$0xff] %v2977
        %3010 = vst [vmem:[#allocation5 + $0x280] sm:$0xff] %v2978
        %3011 = vst [vmem:[#allocation5 + $0x2c8] sm:$0xff] %v2979
        %3012 = vst [vmem:[#allocation5 + $0x310] sm:$0xff] %v2980
        %3013 = vst [vmem:[#allocation5 + $0x358] sm:$0xff] %v2981
        %3014 = vst [vmem:[#allocation5 + $0x3a0] sm:$0xff] %v2982
        %3015 = vst [vmem:[#allocation5 + $0x3e8] sm:$0xff] %v2983
        %3016 = vst [vmem:[#allocation5 + $0x430] sm:$0xff] %v2984
        %3017 = vst [vmem:[#allocation5 + $0x478] sm:$0xff] %v2985
        %3018 = vst [vmem:[#allocation5 + $0x4c0] sm:$0xff] %v2986
        %3019 = vst [vmem:[#allocation5 + $0x508] sm:$0xff] %v2987
        %3020 = vst [vmem:[#allocation5 + $0x550] sm:$0xff] %v2988
        %3021 = vst [vmem:[#allocation5 + $0x598] sm:$0xff] %v2989
        %3022 = vst [vmem:[#allocation5 + $0x5e0] sm:$0xff] %v2990
        %3023 = vst [vmem:[#allocation5 + $0x628] sm:$0xff] %v2991
        %3024 = vst [vmem:[#allocation5 + $0x670] sm:$0xff] %v2992
        %3025 = vst [vmem:[#allocation5 + $0x6b8] sm:$0xff] %v2993
        %3026 = vst [vmem:[#allocation5 + $0x700] sm:$0xff] %v2994
        %3027 = vst [vmem:[#allocation5 + $0x748] sm:$0xff] %v2995
        %3028 = vst [vmem:[#allocation5 + $0x790] sm:$0xff] %v2996
        %3029 = vst [vmem:[#allocation5 + $0x7d8] sm:$0xff] %v2997
        %3030 = vst [vmem:[#allocation5 + $0x820] sm:$0xff] %v2998
        %3031 = vst [vmem:[#allocation5 + $0x868] sm:$0xff] %v2999
        %3032 = vst [vmem:[#allocation5 + $0x8b0] sm:$0xff] %v3000
        %3033 = vst [vmem:[#allocation5 + $0x8f8] sm:$0xff] %v3001
        %v3034 = vld [vmem:[#allocation5] sm:$0xff]
        %v3035 = vld [vmem:[#allocation5 + $0x8] sm:$0xff]
        %v3036 = vld [vmem:[#allocation5 + $0x10] sm:$0xff]
        %v3037 = vld [vmem:[#allocation5 + $0x18] sm:$0xff]
        %v3038 = vld [vmem:[#allocation5 + $0x20] sm:$0xff]
        %v3039 = vld [vmem:[#allocation5 + $0x28] sm:$0xff]
        %v3040 = vld [vmem:[#allocation5 + $0x30] sm:$0xff]
        %v3041 = vld [vmem:[#allocation5 + $0x38] sm:$0xff]
        %v3042 = vld [vmem:[#allocation5 + $0x40] sm:$0xff]
        %v3043 = vld [vmem:[#allocation5 + $0x48] sm:$0xff]
        %v3044 = vld [vmem:[#allocation5 + $0x50] sm:$0xff]
        %v3045 = vld [vmem:[#allocation5 + $0x58] sm:$0xff]
        %v3046 = vld [vmem:[#allocation5 + $0x60] sm:$0xff]
        %v3047 = vld [vmem:[#allocation5 + $0x68] sm:$0xff]
        %v3048 = vld [vmem:[#allocation5 + $0x70] sm:$0xff]
        %v3049 = vld [vmem:[#allocation5 + $0x78] sm:$0xff]
        %v3050 = vld [vmem:[#allocation5 + $0x80] sm:$0xff]
        %v3051 = vld [vmem:[#allocation5 + $0x88] sm:$0xff]
        %v3052 = vld [vmem:[#allocation5 + $0x90] sm:$0xff]
        %v3053 = vld [vmem:[#allocation5 + $0x98] sm:$0xff]
        %v3054 = vld [vmem:[#allocation5 + $0xa0] sm:$0xff]
        %v3055 = vld [vmem:[#allocation5 + $0xa8] sm:$0xff]
        %v3056 = vld [vmem:[#allocation5 + $0xb0] sm:$0xff]
        %v3057 = vld [vmem:[#allocation5 + $0xb8] sm:$0xff]
        %v3058 = vld [vmem:[#allocation5 + $0xc0] sm:$0xff]
        %v3059 = vld [vmem:[#allocation5 + $0xc8] sm:$0xff]
        %v3060 = vld [vmem:[#allocation5 + $0xd0] sm:$0xff]
        %v3061 = vld [vmem:[#allocation5 + $0xd8] sm:$0xff]
        %v3062 = vld [vmem:[#allocation5 + $0xe0] sm:$0xff]
        %v3063 = vld [vmem:[#allocation5 + $0xe8] sm:$0xff]
        %v3064 = vld [vmem:[#allocation5 + $0xf0] sm:$0xff]
        %v3065 = vld [vmem:[#allocation5 + $0xf8] sm:$0xff]
        %v3066 = vld [vmem:[#allocation5 + $0x100] sm:$0xff]
        %v3067 = vld [vmem:[#allocation5 + $0x108] sm:$0xff]
        %v3068 = vld [vmem:[#allocation5 + $0x110] sm:$0xff]
        %v3069 = vld [vmem:[#allocation5 + $0x118] sm:$0xff]
        %v3070 = vld [vmem:[#allocation5 + $0x120] sm:$0xff]
        %v3071 = vld [vmem:[#allocation5 + $0x128] sm:$0xff]
        %v3072 = vld [vmem:[#allocation5 + $0x130] sm:$0xff]
        %v3073 = vld [vmem:[#allocation5 + $0x138] sm:$0xff]
        %v3074 = vld [vmem:[#allocation5 + $0x140] sm:$0xff]
        %v3075 = vld [vmem:[#allocation5 + $0x148] sm:$0xff]
        %v3076 = vld [vmem:[#allocation5 + $0x150] sm:$0xff]
        %v3077 = vld [vmem:[#allocation5 + $0x158] sm:$0xff]
        %v3078 = vld [vmem:[#allocation5 + $0x160] sm:$0xff]
        %v3079 = vld [vmem:[#allocation5 + $0x168] sm:$0xff]
        %v3080 = vld [vmem:[#allocation5 + $0x170] sm:$0xff]
        %v3081 = vld [vmem:[#allocation5 + $0x178] sm:$0xff]
        %v3082 = vld [vmem:[#allocation5 + $0x180] sm:$0xff]
        %v3083 = vld [vmem:[#allocation5 + $0x188] sm:$0xff]
        %v3084 = vld [vmem:[#allocation5 + $0x190] sm:$0xff]
        %v3085 = vld [vmem:[#allocation5 + $0x198] sm:$0xff]
        %v3086 = vld [vmem:[#allocation5 + $0x1a0] sm:$0xff]
        %v3087 = vld [vmem:[#allocation5 + $0x1a8] sm:$0xff]
        %v3088 = vld [vmem:[#allocation5 + $0x1b0] sm:$0xff]
        %v3089 = vld [vmem:[#allocation5 + $0x1b8] sm:$0xff]
        %v3090 = vld [vmem:[#allocation5 + $0x1c0] sm:$0xff]
        %v3091 = vld [vmem:[#allocation5 + $0x1c8] sm:$0xff]
        %v3092 = vld [vmem:[#allocation5 + $0x1d0] sm:$0xff]
        %v3093 = vld [vmem:[#allocation5 + $0x1d8] sm:$0xff]
        %v3094 = vld [vmem:[#allocation5 + $0x1e0] sm:$0xff]
        %v3095 = vld [vmem:[#allocation5 + $0x1e8] sm:$0xff]
        %v3096 = vld [vmem:[#allocation5 + $0x1f0] sm:$0xff]
        %v3097 = vld [vmem:[#allocation5 + $0x1f8] sm:$0xff]
        %v3098 = vld [vmem:[#allocation5 + $0x200] sm:$0xff]
        %v3099 = vld [vmem:[#allocation5 + $0x208] sm:$0xff]
        %v3100 = vld [vmem:[#allocation5 + $0x210] sm:$0xff]
        %v3101 = vld [vmem:[#allocation5 + $0x218] sm:$0xff]
        %v3102 = vld [vmem:[#allocation5 + $0x220] sm:$0xff]
        %v3103 = vld [vmem:[#allocation5 + $0x228] sm:$0xff]
        %v3104 = vld [vmem:[#allocation5 + $0x230] sm:$0xff]
        %v3105 = vld [vmem:[#allocation5 + $0x238] sm:$0xff]
        %v3106 = vld [vmem:[#allocation5 + $0x240] sm:$0xff]
        %v3107 = vld [vmem:[#allocation5 + $0x248] sm:$0xff]
        %v3108 = vld [vmem:[#allocation5 + $0x250] sm:$0xff]
        %v3109 = vld [vmem:[#allocation5 + $0x258] sm:$0xff]
        %v3110 = vld [vmem:[#allocation5 + $0x260] sm:$0xff]
        %v3111 = vld [vmem:[#allocation5 + $0x268] sm:$0xff]
        %v3112 = vld [vmem:[#allocation5 + $0x270] sm:$0xff]
        %v3113 = vld [vmem:[#allocation5 + $0x278] sm:$0xff]
        %v3114 = vld [vmem:[#allocation5 + $0x280] sm:$0xff]
        %v3115 = vld [vmem:[#allocation5 + $0x288] sm:$0xff]
        %v3116 = vld [vmem:[#allocation5 + $0x290] sm:$0xff]
        %v3117 = vld [vmem:[#allocation5 + $0x298] sm:$0xff]
        %v3118 = vld [vmem:[#allocation5 + $0x2a0] sm:$0xff]
        %v3119 = vld [vmem:[#allocation5 + $0x2a8] sm:$0xff]
        %v3120 = vld [vmem:[#allocation5 + $0x2b0] sm:$0xff]
        %v3121 = vld [vmem:[#allocation5 + $0x2b8] sm:$0xff]
        %v3122 = vld [vmem:[#allocation5 + $0x2c0] sm:$0xff]
        %v3123 = vld [vmem:[#allocation5 + $0x2c8] sm:$0xff]
        %v3124 = vld [vmem:[#allocation5 + $0x2d0] sm:$0xff]
        %v3125 = vld [vmem:[#allocation5 + $0x2d8] sm:$0xff]
        %v3126 = vld [vmem:[#allocation5 + $0x2e0] sm:$0xff]
        %v3127 = vld [vmem:[#allocation5 + $0x2e8] sm:$0xff]
        %v3128 = vld [vmem:[#allocation5 + $0x2f0] sm:$0xff]
        %v3129 = vld [vmem:[#allocation5 + $0x2f8] sm:$0xff]
        %v3130 = vld [vmem:[#allocation5 + $0x300] sm:$0xff]
        %v3131 = vld [vmem:[#allocation5 + $0x308] sm:$0xff]
        %v3132 = vld [vmem:[#allocation5 + $0x310] sm:$0xff]
        %v3133 = vld [vmem:[#allocation5 + $0x318] sm:$0xff]
        %v3134 = vld [vmem:[#allocation5 + $0x320] sm:$0xff]
        %v3135 = vld [vmem:[#allocation5 + $0x328] sm:$0xff]
        %v3136 = vld [vmem:[#allocation5 + $0x330] sm:$0xff]
        %v3137 = vld [vmem:[#allocation5 + $0x338] sm:$0xff]
        %v3138 = vld [vmem:[#allocation5 + $0x340] sm:$0xff]
        %v3139 = vld [vmem:[#allocation5 + $0x348] sm:$0xff]
        %v3140 = vld [vmem:[#allocation5 + $0x350] sm:$0xff]
        %v3141 = vld [vmem:[#allocation5 + $0x358] sm:$0xff]
        %v3142 = vld [vmem:[#allocation5 + $0x360] sm:$0xff]
        %v3143 = vld [vmem:[#allocation5 + $0x368] sm:$0xff]
        %v3144 = vld [vmem:[#allocation5 + $0x370] sm:$0xff]
        %v3145 = vld [vmem:[#allocation5 + $0x378] sm:$0xff]
        %v3146 = vld [vmem:[#allocation5 + $0x380] sm:$0xff]
        %v3147 = vld [vmem:[#allocation5 + $0x388] sm:$0xff]
        %v3148 = vld [vmem:[#allocation5 + $0x390] sm:$0xff]
        %v3149 = vld [vmem:[#allocation5 + $0x398] sm:$0xff]
        %v3150 = vld [vmem:[#allocation5 + $0x3a0] sm:$0xff]
        %v3151 = vld [vmem:[#allocation5 + $0x3a8] sm:$0xff]
        %v3152 = vld [vmem:[#allocation5 + $0x3b0] sm:$0xff]
        %v3153 = vld [vmem:[#allocation5 + $0x3b8] sm:$0xff]
        %v3154 = vld [vmem:[#allocation5 + $0x3c0] sm:$0xff]
        %v3155 = vld [vmem:[#allocation5 + $0x3c8] sm:$0xff]
        %v3156 = vld [vmem:[#allocation5 + $0x3d0] sm:$0xff]
        %v3157 = vld [vmem:[#allocation5 + $0x3d8] sm:$0xff]
        %v3158 = vld [vmem:[#allocation5 + $0x3e0] sm:$0xff]
        %v3159 = vld [vmem:[#allocation5 + $0x3e8] sm:$0xff]
        %v3160 = vld [vmem:[#allocation5 + $0x3f0] sm:$0xff]
        %v3161 = vld [vmem:[#allocation5 + $0x3f8] sm:$0xff]
        %v3162 = vld [vmem:[#allocation5 + $0x400] sm:$0xff]
        %v3163 = vld [vmem:[#allocation5 + $0x408] sm:$0xff]
        %v3164 = vld [vmem:[#allocation5 + $0x410] sm:$0xff]
        %v3165 = vld [vmem:[#allocation5 + $0x418] sm:$0xff]
        %v3166 = vld [vmem:[#allocation5 + $0x420] sm:$0xff]
        %v3167 = vld [vmem:[#allocation5 + $0x428] sm:$0xff]
        %v3168 = vld [vmem:[#allocation5 + $0x430] sm:$0xff]
        %v3169 = vld [vmem:[#allocation5 + $0x438] sm:$0xff]
        %v3170 = vld [vmem:[#allocation5 + $0x440] sm:$0xff]
        %v3171 = vld [vmem:[#allocation5 + $0x448] sm:$0xff]
        %v3172 = vld [vmem:[#allocation5 + $0x450] sm:$0xff]
        %v3173 = vld [vmem:[#allocation5 + $0x458] sm:$0xff]
        %v3174 = vld [vmem:[#allocation5 + $0x460] sm:$0xff]
        %v3175 = vld [vmem:[#allocation5 + $0x468] sm:$0xff]
        %v3176 = vld [vmem:[#allocation5 + $0x470] sm:$0xff]
        %v3177 = vld [vmem:[#allocation5 + $0x478] sm:$0xff]
        %v3178 = vld [vmem:[#allocation5 + $0x480] sm:$0xff]
        %v3179 = vld [vmem:[#allocation5 + $0x488] sm:$0xff]
        %v3180 = vld [vmem:[#allocation5 + $0x490] sm:$0xff]
        %v3181 = vld [vmem:[#allocation5 + $0x498] sm:$0xff]
        %v3182 = vld [vmem:[#allocation5 + $0x4a0] sm:$0xff]
        %v3183 = vld [vmem:[#allocation5 + $0x4a8] sm:$0xff]
        %v3184 = vld [vmem:[#allocation5 + $0x4b0] sm:$0xff]
        %v3185 = vld [vmem:[#allocation5 + $0x4b8] sm:$0xff]
        %v3186 = vld [vmem:[#allocation5 + $0x4c0] sm:$0xff]
        %v3187 = vld [vmem:[#allocation5 + $0x4c8] sm:$0xff]
        %v3188 = vld [vmem:[#allocation5 + $0x4d0] sm:$0xff]
        %v3189 = vld [vmem:[#allocation5 + $0x4d8] sm:$0xff]
        %v3190 = vld [vmem:[#allocation5 + $0x4e0] sm:$0xff]
        %v3191 = vld [vmem:[#allocation5 + $0x4e8] sm:$0xff]
        %v3192 = vld [vmem:[#allocation5 + $0x4f0] sm:$0xff]
        %v3193 = vld [vmem:[#allocation5 + $0x4f8] sm:$0xff]
        %v3194 = vld [vmem:[#allocation5 + $0x500] sm:$0xff]
        %v3195 = vld [vmem:[#allocation5 + $0x508] sm:$0xff]
        %v3196 = vld [vmem:[#allocation5 + $0x510] sm:$0xff]
        %v3197 = vld [vmem:[#allocation5 + $0x518] sm:$0xff]
        %v3198 = vld [vmem:[#allocation5 + $0x520] sm:$0xff]
        %v3199 = vld [vmem:[#allocation5 + $0x528] sm:$0xff]
        %v3200 = vld [vmem:[#allocation5 + $0x530] sm:$0xff]
        %v3201 = vld [vmem:[#allocation5 + $0x538] sm:$0xff]
        %v3202 = vld [vmem:[#allocation5 + $0x540] sm:$0xff]
        %v3203 = vld [vmem:[#allocation5 + $0x548] sm:$0xff]
        %v3204 = vld [vmem:[#allocation5 + $0x550] sm:$0xff]
        %v3205 = vld [vmem:[#allocation5 + $0x558] sm:$0xff]
        %v3206 = vld [vmem:[#allocation5 + $0x560] sm:$0xff]
        %v3207 = vld [vmem:[#allocation5 + $0x568] sm:$0xff]
        %v3208 = vld [vmem:[#allocation5 + $0x570] sm:$0xff]
        %v3209 = vld [vmem:[#allocation5 + $0x578] sm:$0xff]
        %v3210 = vld [vmem:[#allocation5 + $0x580] sm:$0xff]
        %v3211 = vld [vmem:[#allocation5 + $0x588] sm:$0xff]
        %v3212 = vld [vmem:[#allocation5 + $0x590] sm:$0xff]
        %v3213 = vld [vmem:[#allocation5 + $0x598] sm:$0xff]
        %v3214 = vld [vmem:[#allocation5 + $0x5a0] sm:$0xff]
        %v3215 = vld [vmem:[#allocation5 + $0x5a8] sm:$0xff]
        %v3216 = vld [vmem:[#allocation5 + $0x5b0] sm:$0xff]
        %v3217 = vld [vmem:[#allocation5 + $0x5b8] sm:$0xff]
        %v3218 = vld [vmem:[#allocation5 + $0x5c0] sm:$0xff]
        %v3219 = vld [vmem:[#allocation5 + $0x5c8] sm:$0xff]
        %v3220 = vld [vmem:[#allocation5 + $0x5d0] sm:$0xff]
        %v3221 = vld [vmem:[#allocation5 + $0x5d8] sm:$0xff]
        %v3222 = vld [vmem:[#allocation5 + $0x5e0] sm:$0xff]
        %v3223 = vld [vmem:[#allocation5 + $0x5e8] sm:$0xff]
        %v3224 = vld [vmem:[#allocation5 + $0x5f0] sm:$0xff]
        %v3225 = vld [vmem:[#allocation5 + $0x5f8] sm:$0xff]
        %v3226 = vld [vmem:[#allocation5 + $0x600] sm:$0xff]
        %v3227 = vld [vmem:[#allocation5 + $0x608] sm:$0xff]
        %v3228 = vld [vmem:[#allocation5 + $0x610] sm:$0xff]
        %v3229 = vld [vmem:[#allocation5 + $0x618] sm:$0xff]
        %v3230 = vld [vmem:[#allocation5 + $0x620] sm:$0xff]
        %v3231 = vld [vmem:[#allocation5 + $0x628] sm:$0xff]
        %v3232 = vld [vmem:[#allocation5 + $0x630] sm:$0xff]
        %v3233 = vld [vmem:[#allocation5 + $0x638] sm:$0xff]
        %v3234 = vld [vmem:[#allocation5 + $0x640] sm:$0xff]
        %v3235 = vld [vmem:[#allocation5 + $0x648] sm:$0xff]
        %v3236 = vld [vmem:[#allocation5 + $0x650] sm:$0xff]
        %v3237 = vld [vmem:[#allocation5 + $0x658] sm:$0xff]
        %v3238 = vld [vmem:[#allocation5 + $0x660] sm:$0xff]
        %v3239 = vld [vmem:[#allocation5 + $0x668] sm:$0xff]
        %v3240 = vld [vmem:[#allocation5 + $0x670] sm:$0xff]
        %v3241 = vld [vmem:[#allocation5 + $0x678] sm:$0xff]
        %v3242 = vld [vmem:[#allocation5 + $0x680] sm:$0xff]
        %v3243 = vld [vmem:[#allocation5 + $0x688] sm:$0xff]
        %v3244 = vld [vmem:[#allocation5 + $0x690] sm:$0xff]
        %v3245 = vld [vmem:[#allocation5 + $0x698] sm:$0xff]
        %v3246 = vld [vmem:[#allocation5 + $0x6a0] sm:$0xff]
        %v3247 = vld [vmem:[#allocation5 + $0x6a8] sm:$0xff]
        %v3248 = vld [vmem:[#allocation5 + $0x6b0] sm:$0xff]
        %v3249 = vld [vmem:[#allocation5 + $0x6b8] sm:$0xff]
        %v3250 = vld [vmem:[#allocation5 + $0x6c0] sm:$0xff]
        %v3251 = vld [vmem:[#allocation5 + $0x6c8] sm:$0xff]
        %v3252 = vld [vmem:[#allocation5 + $0x6d0] sm:$0xff]
        %v3253 = vld [vmem:[#allocation5 + $0x6d8] sm:$0xff]
        %v3254 = vld [vmem:[#allocation5 + $0x6e0] sm:$0xff]
        %v3255 = vld [vmem:[#allocation5 + $0x6e8] sm:$0xff]
        %v3256 = vld [vmem:[#allocation5 + $0x6f0] sm:$0xff]
        %v3257 = vld [vmem:[#allocation5 + $0x6f8] sm:$0xff]
        %v3258 = vld [vmem:[#allocation5 + $0x700] sm:$0xff]
        %v3259 = vld [vmem:[#allocation5 + $0x708] sm:$0xff]
        %v3260 = vld [vmem:[#allocation5 + $0x710] sm:$0xff]
        %v3261 = vld [vmem:[#allocation5 + $0x718] sm:$0xff]
        %v3262 = vld [vmem:[#allocation5 + $0x720] sm:$0xff]
        %v3263 = vld [vmem:[#allocation5 + $0x728] sm:$0xff]
        %v3264 = vld [vmem:[#allocation5 + $0x730] sm:$0xff]
        %v3265 = vld [vmem:[#allocation5 + $0x738] sm:$0xff]
        %v3266 = vld [vmem:[#allocation5 + $0x740] sm:$0xff]
        %v3267 = vld [vmem:[#allocation5 + $0x748] sm:$0xff]
        %v3268 = vld [vmem:[#allocation5 + $0x750] sm:$0xff]
        %v3269 = vld [vmem:[#allocation5 + $0x758] sm:$0xff]
        %v3270 = vld [vmem:[#allocation5 + $0x760] sm:$0xff]
        %v3271 = vld [vmem:[#allocation5 + $0x768] sm:$0xff]
        %v3272 = vld [vmem:[#allocation5 + $0x770] sm:$0xff]
        %v3273 = vld [vmem:[#allocation5 + $0x778] sm:$0xff]
        %v3274 = vld [vmem:[#allocation5 + $0x780] sm:$0xff]
        %v3275 = vld [vmem:[#allocation5 + $0x788] sm:$0xff]
        %v3276 = vld [vmem:[#allocation5 + $0x790] sm:$0xff]
        %v3277 = vld [vmem:[#allocation5 + $0x798] sm:$0xff]
        %v3278 = vld [vmem:[#allocation5 + $0x7a0] sm:$0xff]
        %v3279 = vld [vmem:[#allocation5 + $0x7a8] sm:$0xff]
        %v3280 = vld [vmem:[#allocation5 + $0x7b0] sm:$0xff]
        %v3281 = vld [vmem:[#allocation5 + $0x7b8] sm:$0xff]
        %v3282 = vld [vmem:[#allocation5 + $0x7c0] sm:$0xff]
        %v3283 = vld [vmem:[#allocation5 + $0x7c8] sm:$0xff]
        %v3284 = vld [vmem:[#allocation5 + $0x7d0] sm:$0xff]
        %v3285 = vld [vmem:[#allocation5 + $0x7d8] sm:$0xff]
        %v3286 = vld [vmem:[#allocation5 + $0x7e0] sm:$0xff]
        %v3287 = vld [vmem:[#allocation5 + $0x7e8] sm:$0xff]
        %v3288 = vld [vmem:[#allocation5 + $0x7f0] sm:$0xff]
        %v3289 = vld [vmem:[#allocation5 + $0x7f8] sm:$0xff]
        %v3290 = vld [vmem:[#allocation5 + $0x800] sm:$0xff]
        %v3291 = vld [vmem:[#allocation5 + $0x808] sm:$0xff]
        %v3292 = vld [vmem:[#allocation5 + $0x810] sm:$0xff]
        %v3293 = vld [vmem:[#allocation5 + $0x818] sm:$0xff]
        %v3294 = vld [vmem:[#allocation5 + $0x820] sm:$0xff]
        %v3295 = vld [vmem:[#allocation5 + $0x828] sm:$0xff]
        %v3296 = vld [vmem:[#allocation5 + $0x830] sm:$0xff]
        %v3297 = vld [vmem:[#allocation5 + $0x838] sm:$0xff]
        %v3298 = vld [vmem:[#allocation5 + $0x840] sm:$0xff]
        %v3299 = vld [vmem:[#allocation5 + $0x848] sm:$0xff]
        %v3300 = vld [vmem:[#allocation5 + $0x850] sm:$0xff]
        %v3301 = vld [vmem:[#allocation5 + $0x858] sm:$0xff]
        %v3302 = vld [vmem:[#allocation5 + $0x860] sm:$0xff]
        %v3303 = vld [vmem:[#allocation5 + $0x868] sm:$0xff]
        %v3304 = vld [vmem:[#allocation5 + $0x870] sm:$0xff]
        %v3305 = vld [vmem:[#allocation5 + $0x878] sm:$0xff]
        %v3306 = vld [vmem:[#allocation5 + $0x880] sm:$0xff]
        %v3307 = vld [vmem:[#allocation5 + $0x888] sm:$0xff]
        %v3308 = vld [vmem:[#allocation5 + $0x890] sm:$0xff]
        %v3309 = vld [vmem:[#allocation5 + $0x898] sm:$0xff]
        %v3310 = vld [vmem:[#allocation5 + $0x8a0] sm:$0xff]
        %v3311 = vld [vmem:[#allocation5 + $0x8a8] sm:$0xff]
        %v3312 = vld [vmem:[#allocation5 + $0x8b0] sm:$0xff]
        %v3313 = vld [vmem:[#allocation5 + $0x8b8] sm:$0xff]
        %v3314 = vld [vmem:[#allocation5 + $0x8c0] sm:$0xff]
        %v3315 = vld [vmem:[#allocation5 + $0x8c8] sm:$0xff]
        %v3316 = vld [vmem:[#allocation5 + $0x8d0] sm:$0xff]
        %v3317 = vld [vmem:[#allocation5 + $0x8d8] sm:$0xff]
        %v3318 = vld [vmem:[#allocation5 + $0x8e0] sm:$0xff]
        %v3319 = vld [vmem:[#allocation5 + $0x8e8] sm:$0xff]
        %v3320 = vld [vmem:[#allocation5 + $0x8f0] sm:$0xff]
        %v3321 = vld [vmem:[#allocation5 + $0x8f8] sm:$0xff]
        %v3322 = vld [vmem:[#allocation6] sm:$0xff]
        %v3323 = vld [vmem:[#allocation6 + $0x8] sm:$0xff]
        %v3324 = vld [vmem:[#allocation6 + $0x10] sm:$0xff]
        %v3325 = vld [vmem:[#allocation6 + $0x18] sm:$0xff]
        %v3326 = vld [vmem:[#allocation6 + $0x20] sm:$0xff]
        %v3327 = vld [vmem:[#allocation6 + $0x28] sm:$0xff]
        %v3328 = vld [vmem:[#allocation6 + $0x30] sm:$0xff]
        %v3329 = vld [vmem:[#allocation6 + $0x38] sm:$0xff]
        %v3330 = vld [vmem:[#allocation6 + $0x40] sm:$0xff]
        %v3331 = vld [vmem:[#allocation6 + $0x48] sm:$0xff]
        %v3332 = vld [vmem:[#allocation6 + $0x50] sm:$0xff]
        %v3333 = vld [vmem:[#allocation6 + $0x58] sm:$0xff]
        %v3334 = vld [vmem:[#allocation6 + $0x60] sm:$0xff]
        %v3335 = vld [vmem:[#allocation6 + $0x68] sm:$0xff]
        %v3336 = vld [vmem:[#allocation6 + $0x70] sm:$0xff]
        %v3337 = vld [vmem:[#allocation6 + $0x78] sm:$0xff]
        %v3338 = vld [vmem:[#allocation6 + $0x80] sm:$0xff]
        %v3339 = vld [vmem:[#allocation6 + $0x88] sm:$0xff]
        %v3340 = vld [vmem:[#allocation6 + $0x90] sm:$0xff]
        %v3341 = vld [vmem:[#allocation6 + $0x98] sm:$0xff]
        %v3342 = vld [vmem:[#allocation6 + $0xa0] sm:$0xff]
        %v3343 = vld [vmem:[#allocation6 + $0xa8] sm:$0xff]
        %v3344 = vld [vmem:[#allocation6 + $0xb0] sm:$0xff]
        %v3345 = vld [vmem:[#allocation6 + $0xb8] sm:$0xff]
        %v3346 = vld [vmem:[#allocation6 + $0xc0] sm:$0xff]
        %v3347 = vld [vmem:[#allocation6 + $0xc8] sm:$0xff]
        %v3348 = vld [vmem:[#allocation6 + $0xd0] sm:$0xff]
        %v3349 = vld [vmem:[#allocation6 + $0xd8] sm:$0xff]
        %v3350 = vld [vmem:[#allocation6 + $0xe0] sm:$0xff]
        %v3351 = vld [vmem:[#allocation6 + $0xe8] sm:$0xff]
        %v3352 = vld [vmem:[#allocation6 + $0xf0] sm:$0xff]
        %v3353 = vld [vmem:[#allocation6 + $0xf8] sm:$0xff]
        %v3354 = vld [vmem:[#allocation6 + $0x100] sm:$0xff]
        %v3355 = vld [vmem:[#allocation6 + $0x108] sm:$0xff]
        %v3356 = vld [vmem:[#allocation6 + $0x110] sm:$0xff]
        %v3357 = vld [vmem:[#allocation6 + $0x118] sm:$0xff]
        %v3358 = vld [vmem:[#allocation6 + $0x120] sm:$0xff]
        %v3359 = vld [vmem:[#allocation6 + $0x128] sm:$0xff]
        %v3360 = vld [vmem:[#allocation6 + $0x130] sm:$0xff]
        %v3361 = vld [vmem:[#allocation6 + $0x138] sm:$0xff]
        %v3362 = vld [vmem:[#allocation6 + $0x140] sm:$0xff]
        %v3363 = vld [vmem:[#allocation6 + $0x148] sm:$0xff]
        %v3364 = vld [vmem:[#allocation6 + $0x150] sm:$0xff]
        %v3365 = vld [vmem:[#allocation6 + $0x158] sm:$0xff]
        %v3366 = vld [vmem:[#allocation6 + $0x160] sm:$0xff]
        %v3367 = vld [vmem:[#allocation6 + $0x168] sm:$0xff]
        %v3368 = vld [vmem:[#allocation6 + $0x170] sm:$0xff]
        %v3369 = vld [vmem:[#allocation6 + $0x178] sm:$0xff]
        %v3370 = vld [vmem:[#allocation6 + $0x180] sm:$0xff]
        %v3371 = vld [vmem:[#allocation6 + $0x188] sm:$0xff]
        %v3372 = vld [vmem:[#allocation6 + $0x190] sm:$0xff]
        %v3373 = vld [vmem:[#allocation6 + $0x198] sm:$0xff]
        %v3374 = vld [vmem:[#allocation6 + $0x1a0] sm:$0xff]
        %v3375 = vld [vmem:[#allocation6 + $0x1a8] sm:$0xff]
        %v3376 = vld [vmem:[#allocation6 + $0x1b0] sm:$0xff]
        %v3377 = vld [vmem:[#allocation6 + $0x1b8] sm:$0xff]
        %v3378 = vld [vmem:[#allocation6 + $0x1c0] sm:$0xff]
        %v3379 = vld [vmem:[#allocation6 + $0x1c8] sm:$0xff]
        %v3380 = vld [vmem:[#allocation6 + $0x1d0] sm:$0xff]
        %v3381 = vld [vmem:[#allocation6 + $0x1d8] sm:$0xff]
        %v3382 = vld [vmem:[#allocation6 + $0x1e0] sm:$0xff]
        %v3383 = vld [vmem:[#allocation6 + $0x1e8] sm:$0xff]
        %v3384 = vld [vmem:[#allocation6 + $0x1f0] sm:$0xff]
        %v3385 = vld [vmem:[#allocation6 + $0x1f8] sm:$0xff]
        %v3386 = vld [vmem:[#allocation6 + $0x200] sm:$0xff]
        %v3387 = vld [vmem:[#allocation6 + $0x208] sm:$0xff]
        %v3388 = vld [vmem:[#allocation6 + $0x210] sm:$0xff]
        %v3389 = vld [vmem:[#allocation6 + $0x218] sm:$0xff]
        %v3390 = vld [vmem:[#allocation6 + $0x220] sm:$0xff]
        %v3391 = vld [vmem:[#allocation6 + $0x228] sm:$0xff]
        %v3392 = vld [vmem:[#allocation6 + $0x230] sm:$0xff]
        %v3393 = vld [vmem:[#allocation6 + $0x238] sm:$0xff]
        %v3394 = vld [vmem:[#allocation6 + $0x240] sm:$0xff]
        %v3395 = vld [vmem:[#allocation6 + $0x248] sm:$0xff]
        %v3396 = vld [vmem:[#allocation6 + $0x250] sm:$0xff]
        %v3397 = vld [vmem:[#allocation6 + $0x258] sm:$0xff]
        %v3398 = vld [vmem:[#allocation6 + $0x260] sm:$0xff]
        %v3399 = vld [vmem:[#allocation6 + $0x268] sm:$0xff]
        %v3400 = vld [vmem:[#allocation6 + $0x270] sm:$0xff]
        %v3401 = vld [vmem:[#allocation6 + $0x278] sm:$0xff]
        %v3402 = vld [vmem:[#allocation6 + $0x280] sm:$0xff]
        %v3403 = vld [vmem:[#allocation6 + $0x288] sm:$0xff]
        %v3404 = vld [vmem:[#allocation6 + $0x290] sm:$0xff]
        %v3405 = vld [vmem:[#allocation6 + $0x298] sm:$0xff]
        %v3406 = vld [vmem:[#allocation6 + $0x2a0] sm:$0xff]
        %v3407 = vld [vmem:[#allocation6 + $0x2a8] sm:$0xff]
        %v3408 = vld [vmem:[#allocation6 + $0x2b0] sm:$0xff]
        %v3409 = vld [vmem:[#allocation6 + $0x2b8] sm:$0xff]
        %v3410 = vld [vmem:[#allocation6 + $0x2c0] sm:$0xff]
        %v3411 = vld [vmem:[#allocation6 + $0x2c8] sm:$0xff]
        %v3412 = vld [vmem:[#allocation6 + $0x2d0] sm:$0xff]
        %v3413 = vld [vmem:[#allocation6 + $0x2d8] sm:$0xff]
        %v3414 = vld [vmem:[#allocation6 + $0x2e0] sm:$0xff]
        %v3415 = vld [vmem:[#allocation6 + $0x2e8] sm:$0xff]
        %v3416 = vld [vmem:[#allocation6 + $0x2f0] sm:$0xff]
        %v3417 = vld [vmem:[#allocation6 + $0x2f8] sm:$0xff]
        %v3418 = vld [vmem:[#allocation6 + $0x300] sm:$0xff]
        %v3419 = vld [vmem:[#allocation6 + $0x308] sm:$0xff]
        %v3420 = vld [vmem:[#allocation6 + $0x310] sm:$0xff]
        %v3421 = vld [vmem:[#allocation6 + $0x318] sm:$0xff]
        %v3422 = vld [vmem:[#allocation6 + $0x320] sm:$0xff]
        %v3423 = vld [vmem:[#allocation6 + $0x328] sm:$0xff]
        %v3424 = vld [vmem:[#allocation6 + $0x330] sm:$0xff]
        %v3425 = vld [vmem:[#allocation6 + $0x338] sm:$0xff]
        %v3426 = vld [vmem:[#allocation6 + $0x340] sm:$0xff]
        %v3427 = vld [vmem:[#allocation6 + $0x348] sm:$0xff]
        %v3428 = vld [vmem:[#allocation6 + $0x350] sm:$0xff]
        %v3429 = vld [vmem:[#allocation6 + $0x358] sm:$0xff]
        %v3430 = vld [vmem:[#allocation6 + $0x360] sm:$0xff]
        %v3431 = vld [vmem:[#allocation6 + $0x368] sm:$0xff]
        %v3432 = vld [vmem:[#allocation6 + $0x370] sm:$0xff]
        %v3433 = vld [vmem:[#allocation6 + $0x378] sm:$0xff]
        %v3434 = vld [vmem:[#allocation6 + $0x380] sm:$0xff]
        %v3435 = vld [vmem:[#allocation6 + $0x388] sm:$0xff]
        %v3436 = vld [vmem:[#allocation6 + $0x390] sm:$0xff]
        %v3437 = vld [vmem:[#allocation6 + $0x398] sm:$0xff]
        %v3438 = vld [vmem:[#allocation6 + $0x3a0] sm:$0xff]
        %v3439 = vld [vmem:[#allocation6 + $0x3a8] sm:$0xff]
        %v3440 = vld [vmem:[#allocation6 + $0x3b0] sm:$0xff]
        %v3441 = vld [vmem:[#allocation6 + $0x3b8] sm:$0xff]
        %v3442 = vld [vmem:[#allocation6 + $0x3c0] sm:$0xff]
        %v3443 = vld [vmem:[#allocation6 + $0x3c8] sm:$0xff]
        %v3444 = vld [vmem:[#allocation6 + $0x3d0] sm:$0xff]
        %v3445 = vld [vmem:[#allocation6 + $0x3d8] sm:$0xff]
        %v3446 = vld [vmem:[#allocation6 + $0x3e0] sm:$0xff]
        %v3447 = vld [vmem:[#allocation6 + $0x3e8] sm:$0xff]
        %v3448 = vld [vmem:[#allocation6 + $0x3f0] sm:$0xff]
        %v3449 = vld [vmem:[#allocation6 + $0x3f8] sm:$0xff]
        %v3450 = vld [vmem:[#allocation6 + $0x400] sm:$0xff]
        %v3451 = vld [vmem:[#allocation6 + $0x408] sm:$0xff]
        %v3452 = vld [vmem:[#allocation6 + $0x410] sm:$0xff]
        %v3453 = vld [vmem:[#allocation6 + $0x418] sm:$0xff]
        %v3454 = vld [vmem:[#allocation6 + $0x420] sm:$0xff]
        %v3455 = vld [vmem:[#allocation6 + $0x428] sm:$0xff]
        %v3456 = vld [vmem:[#allocation6 + $0x430] sm:$0xff]
        %v3457 = vld [vmem:[#allocation6 + $0x438] sm:$0xff]
        %v3458 = vld [vmem:[#allocation6 + $0x440] sm:$0xff]
        %v3459 = vld [vmem:[#allocation6 + $0x448] sm:$0xff]
        %v3460 = vld [vmem:[#allocation6 + $0x450] sm:$0xff]
        %v3461 = vld [vmem:[#allocation6 + $0x458] sm:$0xff]
        %v3462 = vld [vmem:[#allocation6 + $0x460] sm:$0xff]
        %v3463 = vld [vmem:[#allocation6 + $0x468] sm:$0xff]
        %v3464 = vld [vmem:[#allocation6 + $0x470] sm:$0xff]
        %v3465 = vld [vmem:[#allocation6 + $0x478] sm:$0xff]
        %v3466 = vld [vmem:[%s4] sm:$0x1]
        %v3468 = vlaneseq
        %v3469 = vshrl.u32 %v3468, 7
        %v3470 = vsub.s32 0, %v3469
        %v3471 = vrot.slane %v3466, %v3470
        %3473 = vmatprep.subr.mxu0 0.0
        %3474 = vmatpush1.msra.mxu0 %v3322
        %3475 = vmatprep.subr.mxu0 0.0
        %3476 = vmatpush1.msra.mxu0 %v3323
        %3477 = vmatprep.subr.mxu0 0.0
        %3478 = vmatpush1.msra.mxu0 %v3324
        %3479 = vmatprep.subr.mxu0 0.0
        %3480 = vmatpush1.msra.mxu0 %v3325
        %3481 = vmatprep.subr.mxu0 0.0
        %3482 = vmatpush1.msra.mxu0 %v3326
        %3483 = vmatprep.subr.mxu0 0.0
        %3484 = vmatpush1.msra.mxu0 %v3327
        %3485 = vmatprep.subr.mxu0 0.0
        %3486 = vmatpush1.msra.mxu0 %v3328
        %3487 = vmatprep.subr.mxu0 0.0
        %3488 = vmatpush1.msra.mxu0 %v3329
        %3489 = vmatprep.subr.mxu0 0.0
        %3490 = vmatpush1.msra.mxu0 %v3330
        %3491 = vmatprep.subr.mxu0 0.0
        %3492 = vmatpush1.msra.mxu0 %v3331
        %3493 = vmatprep.subr.mxu0 0.0
        %3494 = vmatpush1.msra.mxu0 %v3332
        %3495 = vmatprep.subr.mxu0 0.0
        %3496 = vmatpush1.msra.mxu0 %v3333
        %3497 = vmatprep.subr.mxu0 0.0
        %3498 = vmatpush1.msra.mxu0 %v3334
        %3499 = vmatprep.subr.mxu0 0.0
        %3500 = vmatpush1.msra.mxu0 %v3335
        %3501 = vmatprep.subr.mxu0 0.0
        %3502 = vmatpush1.msra.mxu0 %v3336
        %3503 = vmatprep.subr.mxu0 0.0
        %3504 = vmatpush1.msra.mxu0 %v3337
        %3505 = vmatprep.subr.mxu0 0.0
        %3506 = vmatpush1.msra.mxu0 %v3338
        %3507 = vmatprep.subr.mxu0 0.0
        %3508 = vmatpush1.msra.mxu0 %v3339
        %3509 = vmatprep.subr.mxu0 0.0
        %3510 = vmatpush1.msra.mxu0 %v3340
        %3511 = vmatprep.subr.mxu0 0.0
        %3512 = vmatpush1.msra.mxu0 %v3341
        %3513 = vmatprep.subr.mxu0 0.0
        %3514 = vmatpush1.msra.mxu0 %v3342
        %3515 = vmatprep.subr.mxu0 0.0
        %3516 = vmatpush1.msra.mxu0 %v3343
        %3517 = vmatprep.subr.mxu0 0.0
        %3518 = vmatpush1.msra.mxu0 %v3344
        %3519 = vmatprep.subr.mxu0 0.0
        %3520 = vmatpush1.msra.mxu0 %v3345
        %3521 = vmatprep.subr.mxu0 0.0
        %3522 = vmatpush1.msra.mxu0 %v3346
        %3523 = vmatprep.subr.mxu0 0.0
        %3524 = vmatpush1.msra.mxu0 %v3347
        %3525 = vmatprep.subr.mxu0 0.0
        %3526 = vmatpush1.msra.mxu0 %v3348
        %3527 = vmatprep.subr.mxu0 0.0
        %3528 = vmatpush1.msra.mxu0 %v3349
        %3529 = vmatprep.subr.mxu0 0.0
        %3530 = vmatpush1.msra.mxu0 %v3350
        %3531 = vmatprep.subr.mxu0 0.0
        %3532 = vmatpush1.msra.mxu0 %v3351
        %3533 = vmatprep.subr.mxu0 0.0
        %3534 = vmatpush1.msra.mxu0 %v3352
        %3535 = vmatprep.subr.mxu0 0.0
        %3536 = vmatpush1.msra.mxu0 %v3353
        %3537 = vmatprep.mubr.f32.mxu0 %v3035
        %3538 = vmatmul.mubr.f32.gmra.mrb[0].mxu0 %v3034
        %v3539 = vpop.f32.mrb[0].mxu0
        %v3540 = vadd.f32 %v3471, %v3539
        %v3541 = vpop.f32.mrb[0].mxu0
        %3542 = vmatprep.mubr.f32.mxu0 %v3044
        %3543 = vmatmul.mubr.f32.gmra.mrb[0].mxu0 %v3043
        %v3544 = vpop.f32.mrb[0].mxu0
        %v3545 = vadd.f32 %v3471, %v3544
        %v3546 = vpop.f32.mrb[0].mxu0
        %3547 = vmatprep.mubr.f32.mxu0 %v3053
        %3548 = vmatmul.mubr.f32.gmra.mrb[0].mxu0 %v3052
        %v3549 = vpop.f32.mrb[0].mxu0
        %v3550 = vadd.f32 %v3471, %v3549
        %v3551 = vpop.f32.mrb[0].mxu0
        %3552 = vmatprep.mubr.f32.mxu0 %v3062
        %3553 = vmatmul.mubr.f32.gmra.mrb[0].mxu0 %v3061
        %v3554 = vpop.f32.mrb[0].mxu0
        %v3555 = vadd.f32 %v3471, %v3554
        %v3556 = vpop.f32.mrb[0].mxu0
        %3557 = vmatprep.mubr.f32.mxu0 %v3071
        %3558 = vmatmul.mubr.f32.gmra.mrb[0].mxu0 %v3070
        %v3559 = vpop.f32.mrb[0].mxu0
        %v3560 = vadd.f32 %v3471, %v3559
        %v3561 = vpop.f32.mrb[0].mxu0
        %3562 = vmatprep.mubr.f32.mxu0 %v3080
        %3563 = vmatmul.mubr.f32.gmra.mrb[0].mxu0 %v3079
        %v3564 = vpop.f32.mrb[0].mxu0
        %v3565 = vadd.f32 %v3471, %v3564
        %v3566 = vpop.f32.mrb[0].mxu0
        %3567 = vmatprep.mubr.f32.mxu0 %v3089
        %3568 = vmatmul.mubr.f32.gmra.mrb[0].mxu0 %v3088
        %v3569 = vpop.f32.mrb[0].mxu0
        %v3570 = vadd.f32 %v3471, %v3569
        %v3571 = vpop.f32.mrb[0].mxu0
        %3572 = vmatprep.mubr.f32.mxu0 %v3098
        %3573 = vmatmul.mubr.f32.gmra.mrb[0].mxu0 %v3097
        %v3574 = vpop.f32.mrb[0].mxu0
        %v3575 = vadd.f32 %v3471, %v3574
        %v3576 = vpop.f32.mrb[0].mxu0
        %3577 = vmatprep.mubr.f32.mxu0 %v3107
        %3578 = vmatmul.mubr.f32.gmra.mrb[0].mxu0 %v3106
        %v3579 = vpop.f32.mrb[0].mxu0
        %v3580 = vadd.f32 %v3471, %v3579
        %v3581 = vpop.f32.mrb[0].mxu0
        %3582 = vmatprep.mubr.f32.mxu0 %v3116
        %3583 = vmatmul.mubr.f32.gmra.mrb[0].mxu0 %v3115
        %v3584 = vpop.f32.mrb[0].mxu0
        %v3585 = vadd.f32 %v3471, %v3584
        %v3586 = vpop.f32.mrb[0].mxu0
        %3587 = vmatprep.mubr.f32.mxu0 %v3125
        %3588 = vmatmul.mubr.f32.gmra.mrb[0].mxu0 %v3124
        %v3589 = vpop.f32.mrb[0].mxu0
        %v3590 = vadd.f32 %v3471, %v3589
        %v3591 = vpop.f32.mrb[0].mxu0
        %3592 = vmatprep.mubr.f32.mxu0 %v3134
        %3593 = vmatmul.mubr.f32.gmra.mrb[0].mxu0 %v3133
        %v3594 = vpop.f32.mrb[0].mxu0
        %v3595 = vadd.f32 %v3471, %v3594
        %v3596 = vpop.f32.mrb[0].mxu0
        %3597 = vmatprep.mubr.f32.mxu0 %v3143
        %3598 = vmatmul.mubr.f32.gmra.mrb[0].mxu0 %v3142
        %v3599 = vpop.f32.mrb[0].mxu0
        %v3600 = vadd.f32 %v3471, %v3599
        %v3601 = vpop.f32.mrb[0].mxu0
        %3602 = vmatprep.mubr.f32.mxu0 %v3152
        %3603 = vmatmul.mubr.f32.gmra.mrb[0].mxu0 %v3151
        %v3604 = vpop.f32.mrb[0].mxu0
        %v3605 = vadd.f32 %v3471, %v3604
        %v3606 = vpop.f32.mrb[0].mxu0
        %3607 = vmatprep.mubr.f32.mxu0 %v3161
        %3608 = vmatmul.mubr.f32.gmra.mrb[0].mxu0 %v3160
        %v3609 = vpop.f32.mrb[0].mxu0
        %v3610 = vadd.f32 %v3471, %v3609
        %v3611 = vpop.f32.mrb[0].mxu0
        %3612 = vmatprep.mubr.f32.mxu0 %v3170
        %3613 = vmatmul.mubr.f32.gmra.mrb[0].mxu0 %v3169
        %v3614 = vpop.f32.mrb[0].mxu0
        %v3615 = vadd.f32 %v3471, %v3614
        %v3616 = vpop.f32.mrb[0].mxu0
        %3617 = vmatprep.mubr.f32.mxu0 %v3179
        %3618 = vmatmul.mubr.f32.gmra.mrb[0].mxu0 %v3178
        %v3619 = vpop.f32.mrb[0].mxu0
        %v3620 = vadd.f32 %v3471, %v3619
        %v3621 = vpop.f32.mrb[0].mxu0
        %3622 = vmatprep.mubr.f32.mxu0 %v3188
        %3623 = vmatmul.mubr.f32.gmra.mrb[0].mxu0 %v3187
        %v3624 = vpop.f32.mrb[0].mxu0
        %v3625 = vadd.f32 %v3471, %v3624
        %v3626 = vpop.f32.mrb[0].mxu0
        %3627 = vmatprep.mubr.f32.mxu0 %v3197
        %3628 = vmatmul.mubr.f32.gmra.mrb[0].mxu0 %v3196
        %v3629 = vpop.f32.mrb[0].mxu0
        %v3630 = vadd.f32 %v3471, %v3629
        %v3631 = vpop.f32.mrb[0].mxu0
        %3632 = vmatprep.mubr.f32.mxu0 %v3206
        %3633 = vmatmul.mubr.f32.gmra.mrb[0].mxu0 %v3205
        %v3634 = vpop.f32.mrb[0].mxu0
        %v3635 = vadd.f32 %v3471, %v3634
        %v3636 = vpop.f32.mrb[0].mxu0
        %3637 = vmatprep.mubr.f32.mxu0 %v3215
        %3638 = vmatmul.mubr.f32.gmra.mrb[0].mxu0 %v3214
        %v3639 = vpop.f32.mrb[0].mxu0
        %v3640 = vadd.f32 %v3471, %v3639
        %v3641 = vpop.f32.mrb[0].mxu0
        %3642 = vmatprep.mubr.f32.mxu0 %v3224
        %3643 = vmatmul.mubr.f32.gmra.mrb[0].mxu0 %v3223
        %v3644 = vpop.f32.mrb[0].mxu0
        %v3645 = vadd.f32 %v3471, %v3644
        %v3646 = vpop.f32.mrb[0].mxu0
        %3647 = vmatprep.mubr.f32.mxu0 %v3233
        %3648 = vmatmul.mubr.f32.gmra.mrb[0].mxu0 %v3232
        %v3649 = vpop.f32.mrb[0].mxu0
        %v3650 = vadd.f32 %v3471, %v3649
        %v3651 = vpop.f32.mrb[0].mxu0
        %3652 = vmatprep.mubr.f32.mxu0 %v3242
        %3653 = vmatmul.mubr.f32.gmra.mrb[0].mxu0 %v3241
        %v3654 = vpop.f32.mrb[0].mxu0
        %v3655 = vadd.f32 %v3471, %v3654
        %v3656 = vpop.f32.mrb[0].mxu0
        %3657 = vmatprep.mubr.f32.mxu0 %v3251
        %3658 = vmatmul.mubr.f32.gmra.mrb[0].mxu0 %v3250
        %v3659 = vpop.f32.mrb[0].mxu0
        %v3660 = vadd.f32 %v3471, %v3659
        %v3661 = vpop.f32.mrb[0].mxu0
        %3662 = vmatprep.mubr.f32.mxu0 %v3260
        %3663 = vmatmul.mubr.f32.gmra.mrb[0].mxu0 %v3259
        %v3664 = vpop.f32.mrb[0].mxu0
        %v3665 = vadd.f32 %v3471, %v3664
        %v3666 = vpop.f32.mrb[0].mxu0
        %3667 = vmatprep.mubr.f32.mxu0 %v3269
        %3668 = vmatmul.mubr.f32.gmra.mrb[0].mxu0 %v3268
        %v3669 = vpop.f32.mrb[0].mxu0
        %v3670 = vadd.f32 %v3471, %v3669
        %v3671 = vpop.f32.mrb[0].mxu0
        %3672 = vmatprep.mubr.f32.mxu0 %v3278
        %3673 = vmatmul.mubr.f32.gmra.mrb[0].mxu0 %v3277
        %v3674 = vpop.f32.mrb[0].mxu0
        %v3675 = vadd.f32 %v3471, %v3674
        %v3676 = vpop.f32.mrb[0].mxu0
        %3677 = vmatprep.mubr.f32.mxu0 %v3287
        %3678 = vmatmul.mubr.f32.gmra.mrb[0].mxu0 %v3286
        %v3679 = vpop.f32.mrb[0].mxu0
        %v3680 = vadd.f32 %v3471, %v3679
        %v3681 = vpop.f32.mrb[0].mxu0
        %3682 = vmatprep.mubr.f32.mxu0 %v3296
        %3683 = vmatmul.mubr.f32.gmra.mrb[0].mxu0 %v3295
        %v3684 = vpop.f32.mrb[0].mxu0
        %v3685 = vadd.f32 %v3471, %v3684
        %v3686 = vpop.f32.mrb[0].mxu0
        %3687 = vmatprep.mubr.f32.mxu0 %v3305
        %3688 = vmatmul.mubr.f32.gmra.mrb[0].mxu0 %v3304
        %v3689 = vpop.f32.mrb[0].mxu0
        %v3690 = vadd.f32 %v3471, %v3689
        %v3691 = vpop.f32.mrb[0].mxu0
        %3692 = vmatprep.mubr.f32.mxu0 %v3314
        %3693 = vmatmul.mubr.f32.gmra.mrb[0].mxu0 %v3313
        %v3694 = vpop.f32.mrb[0].mxu0
        %v3695 = vadd.f32 %v3471, %v3694
        %v3696 = vpop.f32.mrb[0].mxu0
        %3697 = vdwg.mxu0
        %3698 = vmatprep.subr.mxu0 0.0
        %3699 = vmatpush1.msra.mxu0 %v3354
        %3700 = vmatprep.subr.mxu0 0.0
        %3701 = vmatpush1.msra.mxu0 %v3355
        %3702 = vmatprep.subr.mxu0 0.0
        %3703 = vmatpush1.msra.mxu0 %v3356
        %3704 = vmatprep.subr.mxu0 0.0
        %3705 = vmatpush1.msra.mxu0 %v3357
        %3706 = vmatprep.subr.mxu0 0.0
        %3707 = vmatpush1.msra.mxu0 %v3358
        %3708 = vmatprep.subr.mxu0 0.0
        %3709 = vmatpush1.msra.mxu0 %v3359
        %3710 = vmatprep.subr.mxu0 0.0
        %3711 = vmatpush1.msra.mxu0 %v3360
        %3712 = vmatprep.subr.mxu0 0.0
        %3713 = vmatpush1.msra.mxu0 %v3361
        %3714 = vmatprep.subr.mxu0 0.0
        %3715 = vmatpush1.msra.mxu0 %v3362
        %3716 = vmatprep.subr.mxu0 0.0
        %3717 = vmatpush1.msra.mxu0 %v3363
        %3718 = vmatprep.subr.mxu0 0.0
        %3719 = vmatpush1.msra.mxu0 %v3364
        %3720 = vmatprep.subr.mxu0 0.0
        %3721 = vmatpush1.msra.mxu0 %v3365
        %3722 = vmatprep.subr.mxu0 0.0
        %3723 = vmatpush1.msra.mxu0 %v3366
        %3724 = vmatprep.subr.mxu0 0.0
        %3725 = vmatpush1.msra.mxu0 %v3367
        %3726 = vmatprep.subr.mxu0 0.0
        %3727 = vmatpush1.msra.mxu0 %v3368
        %3728 = vmatprep.subr.mxu0 0.0
        %3729 = vmatpush1.msra.mxu0 %v3369
        %3730 = vmatprep.subr.mxu0 0.0
        %3731 = vmatpush1.msra.mxu0 %v3370
        %3732 = vmatprep.subr.mxu0 0.0
        %3733 = vmatpush1.msra.mxu0 %v3371
        %3734 = vmatprep.subr.mxu0 0.0
        %3735 = vmatpush1.msra.mxu0 %v3372
        %3736 = vmatprep.subr.mxu0 0.0
        %3737 = vmatpush1.msra.mxu0 %v3373
        %3738 = vmatprep.subr.mxu0 0.0
        %3739 = vmatpush1.msra.mxu0 %v3374
        %3740 = vmatprep.subr.mxu0 0.0
        %3741 = vmatpush1.msra.mxu0 %v3375
        %3742 = vmatprep.subr.mxu0 0.0
        %3743 = vmatpush1.msra.mxu0 %v3376
        %3744 = vmatprep.subr.mxu0 0.0
        %3745 = vmatpush1.msra.mxu0 %v3377
        %3746 = vmatprep.subr.mxu0 0.0
        %3747 = vmatpush1.msra.mxu0 %v3378
        %3748 = vmatprep.subr.mxu0 0.0
        %3749 = vmatpush1.msra.mxu0 %v3379
        %3750 = vmatprep.subr.mxu0 0.0
        %3751 = vmatpush1.msra.mxu0 %v3380
        %3752 = vmatprep.subr.mxu0 0.0
        %3753 = vmatpush1.msra.mxu0 %v3381
        %3754 = vmatprep.subr.mxu0 0.0
        %3755 = vmatpush1.msra.mxu0 %v3382
        %3756 = vmatprep.subr.mxu0 0.0
        %3757 = vmatpush1.msra.mxu0 %v3383
        %3758 = vmatprep.subr.mxu0 0.0
        %3759 = vmatpush1.msra.mxu0 %v3384
        %3760 = vmatprep.subr.mxu0 0.0
        %3761 = vmatpush1.msra.mxu0 %v3385
        %3762 = vmatprep.mubr.f32.mxu0 %v3037
        %3763 = vmatmul.mubr.f32.gmra.mrb[0].mxu0 %v3036
        %v3764 = vpop.f32.mrb[0].mxu0
        %v3765 = vadd.f32 %v3540, %v3764
        %v3766 = vpop.f32.mrb[0].mxu0
        %3767 = vmatprep.mubr.f32.mxu0 %v3046
        %3768 = vmatmul.mubr.f32.gmra.mrb[0].mxu0 %v3045
        %v3769 = vpop.f32.mrb[0].mxu0
        %v3770 = vadd.f32 %v3545, %v3769
        %v3771 = vpop.f32.mrb[0].mxu0
        %3772 = vmatprep.mubr.f32.mxu0 %v3055
        %3773 = vmatmul.mubr.f32.gmra.mrb[0].mxu0 %v3054
        %v3774 = vpop.f32.mrb[0].mxu0
        %v3775 = vadd.f32 %v3550, %v3774
        %v3776 = vpop.f32.mrb[0].mxu0
        %3777 = vmatprep.mubr.f32.mxu0 %v3064
        %3778 = vmatmul.mubr.f32.gmra.mrb[0].mxu0 %v3063
        %v3779 = vpop.f32.mrb[0].mxu0
        %v3780 = vadd.f32 %v3555, %v3779
        %v3781 = vpop.f32.mrb[0].mxu0
        %3782 = vmatprep.mubr.f32.mxu0 %v3073
        %3783 = vmatmul.mubr.f32.gmra.mrb[0].mxu0 %v3072
        %v3784 = vpop.f32.mrb[0].mxu0
        %v3785 = vadd.f32 %v3560, %v3784
        %v3786 = vpop.f32.mrb[0].mxu0
        %3787 = vmatprep.mubr.f32.mxu0 %v3082
        %3788 = vmatmul.mubr.f32.gmra.mrb[0].mxu0 %v3081
        %v3789 = vpop.f32.mrb[0].mxu0
        %v3790 = vadd.f32 %v3565, %v3789
        %v3791 = vpop.f32.mrb[0].mxu0
        %3792 = vmatprep.mubr.f32.mxu0 %v3091
        %3793 = vmatmul.mubr.f32.gmra.mrb[0].mxu0 %v3090
        %v3794 = vpop.f32.mrb[0].mxu0
        %v3795 = vadd.f32 %v3570, %v3794
        %v3796 = vpop.f32.mrb[0].mxu0
        %3797 = vmatprep.mubr.f32.mxu0 %v3100
        %3798 = vmatmul.mubr.f32.gmra.mrb[0].mxu0 %v3099
        %v3799 = vpop.f32.mrb[0].mxu0
        %v3800 = vadd.f32 %v3575, %v3799
        %v3801 = vpop.f32.mrb[0].mxu0
        %3802 = vmatprep.mubr.f32.mxu0 %v3109
        %3803 = vmatmul.mubr.f32.gmra.mrb[0].mxu0 %v3108
        %v3804 = vpop.f32.mrb[0].mxu0
        %v3805 = vadd.f32 %v3580, %v3804
        %v3806 = vpop.f32.mrb[0].mxu0
        %3807 = vmatprep.mubr.f32.mxu0 %v3118
        %3808 = vmatmul.mubr.f32.gmra.mrb[0].mxu0 %v3117
        %v3809 = vpop.f32.mrb[0].mxu0
        %v3810 = vadd.f32 %v3585, %v3809
        %v3811 = vpop.f32.mrb[0].mxu0
        %3812 = vmatprep.mubr.f32.mxu0 %v3127
        %3813 = vmatmul.mubr.f32.gmra.mrb[0].mxu0 %v3126
        %v3814 = vpop.f32.mrb[0].mxu0
        %v3815 = vadd.f32 %v3590, %v3814
        %v3816 = vpop.f32.mrb[0].mxu0
        %3817 = vmatprep.mubr.f32.mxu0 %v3136
        %3818 = vmatmul.mubr.f32.gmra.mrb[0].mxu0 %v3135
        %v3819 = vpop.f32.mrb[0].mxu0
        %v3820 = vadd.f32 %v3595, %v3819
        %v3821 = vpop.f32.mrb[0].mxu0
        %3822 = vmatprep.mubr.f32.mxu0 %v3145
        %3823 = vmatmul.mubr.f32.gmra.mrb[0].mxu0 %v3144
        %v3824 = vpop.f32.mrb[0].mxu0
        %v3825 = vadd.f32 %v3600, %v3824
        %v3826 = vpop.f32.mrb[0].mxu0
        %3827 = vmatprep.mubr.f32.mxu0 %v3154
        %3828 = vmatmul.mubr.f32.gmra.mrb[0].mxu0 %v3153
        %v3829 = vpop.f32.mrb[0].mxu0
        %v3830 = vadd.f32 %v3605, %v3829
        %v3831 = vpop.f32.mrb[0].mxu0
        %3832 = vmatprep.mubr.f32.mxu0 %v3163
        %3833 = vmatmul.mubr.f32.gmra.mrb[0].mxu0 %v3162
        %v3834 = vpop.f32.mrb[0].mxu0
        %v3835 = vadd.f32 %v3610, %v3834
        %v3836 = vpop.f32.mrb[0].mxu0
        %3837 = vmatprep.mubr.f32.mxu0 %v3172
        %3838 = vmatmul.mubr.f32.gmra.mrb[0].mxu0 %v3171
        %v3839 = vpop.f32.mrb[0].mxu0
        %v3840 = vadd.f32 %v3615, %v3839
        %v3841 = vpop.f32.mrb[0].mxu0
        %3842 = vmatprep.mubr.f32.mxu0 %v3181
        %3843 = vmatmul.mubr.f32.gmra.mrb[0].mxu0 %v3180
        %v3844 = vpop.f32.mrb[0].mxu0
        %v3845 = vadd.f32 %v3620, %v3844
        %v3846 = vpop.f32.mrb[0].mxu0
        %3847 = vmatprep.mubr.f32.mxu0 %v3190
        %3848 = vmatmul.mubr.f32.gmra.mrb[0].mxu0 %v3189
        %v3849 = vpop.f32.mrb[0].mxu0
        %v3850 = vadd.f32 %v3625, %v3849
        %v3851 = vpop.f32.mrb[0].mxu0
        %3852 = vmatprep.mubr.f32.mxu0 %v3199
        %3853 = vmatmul.mubr.f32.gmra.mrb[0].mxu0 %v3198
        %v3854 = vpop.f32.mrb[0].mxu0
        %v3855 = vadd.f32 %v3630, %v3854
        %v3856 = vpop.f32.mrb[0].mxu0
        %3857 = vmatprep.mubr.f32.mxu0 %v3208
        %3858 = vmatmul.mubr.f32.gmra.mrb[0].mxu0 %v3207
        %v3859 = vpop.f32.mrb[0].mxu0
        %v3860 = vadd.f32 %v3635, %v3859
        %v3861 = vpop.f32.mrb[0].mxu0
        %3862 = vmatprep.mubr.f32.mxu0 %v3217
        %3863 = vmatmul.mubr.f32.gmra.mrb[0].mxu0 %v3216
        %v3864 = vpop.f32.mrb[0].mxu0
        %v3865 = vadd.f32 %v3640, %v3864
        %v3866 = vpop.f32.mrb[0].mxu0
        %3867 = vmatprep.mubr.f32.mxu0 %v3226
        %3868 = vmatmul.mubr.f32.gmra.mrb[0].mxu0 %v3225
        %v3869 = vpop.f32.mrb[0].mxu0
        %v3870 = vadd.f32 %v3645, %v3869
        %v3871 = vpop.f32.mrb[0].mxu0
        %3872 = vmatprep.mubr.f32.mxu0 %v3235
        %3873 = vmatmul.mubr.f32.gmra.mrb[0].mxu0 %v3234
        %v3874 = vpop.f32.mrb[0].mxu0
        %v3875 = vadd.f32 %v3650, %v3874
        %v3876 = vpop.f32.mrb[0].mxu0
        %3877 = vmatprep.mubr.f32.mxu0 %v3244
        %3878 = vmatmul.mubr.f32.gmra.mrb[0].mxu0 %v3243
        %v3879 = vpop.f32.mrb[0].mxu0
        %v3880 = vadd.f32 %v3655, %v3879
        %v3881 = vpop.f32.mrb[0].mxu0
        %3882 = vmatprep.mubr.f32.mxu0 %v3253
        %3883 = vmatmul.mubr.f32.gmra.mrb[0].mxu0 %v3252
        %v3884 = vpop.f32.mrb[0].mxu0
        %v3885 = vadd.f32 %v3660, %v3884
        %v3886 = vpop.f32.mrb[0].mxu0
        %3887 = vmatprep.mubr.f32.mxu0 %v3262
        %3888 = vmatmul.mubr.f32.gmra.mrb[0].mxu0 %v3261
        %v3889 = vpop.f32.mrb[0].mxu0
        %v3890 = vadd.f32 %v3665, %v3889
        %v3891 = vpop.f32.mrb[0].mxu0
        %3892 = vmatprep.mubr.f32.mxu0 %v3271
        %3893 = vmatmul.mubr.f32.gmra.mrb[0].mxu0 %v3270
        %v3894 = vpop.f32.mrb[0].mxu0
        %v3895 = vadd.f32 %v3670, %v3894
        %v3896 = vpop.f32.mrb[0].mxu0
        %3897 = vmatprep.mubr.f32.mxu0 %v3280
        %3898 = vmatmul.mubr.f32.gmra.mrb[0].mxu0 %v3279
        %v3899 = vpop.f32.mrb[0].mxu0
        %v3900 = vadd.f32 %v3675, %v3899
        %v3901 = vpop.f32.mrb[0].mxu0
        %3902 = vmatprep.mubr.f32.mxu0 %v3289
        %3903 = vmatmul.mubr.f32.gmra.mrb[0].mxu0 %v3288
        %v3904 = vpop.f32.mrb[0].mxu0
        %v3905 = vadd.f32 %v3680, %v3904
        %v3906 = vpop.f32.mrb[0].mxu0
        %3907 = vmatprep.mubr.f32.mxu0 %v3298
        %3908 = vmatmul.mubr.f32.gmra.mrb[0].mxu0 %v3297
        %v3909 = vpop.f32.mrb[0].mxu0
        %v3910 = vadd.f32 %v3685, %v3909
        %v3911 = vpop.f32.mrb[0].mxu0
        %3912 = vmatprep.mubr.f32.mxu0 %v3307
        %3913 = vmatmul.mubr.f32.gmra.mrb[0].mxu0 %v3306
        %v3914 = vpop.f32.mrb[0].mxu0
        %v3915 = vadd.f32 %v3690, %v3914
        %v3916 = vpop.f32.mrb[0].mxu0
        %3917 = vmatprep.mubr.f32.mxu0 %v3316
        %3918 = vmatmul.mubr.f32.gmra.mrb[0].mxu0 %v3315
        %v3919 = vpop.f32.mrb[0].mxu0
        %v3920 = vadd.f32 %v3695, %v3919
        %v3921 = vpop.f32.mrb[0].mxu0
        %3922 = vdwg.mxu0
        %3923 = vmatprep.subr.mxu0 0.0
        %3924 = vmatpush1.msra.mxu0 %v3386
        %3925 = vmatprep.subr.mxu0 0.0
        %3926 = vmatpush1.msra.mxu0 %v3387
        %3927 = vmatprep.subr.mxu0 0.0
        %3928 = vmatpush1.msra.mxu0 %v3388
        %3929 = vmatprep.subr.mxu0 0.0
        %3930 = vmatpush1.msra.mxu0 %v3389
        %3931 = vmatprep.subr.mxu0 0.0
        %3932 = vmatpush1.msra.mxu0 %v3390
        %3933 = vmatprep.subr.mxu0 0.0
        %3934 = vmatpush1.msra.mxu0 %v3391
        %3935 = vmatprep.subr.mxu0 0.0
        %3936 = vmatpush1.msra.mxu0 %v3392
        %3937 = vmatprep.subr.mxu0 0.0
        %3938 = vmatpush1.msra.mxu0 %v3393
        %3939 = vmatprep.subr.mxu0 0.0
        %3940 = vmatpush1.msra.mxu0 %v3394
        %3941 = vmatprep.subr.mxu0 0.0
        %3942 = vmatpush1.msra.mxu0 %v3395
        %3943 = vmatprep.subr.mxu0 0.0
        %3944 = vmatpush1.msra.mxu0 %v3396
        %3945 = vmatprep.subr.mxu0 0.0
        %3946 = vmatpush1.msra.mxu0 %v3397
        %3947 = vmatprep.subr.mxu0 0.0
        %3948 = vmatpush1.msra.mxu0 %v3398
        %3949 = vmatprep.subr.mxu0 0.0
        %3950 = vmatpush1.msra.mxu0 %v3399
        %3951 = vmatprep.subr.mxu0 0.0
        %3952 = vmatpush1.msra.mxu0 %v3400
        %3953 = vmatprep.subr.mxu0 0.0
        %3954 = vmatpush1.msra.mxu0 %v3401
        %3955 = vmatprep.subr.mxu0 0.0
        %3956 = vmatpush1.msra.mxu0 %v3402
        %3957 = vmatprep.subr.mxu0 0.0
        %3958 = vmatpush1.msra.mxu0 %v3403
        %3959 = vmatprep.subr.mxu0 0.0
        %3960 = vmatpush1.msra.mxu0 %v3404
        %3961 = vmatprep.subr.mxu0 0.0
        %3962 = vmatpush1.msra.mxu0 %v3405
        %3963 = vmatprep.subr.mxu0 0.0
        %3964 = vmatpush1.msra.mxu0 %v3406
        %3965 = vmatprep.subr.mxu0 0.0
        %3966 = vmatpush1.msra.mxu0 %v3407
        %3967 = vmatprep.subr.mxu0 0.0
        %3968 = vmatpush1.msra.mxu0 %v3408
        %3969 = vmatprep.subr.mxu0 0.0
        %3970 = vmatpush1.msra.mxu0 %v3409
        %3971 = vmatprep.subr.mxu0 0.0
        %3972 = vmatpush1.msra.mxu0 %v3410
        %3973 = vmatprep.subr.mxu0 0.0
        %3974 = vmatpush1.msra.mxu0 %v3411
        %3975 = vmatprep.subr.mxu0 0.0
        %3976 = vmatpush1.msra.mxu0 %v3412
        %3977 = vmatprep.subr.mxu0 0.0
        %3978 = vmatpush1.msra.mxu0 %v3413
        %3979 = vmatprep.subr.mxu0 0.0
        %3980 = vmatpush1.msra.mxu0 %v3414
        %3981 = vmatprep.subr.mxu0 0.0
        %3982 = vmatpush1.msra.mxu0 %v3415
        %3983 = vmatprep.subr.mxu0 0.0
        %3984 = vmatpush1.msra.mxu0 %v3416
        %3985 = vmatprep.subr.mxu0 0.0
        %3986 = vmatpush1.msra.mxu0 %v3417
        %3987 = vmatprep.mubr.f32.mxu0 %v3039
        %3988 = vmatmul.mubr.f32.gmra.mrb[0].mxu0 %v3038
        %v3989 = vpop.f32.mrb[0].mxu0
        %v3990 = vadd.f32 %v3765, %v3989
        %v3991 = vpop.f32.mrb[0].mxu0
        %3992 = vmatprep.mubr.f32.mxu0 %v3048
        %3993 = vmatmul.mubr.f32.gmra.mrb[0].mxu0 %v3047
        %v3994 = vpop.f32.mrb[0].mxu0
        %v3995 = vadd.f32 %v3770, %v3994
        %v3996 = vpop.f32.mrb[0].mxu0
        %3997 = vmatprep.mubr.f32.mxu0 %v3057
        %3998 = vmatmul.mubr.f32.gmra.mrb[0].mxu0 %v3056
        %v3999 = vpop.f32.mrb[0].mxu0
        %v4000 = vadd.f32 %v3775, %v3999
        %v4001 = vpop.f32.mrb[0].mxu0
        %4002 = vmatprep.mubr.f32.mxu0 %v3066
        %4003 = vmatmul.mubr.f32.gmra.mrb[0].mxu0 %v3065
        %v4004 = vpop.f32.mrb[0].mxu0
        %v4005 = vadd.f32 %v3780, %v4004
        %v4006 = vpop.f32.mrb[0].mxu0
        %4007 = vmatprep.mubr.f32.mxu0 %v3075
        %4008 = vmatmul.mubr.f32.gmra.mrb[0].mxu0 %v3074
        %v4009 = vpop.f32.mrb[0].mxu0
        %v4010 = vadd.f32 %v3785, %v4009
        %v4011 = vpop.f32.mrb[0].mxu0
        %4012 = vmatprep.mubr.f32.mxu0 %v3084
        %4013 = vmatmul.mubr.f32.gmra.mrb[0].mxu0 %v3083
        %v4014 = vpop.f32.mrb[0].mxu0
        %v4015 = vadd.f32 %v3790, %v4014
        %v4016 = vpop.f32.mrb[0].mxu0
        %4017 = vmatprep.mubr.f32.mxu0 %v3093
        %4018 = vmatmul.mubr.f32.gmra.mrb[0].mxu0 %v3092
        %v4019 = vpop.f32.mrb[0].mxu0
        %v4020 = vadd.f32 %v3795, %v4019
        %v4021 = vpop.f32.mrb[0].mxu0
        %4022 = vmatprep.mubr.f32.mxu0 %v3102
        %4023 = vmatmul.mubr.f32.gmra.mrb[0].mxu0 %v3101
        %v4024 = vpop.f32.mrb[0].mxu0
        %v4025 = vadd.f32 %v3800, %v4024
        %v4026 = vpop.f32.mrb[0].mxu0
        %4027 = vmatprep.mubr.f32.mxu0 %v3111
        %4028 = vmatmul.mubr.f32.gmra.mrb[0].mxu0 %v3110
        %v4029 = vpop.f32.mrb[0].mxu0
        %v4030 = vadd.f32 %v3805, %v4029
        %v4031 = vpop.f32.mrb[0].mxu0
        %4032 = vmatprep.mubr.f32.mxu0 %v3120
        %4033 = vmatmul.mubr.f32.gmra.mrb[0].mxu0 %v3119
        %v4034 = vpop.f32.mrb[0].mxu0
        %v4035 = vadd.f32 %v3810, %v4034
        %v4036 = vpop.f32.mrb[0].mxu0
        %4037 = vmatprep.mubr.f32.mxu0 %v3129
        %4038 = vmatmul.mubr.f32.gmra.mrb[0].mxu0 %v3128
        %v4039 = vpop.f32.mrb[0].mxu0
        %v4040 = vadd.f32 %v3815, %v4039
        %v4041 = vpop.f32.mrb[0].mxu0
        %4042 = vmatprep.mubr.f32.mxu0 %v3138
        %4043 = vmatmul.mubr.f32.gmra.mrb[0].mxu0 %v3137
        %v4044 = vpop.f32.mrb[0].mxu0
        %v4045 = vadd.f32 %v3820, %v4044
        %v4046 = vpop.f32.mrb[0].mxu0
        %4047 = vmatprep.mubr.f32.mxu0 %v3147
        %4048 = vmatmul.mubr.f32.gmra.mrb[0].mxu0 %v3146
        %v4049 = vpop.f32.mrb[0].mxu0
        %v4050 = vadd.f32 %v3825, %v4049
        %v4051 = vpop.f32.mrb[0].mxu0
        %4052 = vmatprep.mubr.f32.mxu0 %v3156
        %4053 = vmatmul.mubr.f32.gmra.mrb[0].mxu0 %v3155
        %v4054 = vpop.f32.mrb[0].mxu0
        %v4055 = vadd.f32 %v3830, %v4054
        %v4056 = vpop.f32.mrb[0].mxu0
        %4057 = vmatprep.mubr.f32.mxu0 %v3165
        %4058 = vmatmul.mubr.f32.gmra.mrb[0].mxu0 %v3164
        %v4059 = vpop.f32.mrb[0].mxu0
        %v4060 = vadd.f32 %v3835, %v4059
        %v4061 = vpop.f32.mrb[0].mxu0
        %4062 = vmatprep.mubr.f32.mxu0 %v3174
        %4063 = vmatmul.mubr.f32.gmra.mrb[0].mxu0 %v3173
        %v4064 = vpop.f32.mrb[0].mxu0
        %v4065 = vadd.f32 %v3840, %v4064
        %v4066 = vpop.f32.mrb[0].mxu0
        %4067 = vmatprep.mubr.f32.mxu0 %v3183
        %4068 = vmatmul.mubr.f32.gmra.mrb[0].mxu0 %v3182
        %v4069 = vpop.f32.mrb[0].mxu0
        %v4070 = vadd.f32 %v3845, %v4069
        %v4071 = vpop.f32.mrb[0].mxu0
        %4072 = vmatprep.mubr.f32.mxu0 %v3192
        %4073 = vmatmul.mubr.f32.gmra.mrb[0].mxu0 %v3191
        %v4074 = vpop.f32.mrb[0].mxu0
        %v4075 = vadd.f32 %v3850, %v4074
        %v4076 = vpop.f32.mrb[0].mxu0
        %4077 = vmatprep.mubr.f32.mxu0 %v3201
        %4078 = vmatmul.mubr.f32.gmra.mrb[0].mxu0 %v3200
        %v4079 = vpop.f32.mrb[0].mxu0
        %v4080 = vadd.f32 %v3855, %v4079
        %v4081 = vpop.f32.mrb[0].mxu0
        %4082 = vmatprep.mubr.f32.mxu0 %v3210
        %4083 = vmatmul.mubr.f32.gmra.mrb[0].mxu0 %v3209
        %v4084 = vpop.f32.mrb[0].mxu0
        %v4085 = vadd.f32 %v3860, %v4084
        %v4086 = vpop.f32.mrb[0].mxu0
        %4087 = vmatprep.mubr.f32.mxu0 %v3219
        %4088 = vmatmul.mubr.f32.gmra.mrb[0].mxu0 %v3218
        %v4089 = vpop.f32.mrb[0].mxu0
        %v4090 = vadd.f32 %v3865, %v4089
        %v4091 = vpop.f32.mrb[0].mxu0
        %4092 = vmatprep.mubr.f32.mxu0 %v3228
        %4093 = vmatmul.mubr.f32.gmra.mrb[0].mxu0 %v3227
        %v4094 = vpop.f32.mrb[0].mxu0
        %v4095 = vadd.f32 %v3870, %v4094
        %v4096 = vpop.f32.mrb[0].mxu0
        %4097 = vmatprep.mubr.f32.mxu0 %v3237
        %4098 = vmatmul.mubr.f32.gmra.mrb[0].mxu0 %v3236
        %v4099 = vpop.f32.mrb[0].mxu0
        %v4100 = vadd.f32 %v3875, %v4099
        %v4101 = vpop.f32.mrb[0].mxu0
        %4102 = vmatprep.mubr.f32.mxu0 %v3246
        %4103 = vmatmul.mubr.f32.gmra.mrb[0].mxu0 %v3245
        %v4104 = vpop.f32.mrb[0].mxu0
        %v4105 = vadd.f32 %v3880, %v4104
        %v4106 = vpop.f32.mrb[0].mxu0
        %4107 = vmatprep.mubr.f32.mxu0 %v3255
        %4108 = vmatmul.mubr.f32.gmra.mrb[0].mxu0 %v3254
        %v4109 = vpop.f32.mrb[0].mxu0
        %v4110 = vadd.f32 %v3885, %v4109
        %v4111 = vpop.f32.mrb[0].mxu0
        %4112 = vmatprep.mubr.f32.mxu0 %v3264
        %4113 = vmatmul.mubr.f32.gmra.mrb[0].mxu0 %v3263
        %v4114 = vpop.f32.mrb[0].mxu0
        %v4115 = vadd.f32 %v3890, %v4114
        %v4116 = vpop.f32.mrb[0].mxu0
        %4117 = vmatprep.mubr.f32.mxu0 %v3273
        %4118 = vmatmul.mubr.f32.gmra.mrb[0].mxu0 %v3272
        %v4119 = vpop.f32.mrb[0].mxu0
        %v4120 = vadd.f32 %v3895, %v4119
        %v4121 = vpop.f32.mrb[0].mxu0
        %4122 = vmatprep.mubr.f32.mxu0 %v3282
        %4123 = vmatmul.mubr.f32.gmra.mrb[0].mxu0 %v3281
        %v4124 = vpop.f32.mrb[0].mxu0
        %v4125 = vadd.f32 %v3900, %v4124
        %v4126 = vpop.f32.mrb[0].mxu0
        %4127 = vmatprep.mubr.f32.mxu0 %v3291
        %4128 = vmatmul.mubr.f32.gmra.mrb[0].mxu0 %v3290
        %v4129 = vpop.f32.mrb[0].mxu0
        %v4130 = vadd.f32 %v3905, %v4129
        %v4131 = vpop.f32.mrb[0].mxu0
        %4132 = vmatprep.mubr.f32.mxu0 %v3300
        %4133 = vmatmul.mubr.f32.gmra.mrb[0].mxu0 %v3299
        %v4134 = vpop.f32.mrb[0].mxu0
        %v4135 = vadd.f32 %v3910, %v4134
        %v4136 = vpop.f32.mrb[0].mxu0
        %4137 = vmatprep.mubr.f32.mxu0 %v3309
        %4138 = vmatmul.mubr.f32.gmra.mrb[0].mxu0 %v3308
        %v4139 = vpop.f32.mrb[0].mxu0
        %v4140 = vadd.f32 %v3915, %v4139
        %v4141 = vpop.f32.mrb[0].mxu0
        %4142 = vmatprep.mubr.f32.mxu0 %v3318
        %4143 = vmatmul.mubr.f32.gmra.mrb[0].mxu0 %v3317
        %v4144 = vpop.f32.mrb[0].mxu0
        %v4145 = vadd.f32 %v3920, %v4144
        %v4146 = vpop.f32.mrb[0].mxu0
        %4147 = vdwg.mxu0
        %4148 = vmatprep.subr.mxu0 0.0
        %4149 = vmatpush1.msra.mxu0 %v3418
        %4150 = vmatprep.subr.mxu0 0.0
        %4151 = vmatpush1.msra.mxu0 %v3419
        %4152 = vmatprep.subr.mxu0 0.0
        %4153 = vmatpush1.msra.mxu0 %v3420
        %4154 = vmatprep.subr.mxu0 0.0
        %4155 = vmatpush1.msra.mxu0 %v3421
        %4156 = vmatprep.subr.mxu0 0.0
        %4157 = vmatpush1.msra.mxu0 %v3422
        %4158 = vmatprep.subr.mxu0 0.0
        %4159 = vmatpush1.msra.mxu0 %v3423
        %4160 = vmatprep.subr.mxu0 0.0
        %4161 = vmatpush1.msra.mxu0 %v3424
        %4162 = vmatprep.subr.mxu0 0.0
        %4163 = vmatpush1.msra.mxu0 %v3425
        %4164 = vmatprep.subr.mxu0 0.0
        %4165 = vmatpush1.msra.mxu0 %v3426
        %4166 = vmatprep.subr.mxu0 0.0
        %4167 = vmatpush1.msra.mxu0 %v3427
        %4168 = vmatprep.subr.mxu0 0.0
        %4169 = vmatpush1.msra.mxu0 %v3428
        %4170 = vmatprep.subr.mxu0 0.0
        %4171 = vmatpush1.msra.mxu0 %v3429
        %4172 = vmatprep.subr.mxu0 0.0
        %4173 = vmatpush1.msra.mxu0 %v3430
        %4174 = vmatprep.subr.mxu0 0.0
        %4175 = vmatpush1.msra.mxu0 %v3431
        %4176 = vmatprep.subr.mxu0 0.0
        %4177 = vmatpush1.msra.mxu0 %v3432
        %4178 = vmatprep.subr.mxu0 0.0
        %4179 = vmatpush1.msra.mxu0 %v3433
        %4180 = vmatprep.subr.mxu0 0.0
        %4181 = vmatpush1.msra.mxu0 %v3434
        %4182 = vmatprep.subr.mxu0 0.0
        %4183 = vmatpush1.msra.mxu0 %v3435
        %4184 = vmatprep.subr.mxu0 0.0
        %4185 = vmatpush1.msra.mxu0 %v3436
        %4186 = vmatprep.subr.mxu0 0.0
        %4187 = vmatpush1.msra.mxu0 %v3437
        %4188 = vmatprep.subr.mxu0 0.0
        %4189 = vmatpush1.msra.mxu0 %v3438
        %4190 = vmatprep.subr.mxu0 0.0
        %4191 = vmatpush1.msra.mxu0 %v3439
        %4192 = vmatprep.subr.mxu0 0.0
        %4193 = vmatpush1.msra.mxu0 %v3440
        %4194 = vmatprep.subr.mxu0 0.0
        %4195 = vmatpush1.msra.mxu0 %v3441
        %4196 = vmatprep.subr.mxu0 0.0
        %4197 = vmatpush1.msra.mxu0 %v3442
        %4198 = vmatprep.subr.mxu0 0.0
        %4199 = vmatpush1.msra.mxu0 %v3443
        %4200 = vmatprep.subr.mxu0 0.0
        %4201 = vmatpush1.msra.mxu0 %v3444
        %4202 = vmatprep.subr.mxu0 0.0
        %4203 = vmatpush1.msra.mxu0 %v3445
        %4204 = vmatprep.subr.mxu0 0.0
        %4205 = vmatpush1.msra.mxu0 %v3446
        %4206 = vmatprep.subr.mxu0 0.0
        %4207 = vmatpush1.msra.mxu0 %v3447
        %4208 = vmatprep.subr.mxu0 0.0
        %4209 = vmatpush1.msra.mxu0 %v3448
        %4210 = vmatprep.subr.mxu0 0.0
        %4211 = vmatpush1.msra.mxu0 %v3449
        %4212 = vmatprep.mubr.f32.mxu0 %v3041
        %4213 = vmatmul.mubr.f32.gmra.mrb[0].mxu0 %v3040
        %v4214 = vpop.f32.mrb[0].mxu0
        %v4215 = vadd.f32 %v3990, %v4214
        %v4216 = vpop.f32.mrb[0].mxu0
        %4217 = vmatprep.mubr.f32.mxu0 %v3050
        %4218 = vmatmul.mubr.f32.gmra.mrb[0].mxu0 %v3049
        %v4219 = vpop.f32.mrb[0].mxu0
        %v4220 = vadd.f32 %v3995, %v4219
        %v4221 = vpop.f32.mrb[0].mxu0
        %4222 = vmatprep.mubr.f32.mxu0 %v3059
        %4223 = vmatmul.mubr.f32.gmra.mrb[0].mxu0 %v3058
        %v4224 = vpop.f32.mrb[0].mxu0
        %v4225 = vadd.f32 %v4000, %v4224
        %v4226 = vpop.f32.mrb[0].mxu0
        %4227 = vmatprep.mubr.f32.mxu0 %v3068
        %4228 = vmatmul.mubr.f32.gmra.mrb[0].mxu0 %v3067
        %v4229 = vpop.f32.mrb[0].mxu0
        %v4230 = vadd.f32 %v4005, %v4229
        %v4231 = vpop.f32.mrb[0].mxu0
        %4232 = vmatprep.mubr.f32.mxu0 %v3077
        %4233 = vmatmul.mubr.f32.gmra.mrb[0].mxu0 %v3076
        %v4234 = vpop.f32.mrb[0].mxu0
        %v4235 = vadd.f32 %v4010, %v4234
        %v4236 = vpop.f32.mrb[0].mxu0
        %4237 = vmatprep.mubr.f32.mxu0 %v3086
        %4238 = vmatmul.mubr.f32.gmra.mrb[0].mxu0 %v3085
        %v4239 = vpop.f32.mrb[0].mxu0
        %v4240 = vadd.f32 %v4015, %v4239
        %v4241 = vpop.f32.mrb[0].mxu0
        %4242 = vmatprep.mubr.f32.mxu0 %v3095
        %4243 = vmatmul.mubr.f32.gmra.mrb[0].mxu0 %v3094
        %v4244 = vpop.f32.mrb[0].mxu0
        %v4245 = vadd.f32 %v4020, %v4244
        %v4246 = vpop.f32.mrb[0].mxu0
        %4247 = vmatprep.mubr.f32.mxu0 %v3104
        %4248 = vmatmul.mubr.f32.gmra.mrb[0].mxu0 %v3103
        %v4249 = vpop.f32.mrb[0].mxu0
        %v4250 = vadd.f32 %v4025, %v4249
        %v4251 = vpop.f32.mrb[0].mxu0
        %4252 = vmatprep.mubr.f32.mxu0 %v3113
        %4253 = vmatmul.mubr.f32.gmra.mrb[0].mxu0 %v3112
        %v4254 = vpop.f32.mrb[0].mxu0
        %v4255 = vadd.f32 %v4030, %v4254
        %v4256 = vpop.f32.mrb[0].mxu0
        %4257 = vmatprep.mubr.f32.mxu0 %v3122
        %4258 = vmatmul.mubr.f32.gmra.mrb[0].mxu0 %v3121
        %v4259 = vpop.f32.mrb[0].mxu0
        %v4260 = vadd.f32 %v4035, %v4259
        %v4261 = vpop.f32.mrb[0].mxu0
        %4262 = vmatprep.mubr.f32.mxu0 %v3131
        %4263 = vmatmul.mubr.f32.gmra.mrb[0].mxu0 %v3130
        %v4264 = vpop.f32.mrb[0].mxu0
        %v4265 = vadd.f32 %v4040, %v4264
        %v4266 = vpop.f32.mrb[0].mxu0
        %4267 = vmatprep.mubr.f32.mxu0 %v3140
        %4268 = vmatmul.mubr.f32.gmra.mrb[0].mxu0 %v3139
        %v4269 = vpop.f32.mrb[0].mxu0
        %v4270 = vadd.f32 %v4045, %v4269
        %v4271 = vpop.f32.mrb[0].mxu0
        %4272 = vmatprep.mubr.f32.mxu0 %v3149
        %4273 = vmatmul.mubr.f32.gmra.mrb[0].mxu0 %v3148
        %v4274 = vpop.f32.mrb[0].mxu0
        %v4275 = vadd.f32 %v4050, %v4274
        %v4276 = vpop.f32.mrb[0].mxu0
        %4277 = vmatprep.mubr.f32.mxu0 %v3158
        %4278 = vmatmul.mubr.f32.gmra.mrb[0].mxu0 %v3157
        %v4279 = vpop.f32.mrb[0].mxu0
        %v4280 = vadd.f32 %v4055, %v4279
        %v4281 = vpop.f32.mrb[0].mxu0
        %4282 = vmatprep.mubr.f32.mxu0 %v3167
        %4283 = vmatmul.mubr.f32.gmra.mrb[0].mxu0 %v3166
        %v4284 = vpop.f32.mrb[0].mxu0
        %v4285 = vadd.f32 %v4060, %v4284
        %v4286 = vpop.f32.mrb[0].mxu0
        %4287 = vmatprep.mubr.f32.mxu0 %v3176
        %4288 = vmatmul.mubr.f32.gmra.mrb[0].mxu0 %v3175
        %v4289 = vpop.f32.mrb[0].mxu0
        %v4290 = vadd.f32 %v4065, %v4289
        %v4291 = vpop.f32.mrb[0].mxu0
        %4292 = vmatprep.mubr.f32.mxu0 %v3185
        %4293 = vmatmul.mubr.f32.gmra.mrb[0].mxu0 %v3184
        %v4294 = vpop.f32.mrb[0].mxu0
        %v4295 = vadd.f32 %v4070, %v4294
        %v4296 = vpop.f32.mrb[0].mxu0
        %4297 = vmatprep.mubr.f32.mxu0 %v3194
        %4298 = vmatmul.mubr.f32.gmra.mrb[0].mxu0 %v3193
        %v4299 = vpop.f32.mrb[0].mxu0
        %v4300 = vadd.f32 %v4075, %v4299
        %v4301 = vpop.f32.mrb[0].mxu0
        %4302 = vmatprep.mubr.f32.mxu0 %v3203
        %4303 = vmatmul.mubr.f32.gmra.mrb[0].mxu0 %v3202
        %v4304 = vpop.f32.mrb[0].mxu0
        %v4305 = vadd.f32 %v4080, %v4304
        %v4306 = vpop.f32.mrb[0].mxu0
        %4307 = vmatprep.mubr.f32.mxu0 %v3212
        %4308 = vmatmul.mubr.f32.gmra.mrb[0].mxu0 %v3211
        %v4309 = vpop.f32.mrb[0].mxu0
        %v4310 = vadd.f32 %v4085, %v4309
        %v4311 = vpop.f32.mrb[0].mxu0
        %4312 = vmatprep.mubr.f32.mxu0 %v3221
        %4313 = vmatmul.mubr.f32.gmra.mrb[0].mxu0 %v3220
        %v4314 = vpop.f32.mrb[0].mxu0
        %v4315 = vadd.f32 %v4090, %v4314
        %v4316 = vpop.f32.mrb[0].mxu0
        %4317 = vmatprep.mubr.f32.mxu0 %v3230
        %4318 = vmatmul.mubr.f32.gmra.mrb[0].mxu0 %v3229
        %v4319 = vpop.f32.mrb[0].mxu0
        %v4320 = vadd.f32 %v4095, %v4319
        %v4321 = vpop.f32.mrb[0].mxu0
        %4322 = vmatprep.mubr.f32.mxu0 %v3239
        %4323 = vmatmul.mubr.f32.gmra.mrb[0].mxu0 %v3238
        %v4324 = vpop.f32.mrb[0].mxu0
        %v4325 = vadd.f32 %v4100, %v4324
        %v4326 = vpop.f32.mrb[0].mxu0
        %4327 = vmatprep.mubr.f32.mxu0 %v3248
        %4328 = vmatmul.mubr.f32.gmra.mrb[0].mxu0 %v3247
        %v4329 = vpop.f32.mrb[0].mxu0
        %v4330 = vadd.f32 %v4105, %v4329
        %v4331 = vpop.f32.mrb[0].mxu0
        %4332 = vmatprep.mubr.f32.mxu0 %v3257
        %4333 = vmatmul.mubr.f32.gmra.mrb[0].mxu0 %v3256
        %v4334 = vpop.f32.mrb[0].mxu0
        %v4335 = vadd.f32 %v4110, %v4334
        %v4336 = vpop.f32.mrb[0].mxu0
        %4337 = vmatprep.mubr.f32.mxu0 %v3266
        %4338 = vmatmul.mubr.f32.gmra.mrb[0].mxu0 %v3265
        %v4339 = vpop.f32.mrb[0].mxu0
        %v4340 = vadd.f32 %v4115, %v4339
        %v4341 = vpop.f32.mrb[0].mxu0
        %4342 = vmatprep.mubr.f32.mxu0 %v3275
        %4343 = vmatmul.mubr.f32.gmra.mrb[0].mxu0 %v3274
        %v4344 = vpop.f32.mrb[0].mxu0
        %v4345 = vadd.f32 %v4120, %v4344
        %v4346 = vpop.f32.mrb[0].mxu0
        %4347 = vmatprep.mubr.f32.mxu0 %v3284
        %4348 = vmatmul.mubr.f32.gmra.mrb[0].mxu0 %v3283
        %v4349 = vpop.f32.mrb[0].mxu0
        %v4350 = vadd.f32 %v4125, %v4349
        %v4351 = vpop.f32.mrb[0].mxu0
        %4352 = vmatprep.mubr.f32.mxu0 %v3293
        %4353 = vmatmul.mubr.f32.gmra.mrb[0].mxu0 %v3292
        %v4354 = vpop.f32.mrb[0].mxu0
        %v4355 = vadd.f32 %v4130, %v4354
        %v4356 = vpop.f32.mrb[0].mxu0
        %4357 = vmatprep.mubr.f32.mxu0 %v3302
        %4358 = vmatmul.mubr.f32.gmra.mrb[0].mxu0 %v3301
        %v4359 = vpop.f32.mrb[0].mxu0
        %v4360 = vadd.f32 %v4135, %v4359
        %v4361 = vpop.f32.mrb[0].mxu0
        %4362 = vmatprep.mubr.f32.mxu0 %v3311
        %4363 = vmatmul.mubr.f32.gmra.mrb[0].mxu0 %v3310
        %v4364 = vpop.f32.mrb[0].mxu0
        %v4365 = vadd.f32 %v4140, %v4364
        %v4366 = vpop.f32.mrb[0].mxu0
        %4367 = vmatprep.mubr.f32.mxu0 %v3320
        %4368 = vmatmul.mubr.f32.gmra.mrb[0].mxu0 %v3319
        %v4369 = vpop.f32.mrb[0].mxu0
        %v4370 = vadd.f32 %v4145, %v4369
        %v4371 = vpop.f32.mrb[0].mxu0
        %4372 = vdwg.mxu0
        %4373 = vmatprep.subr.mxu0 0.0
        %4374 = vmatpush1.msra.mxu0 %v3450
        %4375 = vmatprep.subr.mxu0 0.0
        %4376 = vmatpush1.msra.mxu0 %v3451
        %4377 = vmatprep.subr.mxu0 0.0
        %4378 = vmatpush1.msra.mxu0 %v3452
        %4379 = vmatprep.subr.mxu0 0.0
        %4380 = vmatpush1.msra.mxu0 %v3453
        %4381 = vmatprep.subr.mxu0 0.0
        %4382 = vmatpush1.msra.mxu0 %v3454
        %4383 = vmatprep.subr.mxu0 0.0
        %4384 = vmatpush1.msra.mxu0 %v3455
        %4385 = vmatprep.subr.mxu0 0.0
        %4386 = vmatpush1.msra.mxu0 %v3456
        %4387 = vmatprep.subr.mxu0 0.0
        %4388 = vmatpush1.msra.mxu0 %v3457
        %4389 = vmatprep.subr.mxu0 0.0
        %4390 = vmatpush1.msra.mxu0 %v3458
        %4391 = vmatprep.subr.mxu0 0.0
        %4392 = vmatpush1.msra.mxu0 %v3459
        %4393 = vmatprep.subr.mxu0 0.0
        %4394 = vmatpush1.msra.mxu0 %v3460
        %4395 = vmatprep.subr.mxu0 0.0
        %4396 = vmatpush1.msra.mxu0 %v3461
        %4397 = vmatprep.subr.mxu0 0.0
        %4398 = vmatpush1.msra.mxu0 %v3462
        %4399 = vmatprep.subr.mxu0 0.0
        %4400 = vmatpush1.msra.mxu0 %v3463
        %4401 = vmatprep.subr.mxu0 0.0
        %4402 = vmatpush1.msra.mxu0 %v3464
        %4403 = vmatprep.subr.mxu0 0.0
        %4404 = vmatpush1.msra.mxu0 %v3465
        %4405 = vmatprep.subr.mxu0 0.0
        %4406 = vmatpush1.msra.mxu0 0.0
        %4407 = vmatprep.subr.mxu0 0.0
        %4408 = vmatpush1.msra.mxu0 0.0
        %4409 = vmatprep.subr.mxu0 0.0
        %4410 = vmatpush1.msra.mxu0 0.0
        %4411 = vmatprep.subr.mxu0 0.0
        %4412 = vmatpush1.msra.mxu0 0.0
        %4413 = vmatprep.subr.mxu0 0.0
        %4414 = vmatpush1.msra.mxu0 0.0
        %4415 = vmatprep.subr.mxu0 0.0
        %4416 = vmatpush1.msra.mxu0 0.0
        %4417 = vmatprep.subr.mxu0 0.0
        %4418 = vmatpush1.msra.mxu0 0.0
        %4419 = vmatprep.subr.mxu0 0.0
        %4420 = vmatpush1.msra.mxu0 0.0
        %4421 = vmatprep.subr.mxu0 0.0
        %4422 = vmatpush1.msra.mxu0 0.0
        %4423 = vmatprep.subr.mxu0 0.0
        %4424 = vmatpush1.msra.mxu0 0.0
        %4425 = vmatprep.subr.mxu0 0.0
        %4426 = vmatpush1.msra.mxu0 0.0
        %4427 = vmatprep.subr.mxu0 0.0
        %4428 = vmatpush1.msra.mxu0 0.0
        %4429 = vmatprep.subr.mxu0 0.0
        %4430 = vmatpush1.msra.mxu0 0.0
        %4431 = vmatprep.subr.mxu0 0.0
        %4432 = vmatpush1.msra.mxu0 0.0
        %4433 = vmatprep.subr.mxu0 0.0
        %4434 = vmatpush1.msra.mxu0 0.0
        %4435 = vmatprep.subr.mxu0 0.0
        %4436 = vmatpush1.msra.mxu0 0.0
        %4437 = vmatprep.mubr.f32.mxu0 0.0
        %4438 = vmatmul.mubr.f32.gmra.mrb[0].mxu0 %v3042
        %v4439 = vpop.f32.mrb[0].mxu0
        %v4440 = vadd.f32 %v4215, %v4439
        %v4441 = vpop.f32.mrb[0].mxu0
        %4442 = vmatprep.mubr.f32.mxu0 0.0
        %4443 = vmatmul.mubr.f32.gmra.mrb[0].mxu0 %v3051
        %v4444 = vpop.f32.mrb[0].mxu0
        %v4445 = vadd.f32 %v4220, %v4444
        %v4446 = vpop.f32.mrb[0].mxu0
        %4447 = vmatprep.mubr.f32.mxu0 0.0
        %4448 = vmatmul.mubr.f32.gmra.mrb[0].mxu0 %v3060
        %v4449 = vpop.f32.mrb[0].mxu0
        %v4450 = vadd.f32 %v4225, %v4449
        %v4451 = vpop.f32.mrb[0].mxu0
        %4452 = vmatprep.mubr.f32.mxu0 0.0
        %4453 = vmatmul.mubr.f32.gmra.mrb[0].mxu0 %v3069
        %v4454 = vpop.f32.mrb[0].mxu0
        %v4455 = vadd.f32 %v4230, %v4454
        %v4456 = vpop.f32.mrb[0].mxu0
        %4457 = vmatprep.mubr.f32.mxu0 0.0
        %4458 = vmatmul.mubr.f32.gmra.mrb[0].mxu0 %v3078
        %v4459 = vpop.f32.mrb[0].mxu0
        %v4460 = vadd.f32 %v4235, %v4459
        %v4461 = vpop.f32.mrb[0].mxu0
        %4462 = vmatprep.mubr.f32.mxu0 0.0
        %4463 = vmatmul.mubr.f32.gmra.mrb[0].mxu0 %v3087
        %v4464 = vpop.f32.mrb[0].mxu0
        %v4465 = vadd.f32 %v4240, %v4464
        %v4466 = vpop.f32.mrb[0].mxu0
        %4467 = vmatprep.mubr.f32.mxu0 0.0
        %4468 = vmatmul.mubr.f32.gmra.mrb[0].mxu0 %v3096
        %v4469 = vpop.f32.mrb[0].mxu0
        %v4470 = vadd.f32 %v4245, %v4469
        %v4471 = vpop.f32.mrb[0].mxu0
        %4472 = vmatprep.mubr.f32.mxu0 0.0
        %4473 = vmatmul.mubr.f32.gmra.mrb[0].mxu0 %v3105
        %v4474 = vpop.f32.mrb[0].mxu0
        %v4475 = vadd.f32 %v4250, %v4474
        %v4476 = vpop.f32.mrb[0].mxu0
        %4477 = vmatprep.mubr.f32.mxu0 0.0
        %4478 = vmatmul.mubr.f32.gmra.mrb[0].mxu0 %v3114
        %v4479 = vpop.f32.mrb[0].mxu0
        %v4480 = vadd.f32 %v4255, %v4479
        %v4481 = vpop.f32.mrb[0].mxu0
        %4482 = vmatprep.mubr.f32.mxu0 0.0
        %4483 = vmatmul.mubr.f32.gmra.mrb[0].mxu0 %v3123
        %v4484 = vpop.f32.mrb[0].mxu0
        %v4485 = vadd.f32 %v4260, %v4484
        %v4486 = vpop.f32.mrb[0].mxu0
        %4487 = vmatprep.mubr.f32.mxu0 0.0
        %4488 = vmatmul.mubr.f32.gmra.mrb[0].mxu0 %v3132
        %v4489 = vpop.f32.mrb[0].mxu0
        %v4490 = vadd.f32 %v4265, %v4489
        %v4491 = vpop.f32.mrb[0].mxu0
        %4492 = vmatprep.mubr.f32.mxu0 0.0
        %4493 = vmatmul.mubr.f32.gmra.mrb[0].mxu0 %v3141
        %v4494 = vpop.f32.mrb[0].mxu0
        %v4495 = vadd.f32 %v4270, %v4494
        %v4496 = vpop.f32.mrb[0].mxu0
        %4497 = vmatprep.mubr.f32.mxu0 0.0
        %4498 = vmatmul.mubr.f32.gmra.mrb[0].mxu0 %v3150
        %v4499 = vpop.f32.mrb[0].mxu0
        %v4500 = vadd.f32 %v4275, %v4499
        %v4501 = vpop.f32.mrb[0].mxu0
        %4502 = vmatprep.mubr.f32.mxu0 0.0
        %4503 = vmatmul.mubr.f32.gmra.mrb[0].mxu0 %v3159
        %v4504 = vpop.f32.mrb[0].mxu0
        %v4505 = vadd.f32 %v4280, %v4504
        %v4506 = vpop.f32.mrb[0].mxu0
        %4507 = vmatprep.mubr.f32.mxu0 0.0
        %4508 = vmatmul.mubr.f32.gmra.mrb[0].mxu0 %v3168
        %v4509 = vpop.f32.mrb[0].mxu0
        %v4510 = vadd.f32 %v4285, %v4509
        %v4511 = vpop.f32.mrb[0].mxu0
        %4512 = vmatprep.mubr.f32.mxu0 0.0
        %4513 = vmatmul.mubr.f32.gmra.mrb[0].mxu0 %v3177
        %v4514 = vpop.f32.mrb[0].mxu0
        %v4515 = vadd.f32 %v4290, %v4514
        %v4516 = vpop.f32.mrb[0].mxu0
        %4517 = vmatprep.mubr.f32.mxu0 0.0
        %4518 = vmatmul.mubr.f32.gmra.mrb[0].mxu0 %v3186
        %v4519 = vpop.f32.mrb[0].mxu0
        %v4520 = vadd.f32 %v4295, %v4519
        %v4521 = vpop.f32.mrb[0].mxu0
        %4522 = vmatprep.mubr.f32.mxu0 0.0
        %4523 = vmatmul.mubr.f32.gmra.mrb[0].mxu0 %v3195
        %v4524 = vpop.f32.mrb[0].mxu0
        %v4525 = vadd.f32 %v4300, %v4524
        %v4526 = vpop.f32.mrb[0].mxu0
        %4527 = vmatprep.mubr.f32.mxu0 0.0
        %4528 = vmatmul.mubr.f32.gmra.mrb[0].mxu0 %v3204
        %v4529 = vpop.f32.mrb[0].mxu0
        %v4530 = vadd.f32 %v4305, %v4529
        %v4531 = vpop.f32.mrb[0].mxu0
        %4532 = vmatprep.mubr.f32.mxu0 0.0
        %4533 = vmatmul.mubr.f32.gmra.mrb[0].mxu0 %v3213
        %v4534 = vpop.f32.mrb[0].mxu0
        %v4535 = vadd.f32 %v4310, %v4534
        %v4536 = vpop.f32.mrb[0].mxu0
        %4537 = vmatprep.mubr.f32.mxu0 0.0
        %4538 = vmatmul.mubr.f32.gmra.mrb[0].mxu0 %v3222
        %v4539 = vpop.f32.mrb[0].mxu0
        %v4540 = vadd.f32 %v4315, %v4539
        %v4541 = vpop.f32.mrb[0].mxu0
        %4542 = vmatprep.mubr.f32.mxu0 0.0
        %4543 = vmatmul.mubr.f32.gmra.mrb[0].mxu0 %v3231
        %v4544 = vpop.f32.mrb[0].mxu0
        %v4545 = vadd.f32 %v4320, %v4544
        %v4546 = vpop.f32.mrb[0].mxu0
        %4547 = vmatprep.mubr.f32.mxu0 0.0
        %4548 = vmatmul.mubr.f32.gmra.mrb[0].mxu0 %v3240
        %v4549 = vpop.f32.mrb[0].mxu0
        %v4550 = vadd.f32 %v4325, %v4549
        %v4551 = vpop.f32.mrb[0].mxu0
        %4552 = vmatprep.mubr.f32.mxu0 0.0
        %4553 = vmatmul.mubr.f32.gmra.mrb[0].mxu0 %v3249
        %v4554 = vpop.f32.mrb[0].mxu0
        %v4555 = vadd.f32 %v4330, %v4554
        %v4556 = vpop.f32.mrb[0].mxu0
        %4557 = vmatprep.mubr.f32.mxu0 0.0
        %4558 = vmatmul.mubr.f32.gmra.mrb[0].mxu0 %v3258
        %v4559 = vpop.f32.mrb[0].mxu0
        %v4560 = vadd.f32 %v4335, %v4559
        %v4561 = vpop.f32.mrb[0].mxu0
        %4562 = vmatprep.mubr.f32.mxu0 0.0
        %4563 = vmatmul.mubr.f32.gmra.mrb[0].mxu0 %v3267
        %v4564 = vpop.f32.mrb[0].mxu0
        %v4565 = vadd.f32 %v4340, %v4564
        %v4566 = vpop.f32.mrb[0].mxu0
        %4567 = vmatprep.mubr.f32.mxu0 0.0
        %4568 = vmatmul.mubr.f32.gmra.mrb[0].mxu0 %v3276
        %v4569 = vpop.f32.mrb[0].mxu0
        %v4570 = vadd.f32 %v4345, %v4569
        %v4571 = vpop.f32.mrb[0].mxu0
        %4572 = vmatprep.mubr.f32.mxu0 0.0
        %4573 = vmatmul.mubr.f32.gmra.mrb[0].mxu0 %v3285
        %v4574 = vpop.f32.mrb[0].mxu0
        %v4575 = vadd.f32 %v4350, %v4574
        %v4576 = vpop.f32.mrb[0].mxu0
        %4577 = vmatprep.mubr.f32.mxu0 0.0
        %4578 = vmatmul.mubr.f32.gmra.mrb[0].mxu0 %v3294
        %v4579 = vpop.f32.mrb[0].mxu0
        %v4580 = vadd.f32 %v4355, %v4579
        %v4581 = vpop.f32.mrb[0].mxu0
        %4582 = vmatprep.mubr.f32.mxu0 0.0
        %4583 = vmatmul.mubr.f32.gmra.mrb[0].mxu0 %v3303
        %v4584 = vpop.f32.mrb[0].mxu0
        %v4585 = vadd.f32 %v4360, %v4584
        %v4586 = vpop.f32.mrb[0].mxu0
        %4587 = vmatprep.mubr.f32.mxu0 0.0
        %4588 = vmatmul.mubr.f32.gmra.mrb[0].mxu0 %v3312
        %v4589 = vpop.f32.mrb[0].mxu0
        %v4590 = vadd.f32 %v4365, %v4589
        %v4591 = vpop.f32.mrb[0].mxu0
        %4592 = vmatprep.mubr.f32.mxu0 0.0
        %4593 = vmatmul.mubr.f32.gmra.mrb[0].mxu0 %v3321
        %v4594 = vpop.f32.mrb[0].mxu0
        %v4595 = vadd.f32 %v4370, %v4594
        %v4596 = vpop.f32.mrb[0].mxu0
        %4597 = vdwg.mxu0
        %v4598 = vmax.f32 %v4440, 0.0
        %v4599 = vmax.f32 %v4445, 0.0
        %v4600 = vmax.f32 %v4450, 0.0
        %v4601 = vmax.f32 %v4455, 0.0
        %v4602 = vmax.f32 %v4460, 0.0
        %v4603 = vmax.f32 %v4465, 0.0
        %v4604 = vmax.f32 %v4470, 0.0
        %v4605 = vmax.f32 %v4475, 0.0
        %v4606 = vmax.f32 %v4480, 0.0
        %v4607 = vmax.f32 %v4485, 0.0
        %v4608 = vmax.f32 %v4490, 0.0
        %v4609 = vmax.f32 %v4495, 0.0
        %v4610 = vmax.f32 %v4500, 0.0
        %v4611 = vmax.f32 %v4505, 0.0
        %v4612 = vmax.f32 %v4510, 0.0
        %v4613 = vmax.f32 %v4515, 0.0
        %v4614 = vmax.f32 %v4520, 0.0
        %v4615 = vmax.f32 %v4525, 0.0
        %v4616 = vmax.f32 %v4530, 0.0
        %v4617 = vmax.f32 %v4535, 0.0
        %v4618 = vmax.f32 %v4540, 0.0
        %v4619 = vmax.f32 %v4545, 0.0
        %v4620 = vmax.f32 %v4550, 0.0
        %v4621 = vmax.f32 %v4555, 0.0
        %v4622 = vmax.f32 %v4560, 0.0
        %v4623 = vmax.f32 %v4565, 0.0
        %v4624 = vmax.f32 %v4570, 0.0
        %v4625 = vmax.f32 %v4575, 0.0
        %v4626 = vmax.f32 %v4580, 0.0
        %v4627 = vmax.f32 %v4585, 0.0
        %v4628 = vmax.f32 %v4590, 0.0
        %v4629 = vmax.f32 %v4595, 0.0
        %4630 = vst [vmem:[%s232] sm:$0xff] %v4598
        %4631 = vst [vmem:[%s232 + $0x8] sm:$0xff] %v4599
        %4632 = vst [vmem:[%s232 + $0x10] sm:$0xff] %v4600
        %4633 = vst [vmem:[%s232 + $0x18] sm:$0xff] %v4601
        %4634 = vst [vmem:[%s232 + $0x20] sm:$0xff] %v4602
        %4635 = vst [vmem:[%s232 + $0x28] sm:$0xff] %v4603
        %4636 = vst [vmem:[%s232 + $0x30] sm:$0xff] %v4604
        %4637 = vst [vmem:[%s232 + $0x38] sm:$0xff] %v4605
        %4638 = vst [vmem:[%s232 + $0x40] sm:$0xff] %v4606
        %4639 = vst [vmem:[%s232 + $0x48] sm:$0xff] %v4607
        %4640 = vst [vmem:[%s232 + $0x50] sm:$0xff] %v4608
        %4641 = vst [vmem:[%s232 + $0x58] sm:$0xff] %v4609
        %4642 = vst [vmem:[%s232 + $0x60] sm:$0xff] %v4610
        %4643 = vst [vmem:[%s232 + $0x68] sm:$0xff] %v4611
        %4644 = vst [vmem:[%s232 + $0x70] sm:$0xff] %v4612
        %4645 = vst [vmem:[%s232 + $0x78] sm:$0xff] %v4613
        %4646 = vst [vmem:[%s232 + $0x80] sm:$0xff] %v4614
        %4647 = vst [vmem:[%s232 + $0x88] sm:$0xff] %v4615
        %4648 = vst [vmem:[%s232 + $0x90] sm:$0xff] %v4616
        %4649 = vst [vmem:[%s232 + $0x98] sm:$0xff] %v4617
        %4650 = vst [vmem:[%s232 + $0xa0] sm:$0xff] %v4618
        %4651 = vst [vmem:[%s232 + $0xa8] sm:$0xff] %v4619
        %4652 = vst [vmem:[%s232 + $0xb0] sm:$0xff] %v4620
        %4653 = vst [vmem:[%s232 + $0xb8] sm:$0xff] %v4621
        %4654 = vst [vmem:[%s232 + $0xc0] sm:$0xff] %v4622
        %4655 = vst [vmem:[%s232 + $0xc8] sm:$0xff] %v4623
        %4656 = vst [vmem:[%s232 + $0xd0] sm:$0xff] %v4624
        %4657 = vst [vmem:[%s232 + $0xd8] sm:$0xff] %v4625
        %4658 = vst [vmem:[%s232 + $0xe0] sm:$0xff] %v4626
        %4659 = vst [vmem:[%s232 + $0xe8] sm:$0xff] %v4627
        %4660 = vst [vmem:[%s232 + $0xf0] sm:$0xff] %v4628
        %4661 = vst [vmem:[%s232 + $0xf8] sm:$0xff] %v4629
        %s4662 = sand.u32 %s138, 1
        %s4663 = scalar_lea.sflag [#allocation8], %s4662
        %s4664 = sand.u32 %s138, 1
        %s4665 = smul.addr %s4664, 256
        %s4666 = scalar_lea.vmem [#allocation9], %s4665
        // Predicated region
        $region45: #{tpu_custom_call.1} parent=39 // pred_check
          %p4667 = pneg %p148
        $region46: #{tpu_custom_call.1} parent=39 // pred_check_branch
          %4669 = sbr.rel (%p4667) target = $region48
        $region47: #{tpu_custom_call.1} parent=39 // pred_region
          %s4671 = ssub.s32 4096, 4096
          %4672 = vsyncadd %s4663, %s4671
          %s4673 = smul.addr %s20, 32
          %s4674 = smul.addr %s4673, 128
          %s4675 = scalar_lea.hbm %s5, %s4674
          %s4676 = sshll.u32 %s4666, 4
          %s4677 = int_to_ptr.vmem [resolvable:$true] %s4676
          %4682 = dma.vmem_to_hbm [thread:$0]  %s4677, 4096, %s4675, %s4663, 128, 128, 8
        $region48: #{tpu_custom_call.1} parent=39 // pred_fallthru
          _
      $region40: #{tpu_custom_call.1} parent=5 // pred_fallthru
        _
      %p4683 = scmp.le.s32.totalorder 2, %s15
      // Predicated region
      $region49: #{tpu_custom_call.1} parent=5 // pred_check
        %p4684 = pneg %p4683
      $region50: #{tpu_custom_call.1} parent=5 // pred_check_branch
        %4686 = sbr.rel (%p4684) target = $region52
      $region51: #{tpu_custom_call.1} parent=5 // pred_region
        %s4687 = ssub.s32 %s15, 2
        // Predicated region
        $region53: #{tpu_custom_call.1} parent=51 // pred_check
          %p4688 = pneg %p154
        $region54: #{tpu_custom_call.1} parent=51 // pred_check_branch
          %4690 = sbr.rel (%p4688) target = $region56
        $region55: #{tpu_custom_call.1} parent=51 // pred_region
          %s4691 = sand.u32 %s139, 1
          %s4692 = scalar_lea.sflag [#allocation8], %s4691
          %s4693 = sand.u32 %s139, 1
          %s4694 = smul.addr %s4693, 256
          %s4695 = scalar_lea.vmem [#allocation9], %s4694
          %4696 = dma.done %s4692, 4096
        $region56: #{tpu_custom_call.1} parent=51 // pred_fallthru
          _
      $region52: #{tpu_custom_call.1} parent=5 // pred_fallthru
        _
    $region6: #{tpu_custom_call.1} parent=1 // loop_footer
      %s19 = sadd.s32 1, %s15
    $region7: #{tpu_custom_call.1} parent=1 // loop_footer_branch
      %14 = sbr.rel target = $region3
    $region8: #{tpu_custom_call.1} parent=1 // loop_exit
      _
    %4697 = vsyncpa [#allocation7], 1
    %s4698 = scalar_lea.sflag [#allocation7], 1
    %4699 = vsyncpa %s4698, 1
    %4700 = vsyncpa [#allocation8], 1
    %s4701 = scalar_lea.sflag [#allocation8], 1
    %4702 = vsyncpa %s4701, 1

</llo_original>
